<compile_context>
chip_gen: v6e
topology: v6e:2x2x1
jax: 0.10.0
libtpu: 0.0.40
codegen_flags: <defaults>
</compile_context>

<pallas_src>
import functools

import jax
import jax.numpy as jnp
from jax.experimental import pallas as pl
from jax.experimental.pallas import tpu as pltpu


def _round_up(x: int, m: int) -> int:
    return (x + m - 1) // m * m


def _vmem_capacity_bytes() -> int:
    """Generation-aware VMEM capacity; conservative fallback if unqueryable."""
    try:
        return int(pltpu.get_tpu_info().vmem_capacity_bytes)
    except Exception:
        return 64 * 1024 * 1024          # v7x-sized conservative default


def _toeplitz_same_conv_matrix(kernel2d, H: int, W: int, flat: int):
    """Build T so that (row-major image) @ T == conv2d(image, w, padding='same').

    T[p, q] = w[i, j] whenever output pixel q=(y,x) reads input pixel
    p=(y+i-ph, x+j-pw) inside the image (cross-correlation, zero padding).
    Rows/cols with index >= H*W stay zero, so lane padding and any stale values
    carried in those lanes can never contaminate valid outputs.
    """
    KH, KW = kernel2d.shape
    ph, pw = (KH - 1) // 2, (KW - 1) // 2      # XLA/PyTorch 'same' (odd kernels)
    HW = H * W
    q = jnp.arange(HW, dtype=jnp.int32)
    oy, ox = q // W, q % W
    T = jnp.zeros((flat, flat), jnp.float32)
    for i in range(KH):
        for j in range(KW):
            iy, ix = oy + (i - ph), ox + (j - pw)
            valid = (iy >= 0) & (iy < H) & (ix >= 0) & (ix < W)
            p = jnp.where(valid, iy * W + ix, 0)
            T = T.at[p, q].add(jnp.where(valid, kernel2d[i, j], 0.0))
    return T


def _make_kernel(num_layers: int, flat: int, threshold: float, steepness: float):
    def kernel(t_ref, x_ref, o_ref):
        # t_ref: (flat, flat)             VMEM  banded-Toeplitz conv matrix
        # x_ref: (tile_n, flat)           VMEM  row-major image rows (zero tail)
        # o_ref: (tile_n, num_layers*flat) VMEM  per-layer lane-dense slabs
        cur = x_ref[...]
        for layer in range(num_layers):
            # conv2d(padding='same') == one MXU matmul against T.
            # HIGHEST keeps ~f32 accuracy (steepness=100 amplifies conv error).
            acc = jnp.dot(cur, t_ref[...],
                          preferred_element_type=jnp.float32,
                          precision=jax.lax.Precision.HIGHEST)
            # MBO smooth threshold: sigmoid(steepness * (acc - threshold)).
            act = 1.0 / (1.0 + jnp.exp(-steepness * (acc - threshold)))
            # Dense, unmasked store at a 128-lane-aligned offset.
            o_ref[:, layer * flat:(layer + 1) * flat] = act
            cur = act                      # halo re-pad is folded into T
    return kernel


def flexible_convnet_forward(x_nchw, kernel2d, *, num_layers, threshold,
                             steepness):
    """x_nchw: (N, 1, H, W) f32; kernel2d: (KH, KW) f32 -> (N, num_layers, H, W)."""
    assert x_nchw.shape[1] == 1, "shared kernel has a single input channel"
    N, _, H, W = x_nchw.shape
    HW = H * W
    flat = _round_up(HW, 128)              # lane-dense valid-coordinate frame

    # ---- wrapper-side layout plumbing (kept out of the kernel) ---------------
    T = _toeplitz_same_conv_matrix(kernel2d.astype(jnp.float32), H, W, flat)

    # ---- batch tile: VMEM-budget derived, generation aware -------------------
    SUB = 8
    # Per batch row (f32 bytes): double-buffered input + output blocks, plus
    # ~5 live (1, flat) temporaries inside the body (cur / acc / exp / act /
    # slack for the scheduler).
    bytes_per_row = (2 * 1 + 2 * num_layers + 5) * flat * 4
    fixed_bytes = 3 * flat * flat * 4      # Toeplitz matrix (buffers + margin)
    vmem_cap = _vmem_capacity_bytes()
    budget = min(int(vmem_cap * 0.6), 96 * 1024 * 1024)   # ~38 MiB v7x, ~77 MiB v5e/v6e
    cap_rows = max(SUB, ((budget - fixed_bytes) // bytes_per_row) // SUB * SUB)

    n_rows = _round_up(N, SUB)             # keep every block a multiple of 8 sublanes
    tile_n = min(n_rows, cap_rows)
    if n_rows >= 2 * SUB:
        # >= 2 grid steps so the "parallel" batch axis can shard across both
        # v7x TensorCores (costs only ~0.35us/step on single-TC chips).
        tile_n = min(tile_n, _round_up(pl.cdiv(n_rows, 2), SUB))
    grid_steps = pl.cdiv(n_rows, tile_n)
    N_pad = grid_steps * tile_n

    x_rows = x_nchw[:, 0].astype(jnp.float32).reshape(N, HW)
    x_flat = jnp.pad(x_rows, ((0, N_pad - N), (0, flat - HW)))

    footprint = fixed_bytes + tile_n * bytes_per_row
    vmem_limit = int(min(vmem_cap,
                         max(32 * 1024 * 1024, footprint + 8 * 1024 * 1024)))

    kern = _make_kernel(num_layers, flat, float(threshold), float(steepness))
    out_flat = pl.pallas_call(
        kern,
        out_shape=jax.ShapeDtypeStruct((N_pad, num_layers * flat), jnp.float32),
        grid=(grid_steps,),
        in_specs=[
            pl.BlockSpec((flat, flat), lambda b: (0, 0)),       # T, VMEM-resident
            pl.BlockSpec((tile_n, flat), lambda b: (b, 0)),     # image rows
        ],
        out_specs=pl.BlockSpec((tile_n, num_layers * flat), lambda b: (b, 0)),
        compiler_params=pltpu.CompilerParams(
            dimension_semantics=("parallel",),                  # megacore on v7x
            vmem_limit_bytes=vmem_limit,
        ),
    )(T, x_flat)

    # TODO(synk): for large H*W, band/block the Toeplitz matrix (it is only
    # KH*W-banded) and tile the flat axis instead of a dense (flat, flat) T;
    # optionally emit bf16 activations if downstream tolerates it.
    out = out_flat[:N].reshape(N, num_layers, flat)[:, :, :HW]
    return out.reshape(N, num_layers, H, W)


def _reference_forward(x_nchw, kernel2d, *, num_layers, threshold, steepness):
    """Pure-JAX reference mirroring the PyTorch module."""
    w = kernel2d[None, None].astype(jnp.float32)        # (1,1,KH,KW)
    cur = x_nchw.astype(jnp.float32)
    outs = []
    for _ in range(num_layers):
        cur = jax.lax.conv_general_dilated(
            cur, w, window_strides=(1, 1), padding="SAME",
            dimension_numbers=("NCHW", "OIHW", "NCHW"),
            precision=jax.lax.Precision.HIGHEST)
        cur = jax.nn.sigmoid(steepness * (cur - threshold))
        outs.append(cur)
    return jnp.concatenate(outs, axis=1)


if __name__ == "__main__":
    N, H, W = 2, 16, 16
    KH, KW = 3, 3
    num_layers = 4
    threshold = 0.5
    steepness = 100.0

    key = jax.random.PRNGKey(0)
    kx, kw = jax.random.split(key)
    x = jax.random.uniform(kx, (N, 1, H, W), dtype=jnp.float32)
    # deterministic shared kernel (roughly an averaging kernel + noise)
    kernel2d = (jnp.full((KH, KW), 1.0 / (KH * KW), jnp.float32)
                + 0.05 * jax.random.normal(kw, (KH, KW), dtype=jnp.float32))

    fwd = functools.partial(flexible_convnet_forward,
                            num_layers=num_layers,
                            threshold=threshold,
                            steepness=steepness)
    out = jax.block_until_ready(jax.jit(fwd)(x, kernel2d))

    ref = _reference_forward(x, kernel2d, num_layers=num_layers,
                             threshold=threshold, steepness=steepness)
    assert out.shape == (N, num_layers, H, W)
    # steepness=100 amplifies f32-level conv rounding differences near the
    # threshold crossing; any structural bug (Toeplitz/padding/layout) gives
    # O(1) errors, so 5e-3 is a tight but robust bound.
    assert jnp.allclose(out, ref, atol=5e-3), \
        f"max abs diff {jnp.max(jnp.abs(out - ref))}"

    print("KERNEL_OK")
</pallas_src>

<mosaic_0001>
module attributes {stable_mosaic.version = 11 : i64} {
  func.func private @main(%arg0: i32) attributes {dimension_semantics = [#tpu.dimension_semantics<core_parallel>], iteration_bounds = array<i64: 2>, tpu.core_type = #tpu.core_type<sc_scalar_subcore>, window_params = []} {
    return
  }
}

module attributes {stable_mosaic.version = 11 : i64} {
  func.func private @main(%arg0: i32) attributes {dimension_semantics = [#tpu.dimension_semantics<core_parallel>], iteration_bounds = array<i64: 2>, tpu.core_type = #tpu.core_type<sc_scalar_subcore>, window_params = []} {
    return
  }
}

module attributes {stable_mosaic.version = 11 : i64} {
  func.func @kernel(%arg0: i32, %arg1: memref<256x256xf32, #tpu.memory_space<vmem>>, %arg2: memref<8x256xf32, #tpu.memory_space<vmem>>, %arg3: memref<8x1024xf32, #tpu.memory_space<vmem>>) attributes {dimension_semantics = [#tpu.dimension_semantics<parallel>], iteration_bounds = array<i64: 1>, scalar_prefetch = 0 : i64, scratch_operands = 0 : i64, tpu.core_type = #tpu.core_type<tc>, window_params = [{pipeline_mode = #tpu.pipeline_mode<synchronous>, transform_indices = @transform_0, window_bounds = array<i64: 256, 256>}, {transform_indices = @transform_1, window_bounds = array<i64: 8, 256>}, {transform_indices = @transform_2, window_bounds = array<i64: 8, 1024>}]} {
    %c0 = arith.constant 0 : index
    %c0_0 = arith.constant 0 : index
    %0 = vector.load %arg2[%c0, %c0_0] : memref<8x256xf32, #tpu.memory_space<vmem>>, vector<8x256xf32>
    %c0_1 = arith.constant 0 : index
    %c0_2 = arith.constant 0 : index
    %1 = vector.load %arg1[%c0_1, %c0_2] : memref<256x256xf32, #tpu.memory_space<vmem>>, vector<256x256xf32>
    %cst = arith.constant dense<0.000000e+00> : vector<8x256xf32>
    %2 = tpu.matmul %0, %1, %cst {dimension_numbers = #tpu.dot_dimension_numbers<[1], [0], [0], [1], [0, 0, 1, 1], [], []>, precision = #tpu.contract_precision<fp32>} : vector<8x256xf32>, vector<256x256xf32>, vector<8x256xf32> -> vector<8x256xf32>
    %cst_3 = arith.constant 5.000000e-01 : f32
    %3 = vector.broadcast %cst_3 : f32 to vector<8x256xf32>
    %4 = arith.subf %2, %3 : vector<8x256xf32>
    %cst_4 = arith.constant -1.000000e+02 : f32
    %5 = vector.broadcast %cst_4 : f32 to vector<8x256xf32>
    %6 = arith.mulf %5, %4 : vector<8x256xf32>
    %7 = math.exp %6 : vector<8x256xf32>
    %cst_5 = arith.constant 1.000000e+00 : f32
    %8 = vector.broadcast %cst_5 : f32 to vector<8x256xf32>
    %9 = arith.addf %8, %7 : vector<8x256xf32>
    %cst_6 = arith.constant 1.000000e+00 : f32
    %10 = vector.broadcast %cst_6 : f32 to vector<8x256xf32>
    %11 = arith.divf %10, %9 : vector<8x256xf32>
    %c0_7 = arith.constant 0 : index
    %c0_8 = arith.constant 0 : index
    %12 = vector.load %arg3[%c0_7, %c0_8] : memref<8x1024xf32, #tpu.memory_space<vmem>>, vector<8x256xf32>
    tpu.vector_store %arg3[%c0_7, %c0_8], %11 {strides = array<i32>} : memref<8x1024xf32, #tpu.memory_space<vmem>>, vector<8x256xf32>,
    %c0_9 = arith.constant 0 : index
    %c0_10 = arith.constant 0 : index
    %13 = vector.load %arg1[%c0_9, %c0_10] : memref<256x256xf32, #tpu.memory_space<vmem>>, vector<256x256xf32>
    %cst_11 = arith.constant dense<0.000000e+00> : vector<8x256xf32>
    %14 = tpu.matmul %11, %13, %cst_11 {dimension_numbers = #tpu.dot_dimension_numbers<[1], [0], [0], [1], [0, 0, 1, 1], [], []>, precision = #tpu.contract_precision<fp32>} : vector<8x256xf32>, vector<256x256xf32>, vector<8x256xf32> -> vector<8x256xf32>
    %cst_12 = arith.constant 5.000000e-01 : f32
    %15 = vector.broadcast %cst_12 : f32 to vector<8x256xf32>
    %16 = arith.subf %14, %15 : vector<8x256xf32>
    %cst_13 = arith.constant -1.000000e+02 : f32
    %17 = vector.broadcast %cst_13 : f32 to vector<8x256xf32>
    %18 = arith.mulf %17, %16 : vector<8x256xf32>
    %19 = math.exp %18 : vector<8x256xf32>
    %cst_14 = arith.constant 1.000000e+00 : f32
    %20 = vector.broadcast %cst_14 : f32 to vector<8x256xf32>
    %21 = arith.addf %20, %19 : vector<8x256xf32>
    %cst_15 = arith.constant 1.000000e+00 : f32
    %22 = vector.broadcast %cst_15 : f32 to vector<8x256xf32>
    %23 = arith.divf %22, %21 : vector<8x256xf32>
    %c0_16 = arith.constant 0 : index
    %c256 = arith.constant 256 : index
    %24 = vector.load %arg3[%c0_16, %c256] : memref<8x1024xf32, #tpu.memory_space<vmem>>, vector<8x256xf32>
    tpu.vector_store %arg3[%c0_16, %c256], %23 {strides = array<i32>} : memref<8x1024xf32, #tpu.memory_space<vmem>>, vector<8x256xf32>,
    %c0_17 = arith.constant 0 : index
    %c0_18 = arith.constant 0 : index
    %25 = vector.load %arg1[%c0_17, %c0_18] : memref<256x256xf32, #tpu.memory_space<vmem>>, vector<256x256xf32>
    %cst_19 = arith.constant dense<0.000000e+00> : vector<8x256xf32>
    %26 = tpu.matmul %23, %25, %cst_19 {dimension_numbers = #tpu.dot_dimension_numbers<[1], [0], [0], [1], [0, 0, 1, 1], [], []>, precision = #tpu.contract_precision<fp32>} : vector<8x256xf32>, vector<256x256xf32>, vector<8x256xf32> -> vector<8x256xf32>
    %cst_20 = arith.constant 5.000000e-01 : f32
    %27 = vector.broadcast %cst_20 : f32 to vector<8x256xf32>
    %28 = arith.subf %26, %27 : vector<8x256xf32>
    %cst_21 = arith.constant -1.000000e+02 : f32
    %29 = vector.broadcast %cst_21 : f32 to vector<8x256xf32>
    %30 = arith.mulf %29, %28 : vector<8x256xf32>
    %31 = math.exp %30 : vector<8x256xf32>
    %cst_22 = arith.constant 1.000000e+00 : f32
    %32 = vector.broadcast %cst_22 : f32 to vector<8x256xf32>
    %33 = arith.addf %32, %31 : vector<8x256xf32>
    %cst_23 = arith.constant 1.000000e+00 : f32
    %34 = vector.broadcast %cst_23 : f32 to vector<8x256xf32>
    %35 = arith.divf %34, %33 : vector<8x256xf32>
    %c0_24 = arith.constant 0 : index
    %c512 = arith.constant 512 : index
    %36 = vector.load %arg3[%c0_24, %c512] : memref<8x1024xf32, #tpu.memory_space<vmem>>, vector<8x256xf32>
    tpu.vector_store %arg3[%c0_24, %c512], %35 {strides = array<i32>} : memref<8x1024xf32, #tpu.memory_space<vmem>>, vector<8x256xf32>,
    %c0_25 = arith.constant 0 : index
    %c0_26 = arith.constant 0 : index
    %37 = vector.load %arg1[%c0_25, %c0_26] : memref<256x256xf32, #tpu.memory_space<vmem>>, vector<256x256xf32>
    %cst_27 = arith.constant dense<0.000000e+00> : vector<8x256xf32>
    %38 = tpu.matmul %35, %37, %cst_27 {dimension_numbers = #tpu.dot_dimension_numbers<[1], [0], [0], [1], [0, 0, 1, 1], [], []>, precision = #tpu.contract_precision<fp32>} : vector<8x256xf32>, vector<256x256xf32>, vector<8x256xf32> -> vector<8x256xf32>
    %cst_28 = arith.constant 5.000000e-01 : f32
    %39 = vector.broadcast %cst_28 : f32 to vector<8x256xf32>
    %40 = arith.subf %38, %39 : vector<8x256xf32>
    %cst_29 = arith.constant -1.000000e+02 : f32
    %41 = vector.broadcast %cst_29 : f32 to vector<8x256xf32>
    %42 = arith.mulf %41, %40 : vector<8x256xf32>
    %43 = math.exp %42 : vector<8x256xf32>
    %cst_30 = arith.constant 1.000000e+00 : f32
    %44 = vector.broadcast %cst_30 : f32 to vector<8x256xf32>
    %45 = arith.addf %44, %43 : vector<8x256xf32>
    %cst_31 = arith.constant 1.000000e+00 : f32
    %46 = vector.broadcast %cst_31 : f32 to vector<8x256xf32>
    %47 = arith.divf %46, %45 : vector<8x256xf32>
    %c0_32 = arith.constant 0 : index
    %c768 = arith.constant 768 : index
    %48 = vector.load %arg3[%c0_32, %c768] : memref<8x1024xf32, #tpu.memory_space<vmem>>, vector<8x256xf32>
    tpu.vector_store %arg3[%c0_32, %c768], %47 {strides = array<i32>} : memref<8x1024xf32, #tpu.memory_space<vmem>>, vector<8x256xf32>,
    return
  }
  func.func @transform_0(%arg0: i32) -> (i32, i32) {
    %c0_i32 = arith.constant 0 : i32
    %c0_i32_0 = arith.constant 0 : i32
    %c0_i32_1 = arith.constant 0 : i32
    return %c0_i32, %c0_i32_0 : i32, i32
  }
  func.func @transform_1(%arg0: i32) -> (i32, i32) {
    %c0_i32 = arith.constant 0 : i32
    %c0_i32_0 = arith.constant 0 : i32
    return %arg0, %c0_i32 : i32, i32
  }
  func.func @transform_2(%arg0: i32) -> (i32, i32) {
    %c0_i32 = arith.constant 0 : i32
    %c0_i32_0 = arith.constant 0 : i32
    return %arg0, %c0_i32 : i32, i32
  }
}

</mosaic_0001>

<llo_original>
// kernel: squeeze.19
$region0: #{squeeze.19}
  %s0 = inlined_call_operand.vmem [shape: f32[2,1,16,16], index: 0, kind: input, shape index: {}]
  %s1 = inlined_call_operand.vmem [shape: f32[2,256], index: 1, kind: output, shape index: {}]
  $region1: #{squeeze.19} parent=0
    #allocation0 [shape = 'u8[8192]{0}', space=vmem, size = 0x2000, scoped, tag = 'scoped mem for output reshape']
    %v2 = vld [vmem:[%s0] ss:$8 sm:$0xf]
    %vm3 = vcmask 130048
    %4 = vst.msk [vmem:[#allocation0] ss:$8 sm:$0x3] %vm3, %v2
    %s5 = scalar_lea.vmem [#allocation0], 4294967281
    %6 = vst.msk [vmem:[%s5] ss:$8 sm:$0xc] %vm3, %v2
    %s7 = scalar_lea.vmem %s0, 7
    %s8 = smov 3
    %v9 = vld [vmem:[%s7] ss:$16 sm:%s8]
    %s10 = scalar_lea.vmem %s0, 4294967279
    %s11 = smov 12
    %v12 = vld [vmem:[%s10] ss:$16 sm:%s11]
    %vm13 = vcmask 1043458
    %v14 = vsel %vm13, %v12, %v9
    %15 = vrot.lane.b32.xlu0 %v14, 112
    %v16 = vpop.permute.xlu0 %15
    %vm17 = vcmask 1048448
    %18 = vst.msk [vmem:[#allocation0] sm:$0x3] %vm17, %v16
    %s19 = scalar_lea.vmem [#allocation0], 6
    %20 = vst.msk [vmem:[%s19] sm:$0xc] %vm17, %v16
    %s21 = scalar_lea.vmem %s0, 6
    %s22 = smov 3
    %v23 = vld [vmem:[%s21] ss:$16 sm:%s22]
    %s24 = scalar_lea.vmem %s0, 4294967278
    %s25 = smov 12
    %v26 = vld [vmem:[%s24] ss:$16 sm:%s25]
    %vm27 = vcmask 1043458
    %v28 = vsel %vm27, %v26, %v23
    %29 = vrot.lane.b32.xlu0 %v28, 96
    %v30 = vpop.permute.xlu0 %29
    %vm31 = vcmask 917248
    %32 = vst.msk [vmem:[#allocation0] sm:$0x3] %vm31, %v30
    %s33 = scalar_lea.vmem [#allocation0], 6
    %34 = vst.msk [vmem:[%s33] sm:$0xc] %vm31, %v30
    %s35 = scalar_lea.vmem %s0, 5
    %s36 = smov 3
    %v37 = vld [vmem:[%s35] ss:$16 sm:%s36]
    %s38 = scalar_lea.vmem %s0, 4294967277
    %s39 = smov 12
    %v40 = vld [vmem:[%s38] ss:$16 sm:%s39]
    %vm41 = vcmask 1043458
    %v42 = vsel %vm41, %v40, %v37
    %43 = vrot.lane.b32.xlu0 %v42, 80
    %v44 = vpop.permute.xlu0 %43
    %vm45 = vcmask 786048
    %46 = vst.msk [vmem:[#allocation0] sm:$0x3] %vm45, %v44
    %s47 = scalar_lea.vmem [#allocation0], 6
    %48 = vst.msk [vmem:[%s47] sm:$0xc] %vm45, %v44
    %s49 = scalar_lea.vmem %s0, 4
    %s50 = smov 3
    %v51 = vld [vmem:[%s49] ss:$16 sm:%s50]
    %s52 = scalar_lea.vmem %s0, 4294967276
    %s53 = smov 12
    %v54 = vld [vmem:[%s52] ss:$16 sm:%s53]
    %vm55 = vcmask 1043458
    %v56 = vsel %vm55, %v54, %v51
    %57 = vrot.lane.b32.xlu0 %v56, 64
    %v58 = vpop.permute.xlu0 %57
    %vm59 = vcmask 654848
    %60 = vst.msk [vmem:[#allocation0] sm:$0x3] %vm59, %v58
    %s61 = scalar_lea.vmem [#allocation0], 6
    %62 = vst.msk [vmem:[%s61] sm:$0xc] %vm59, %v58
    %s63 = scalar_lea.vmem %s0, 3
    %s64 = smov 3
    %v65 = vld [vmem:[%s63] ss:$16 sm:%s64]
    %s66 = scalar_lea.vmem %s0, 4294967275
    %s67 = smov 12
    %v68 = vld [vmem:[%s66] ss:$16 sm:%s67]
    %vm69 = vcmask 1043458
    %v70 = vsel %vm69, %v68, %v65
    %71 = vrot.lane.b32.xlu0 %v70, 48
    %v72 = vpop.permute.xlu0 %71
    %vm73 = vcmask 523648
    %74 = vst.msk [vmem:[#allocation0] sm:$0x3] %vm73, %v72
    %s75 = scalar_lea.vmem [#allocation0], 6
    %76 = vst.msk [vmem:[%s75] sm:$0xc] %vm73, %v72
    %s77 = scalar_lea.vmem %s0, 2
    %s78 = smov 3
    %v79 = vld [vmem:[%s77] ss:$16 sm:%s78]
    %s80 = scalar_lea.vmem %s0, 4294967274
    %s81 = smov 12
    %v82 = vld [vmem:[%s80] ss:$16 sm:%s81]
    %vm83 = vcmask 1043458
    %v84 = vsel %vm83, %v82, %v79
    %85 = vrot.lane.b32.xlu0 %v84, 32
    %v86 = vpop.permute.xlu0 %85
    %vm87 = vcmask 392448
    %88 = vst.msk [vmem:[#allocation0] sm:$0x3] %vm87, %v86
    %s89 = scalar_lea.vmem [#allocation0], 6
    %90 = vst.msk [vmem:[%s89] sm:$0xc] %vm87, %v86
    %s91 = scalar_lea.vmem %s0, 1
    %s92 = smov 3
    %v93 = vld [vmem:[%s91] ss:$16 sm:%s92]
    %s94 = scalar_lea.vmem %s0, 4294967273
    %s95 = smov 12
    %v96 = vld [vmem:[%s94] ss:$16 sm:%s95]
    %vm97 = vcmask 1043458
    %v98 = vsel %vm97, %v96, %v93
    %99 = vrot.lane.b32.xlu0 %v98, 16
    %v100 = vpop.permute.xlu0 %99
    %vm101 = vcmask 261248
    %102 = vst.msk [vmem:[#allocation0] sm:$0x3] %vm101, %v100
    %s103 = scalar_lea.vmem [#allocation0], 6
    %104 = vst.msk [vmem:[%s103] sm:$0xc] %vm101, %v100
    %s106 = sshll.u32 1, 2
    %s107 = ssub.s32 %s106, 1
    %v109 = vld [vmem:[#allocation0] sm:%s107]
    %s110 = sshll.u32 1, 2
    %s111 = ssub.s32 %s110, 1
    %112 = vst [vmem:[%s1] sm:%s111] %v109
    %s113 = scalar_lea.vmem [#allocation0], 8
    %v114 = vld [vmem:[%s113] sm:%s107]
    %s115 = sshll.u32 1, 2
    %s116 = ssub.s32 %s115, 1
    %s117 = scalar_lea.vmem %s1, 2
    %118 = vst [vmem:[%s117] sm:%s116] %v114

// kernel: flexible_convnet_forward.1
$region0: #{flexible_convnet_forward.1}
  #allocation0 [shape = 'u32[]', space=smem, size = 0x4, offset = 0x4, fixed_abs, tag = 'smem constant byte address 0x4 - core index']
  #allocation1 [shape = 'u32[144,128]{1,0:T(1,128)}', space=vmem, size = 0x12000, scoped, tag = 'internal scratch']
  %s0 = inlined_call_operand.hbm [shape: f32[256,256], index: 0, kind: input, shape index: {}]
  %s1 = inlined_call_operand.vmem [shape: f32[8,256], index: 1, kind: input, shape index: {}]
  %s2 = inlined_call_operand.vmem [shape: f32[8,1024], index: 2, kind: output, shape index: {}]
  %s3 = sld [smem:[#allocation0]]
  $region22: #{flexible_convnet_forward.1} parent=0
    _
  %s5 = ssub.s32 1, %s3
  %s6 = scalar_select 0, %s5, %s3
  $region1: #{flexible_convnet_forward.1} parent=0
    #allocation2 [shape = 'u8[262144]{0}', space=vmem, size = 0x40000, scoped, tag = 'input window, operand 0, single buffered']
    #allocation3 [shape = 's32[1]{0}', space=sflag, size = 0x4, scoped, tag = 'scoped memory for flexible_convnet_forward.1']
    %7 = vsyncpa [#allocation3], 0
    // Predicated region
    $region2: #{flexible_convnet_forward.1} parent=1 // pred_check
      _
    $region3: #{flexible_convnet_forward.1} parent=1 // pred_check_branch
      %9 = sbr.rel (0) target = $region5
    $region4: #{flexible_convnet_forward.1} parent=1 // pred_region
      %s11 = ssub.s32 8192, 8192
      %12 = vsyncadd [#allocation3], %s11
      %s13 = sshll.u32 [#allocation2], 4
      %s14 = int_to_ptr.vmem [resolvable:$true] %s13
      %19 = dma.hbm_to_vmem [thread:$0]  %s0, 8192, %s14, [#allocation3], 256, 256, 16
    $region5: #{flexible_convnet_forward.1} parent=1 // pred_fallthru
      _
    // Predicated region
    $region6: #{flexible_convnet_forward.1} parent=1 // pred_check
      _
    $region7: #{flexible_convnet_forward.1} parent=1 // pred_check_branch
      %21 = sbr.rel (0) target = $region9
    $region8: #{flexible_convnet_forward.1} parent=1 // pred_region
      _
    $region9: #{flexible_convnet_forward.1} parent=1 // pred_fallthru
      _
    // Predicated region
    $region10: #{flexible_convnet_forward.1} parent=1 // pred_check
      _
    $region11: #{flexible_convnet_forward.1} parent=1 // pred_check_branch
      %23 = sbr.rel (0) target = $region13
    $region12: #{flexible_convnet_forward.1} parent=1 // pred_region
      %24 = dma.done [#allocation3], 8192
    $region13: #{flexible_convnet_forward.1} parent=1 // pred_fallthru
      _
    %v25 = vld [vmem:[%s1] sm:$0xff]
    %v26 = vld [vmem:[%s1 + $0x8] sm:$0xff]
    %v27 = vld [vmem:[#allocation2] sm:$0xff]
    %v28 = vld [vmem:[#allocation2 + $0x8] sm:$0xff]
    %v29 = vld [vmem:[#allocation2 + $0x10] sm:$0xff]
    %v30 = vld [vmem:[#allocation2 + $0x18] sm:$0xff]
    %v31 = vld [vmem:[#allocation2 + $0x20] sm:$0xff]
    %v32 = vld [vmem:[#allocation2 + $0x28] sm:$0xff]
    %v33 = vld [vmem:[#allocation2 + $0x30] sm:$0xff]
    %v34 = vld [vmem:[#allocation2 + $0x38] sm:$0xff]
    %v35 = vld [vmem:[#allocation2 + $0x40] sm:$0xff]
    %v36 = vld [vmem:[#allocation2 + $0x48] sm:$0xff]
    %v37 = vld [vmem:[#allocation2 + $0x50] sm:$0xff]
    %v38 = vld [vmem:[#allocation2 + $0x58] sm:$0xff]
    %v39 = vld [vmem:[#allocation2 + $0x60] sm:$0xff]
    %v40 = vld [vmem:[#allocation2 + $0x68] sm:$0xff]
    %v41 = vld [vmem:[#allocation2 + $0x70] sm:$0xff]
    %v42 = vld [vmem:[#allocation2 + $0x78] sm:$0xff]
    %v43 = vld [vmem:[#allocation2 + $0x80] sm:$0xff]
    %v44 = vld [vmem:[#allocation2 + $0x88] sm:$0xff]
    %v45 = vld [vmem:[#allocation2 + $0x90] sm:$0xff]
    %v46 = vld [vmem:[#allocation2 + $0x98] sm:$0xff]
    %v47 = vld [vmem:[#allocation2 + $0xa0] sm:$0xff]
    %v48 = vld [vmem:[#allocation2 + $0xa8] sm:$0xff]
    %v49 = vld [vmem:[#allocation2 + $0xb0] sm:$0xff]
    %v50 = vld [vmem:[#allocation2 + $0xb8] sm:$0xff]
    %v51 = vld [vmem:[#allocation2 + $0xc0] sm:$0xff]
    %v52 = vld [vmem:[#allocation2 + $0xc8] sm:$0xff]
    %v53 = vld [vmem:[#allocation2 + $0xd0] sm:$0xff]
    %v54 = vld [vmem:[#allocation2 + $0xd8] sm:$0xff]
    %v55 = vld [vmem:[#allocation2 + $0xe0] sm:$0xff]
    %v56 = vld [vmem:[#allocation2 + $0xe8] sm:$0xff]
    %v57 = vld [vmem:[#allocation2 + $0xf0] sm:$0xff]
    %v58 = vld [vmem:[#allocation2 + $0xf8] sm:$0xff]
    %v59 = vld [vmem:[#allocation2 + $0x100] sm:$0xff]
    %v60 = vld [vmem:[#allocation2 + $0x108] sm:$0xff]
    %v61 = vld [vmem:[#allocation2 + $0x110] sm:$0xff]
    %v62 = vld [vmem:[#allocation2 + $0x118] sm:$0xff]
    %v63 = vld [vmem:[#allocation2 + $0x120] sm:$0xff]
    %v64 = vld [vmem:[#allocation2 + $0x128] sm:$0xff]
    %v65 = vld [vmem:[#allocation2 + $0x130] sm:$0xff]
    %v66 = vld [vmem:[#allocation2 + $0x138] sm:$0xff]
    %v67 = vld [vmem:[#allocation2 + $0x140] sm:$0xff]
    %v68 = vld [vmem:[#allocation2 + $0x148] sm:$0xff]
    %v69 = vld [vmem:[#allocation2 + $0x150] sm:$0xff]
    %v70 = vld [vmem:[#allocation2 + $0x158] sm:$0xff]
    %v71 = vld [vmem:[#allocation2 + $0x160] sm:$0xff]
    %v72 = vld [vmem:[#allocation2 + $0x168] sm:$0xff]
    %v73 = vld [vmem:[#allocation2 + $0x170] sm:$0xff]
    %v74 = vld [vmem:[#allocation2 + $0x178] sm:$0xff]
    %v75 = vld [vmem:[#allocation2 + $0x180] sm:$0xff]
    %v76 = vld [vmem:[#allocation2 + $0x188] sm:$0xff]
    %v77 = vld [vmem:[#allocation2 + $0x190] sm:$0xff]
    %v78 = vld [vmem:[#allocation2 + $0x198] sm:$0xff]
    %v79 = vld [vmem:[#allocation2 + $0x1a0] sm:$0xff]
    %v80 = vld [vmem:[#allocation2 + $0x1a8] sm:$0xff]
    %v81 = vld [vmem:[#allocation2 + $0x1b0] sm:$0xff]
    %v82 = vld [vmem:[#allocation2 + $0x1b8] sm:$0xff]
    %v83 = vld [vmem:[#allocation2 + $0x1c0] sm:$0xff]
    %v84 = vld [vmem:[#allocation2 + $0x1c8] sm:$0xff]
    %v85 = vld [vmem:[#allocation2 + $0x1d0] sm:$0xff]
    %v86 = vld [vmem:[#allocation2 + $0x1d8] sm:$0xff]
    %v87 = vld [vmem:[#allocation2 + $0x1e0] sm:$0xff]
    %v88 = vld [vmem:[#allocation2 + $0x1e8] sm:$0xff]
    %v89 = vld [vmem:[#allocation2 + $0x1f0] sm:$0xff]
    %v90 = vld [vmem:[#allocation2 + $0x1f8] sm:$0xff]
    %v91 = vand.u32 %v58, 4294901760
    %92 = vmatprep.subr.mxu0 %v91
    %v93 = vand.u32 %v57, 4294901760
    %94 = vmatpush1.msra.mxu0 %v93
    %v95 = vand.u32 %v56, 4294901760
    %96 = vmatprep.subr.mxu0 %v95
    %v97 = vand.u32 %v55, 4294901760
    %98 = vmatpush1.msra.mxu0 %v97
    %v99 = vand.u32 %v54, 4294901760
    %100 = vmatprep.subr.mxu0 %v99
    %v101 = vand.u32 %v53, 4294901760
    %102 = vmatpush1.msra.mxu0 %v101
    %v103 = vand.u32 %v52, 4294901760
    %104 = vmatprep.subr.mxu0 %v103
    %v105 = vand.u32 %v51, 4294901760
    %106 = vmatpush1.msra.mxu0 %v105
    %v107 = vand.u32 %v50, 4294901760
    %108 = vmatprep.subr.mxu0 %v107
    %v109 = vand.u32 %v49, 4294901760
    %110 = vmatpush1.msra.mxu0 %v109
    %v111 = vand.u32 %v48, 4294901760
    %112 = vmatprep.subr.mxu0 %v111
    %v113 = vand.u32 %v47, 4294901760
    %114 = vmatpush1.msra.mxu0 %v113
    %v115 = vand.u32 %v46, 4294901760
    %116 = vmatprep.subr.mxu0 %v115
    %v117 = vand.u32 %v45, 4294901760
    %118 = vmatpush1.msra.mxu0 %v117
    %v119 = vand.u32 %v44, 4294901760
    %120 = vmatprep.subr.mxu0 %v119
    %v121 = vand.u32 %v43, 4294901760
    %122 = vmatpush1.msra.mxu0 %v121
    %v123 = vand.u32 %v42, 4294901760
    %124 = vmatprep.subr.mxu0 %v123
    %v125 = vand.u32 %v41, 4294901760
    %126 = vmatpush1.msra.mxu0 %v125
    %v127 = vand.u32 %v40, 4294901760
    %128 = vmatprep.subr.mxu0 %v127
    %v129 = vand.u32 %v39, 4294901760
    %130 = vmatpush1.msra.mxu0 %v129
    %v131 = vand.u32 %v38, 4294901760
    %132 = vmatprep.subr.mxu0 %v131
    %v133 = vand.u32 %v37, 4294901760
    %134 = vmatpush1.msra.mxu0 %v133
    %v135 = vand.u32 %v36, 4294901760
    %136 = vmatprep.subr.mxu0 %v135
    %v137 = vand.u32 %v35, 4294901760
    %138 = vmatpush1.msra.mxu0 %v137
    %v139 = vand.u32 %v34, 4294901760
    %140 = vmatprep.subr.mxu0 %v139
    %v141 = vand.u32 %v33, 4294901760
    %142 = vmatpush1.msra.mxu0 %v141
    %v143 = vand.u32 %v32, 4294901760
    %144 = vmatprep.subr.mxu0 %v143
    %v145 = vand.u32 %v31, 4294901760
    %146 = vmatpush1.msra.mxu0 %v145
    %v147 = vand.u32 %v30, 4294901760
    %148 = vmatprep.subr.mxu0 %v147
    %v149 = vand.u32 %v29, 4294901760
    %150 = vmatpush1.msra.mxu0 %v149
    %v151 = vand.u32 %v28, 4294901760
    %152 = vmatprep.subr.mxu0 %v151
    %v153 = vand.u32 %v27, 4294901760
    %154 = vmatpush1.msra.mxu0 %v153
    %v155 = vand.u32 %v90, 4294901760
    %156 = vmatprep.subr.mxu0 %v155
    %v157 = vand.u32 %v89, 4294901760
    %158 = vmatpush2.msra.mxu0 %v157
    %v159 = vand.u32 %v88, 4294901760
    %160 = vmatprep.subr.mxu0 %v159
    %v161 = vand.u32 %v87, 4294901760
    %162 = vmatpush2.msra.mxu0 %v161
    %v163 = vand.u32 %v86, 4294901760
    %164 = vmatprep.subr.mxu0 %v163
    %v165 = vand.u32 %v85, 4294901760
    %166 = vmatpush2.msra.mxu0 %v165
    %v167 = vand.u32 %v84, 4294901760
    %168 = vmatprep.subr.mxu0 %v167
    %v169 = vand.u32 %v83, 4294901760
    %170 = vmatpush2.msra.mxu0 %v169
    %v171 = vand.u32 %v82, 4294901760
    %172 = vmatprep.subr.mxu0 %v171
    %v173 = vand.u32 %v81, 4294901760
    %174 = vmatpush2.msra.mxu0 %v173
    %v175 = vand.u32 %v80, 4294901760
    %176 = vmatprep.subr.mxu0 %v175
    %v177 = vand.u32 %v79, 4294901760
    %178 = vmatpush2.msra.mxu0 %v177
    %v179 = vand.u32 %v78, 4294901760
    %180 = vmatprep.subr.mxu0 %v179
    %v181 = vand.u32 %v77, 4294901760
    %182 = vmatpush2.msra.mxu0 %v181
    %v183 = vand.u32 %v76, 4294901760
    %184 = vmatprep.subr.mxu0 %v183
    %v185 = vand.u32 %v75, 4294901760
    %186 = vmatpush2.msra.mxu0 %v185
    %v187 = vand.u32 %v74, 4294901760
    %188 = vmatprep.subr.mxu0 %v187
    %v189 = vand.u32 %v73, 4294901760
    %190 = vmatpush2.msra.mxu0 %v189
    %v191 = vand.u32 %v72, 4294901760
    %192 = vmatprep.subr.mxu0 %v191
    %v193 = vand.u32 %v71, 4294901760
    %194 = vmatpush2.msra.mxu0 %v193
    %v195 = vand.u32 %v70, 4294901760
    %196 = vmatprep.subr.mxu0 %v195
    %v197 = vand.u32 %v69, 4294901760
    %198 = vmatpush2.msra.mxu0 %v197
    %v199 = vand.u32 %v68, 4294901760
    %200 = vmatprep.subr.mxu0 %v199
    %v201 = vand.u32 %v67, 4294901760
    %202 = vmatpush2.msra.mxu0 %v201
    %v203 = vand.u32 %v66, 4294901760
    %204 = vmatprep.subr.mxu0 %v203
    %v205 = vand.u32 %v65, 4294901760
    %206 = vmatpush2.msra.mxu0 %v205
    %v207 = vand.u32 %v64, 4294901760
    %208 = vmatprep.subr.mxu0 %v207
    %v209 = vand.u32 %v63, 4294901760
    %210 = vmatpush2.msra.mxu0 %v209
    %v211 = vand.u32 %v62, 4294901760
    %212 = vmatprep.subr.mxu0 %v211
    %v213 = vand.u32 %v61, 4294901760
    %214 = vmatpush2.msra.mxu0 %v213
    %v215 = vand.u32 %v60, 4294901760
    %216 = vmatprep.subr.mxu0 %v215
    %v217 = vand.u32 %v59, 4294901760
    %218 = vmatpush2.msra.mxu0 %v217
    %v219 = vand.u32 %v26, 4294901760
    %v220 = vsub.f32 %v26, %v219
    %v221 = vand.u32 %v220, 4294901760
    %v222 = vsub.f32 %v220, %v221
    %v223 = vand.u32 %v222, 4294901760
    %224 = vmatprep.mubr.f32.mxu0 %v223
    %v225 = vand.u32 %v25, 4294901760
    %v226 = vsub.f32 %v25, %v225
    %v227 = vand.u32 %v226, 4294901760
    %v228 = vsub.f32 %v226, %v227
    %v229 = vand.u32 %v228, 4294901760
    %230 = vmatmul.mubr.f32.gmra.mxu0 %v229
    %v231 = vpop.f32.mrf.mxu0
    %v232 = vadd.f32 0.0, %v231
    %v233 = vpop.f32.mrf.mxu0
    %v234 = vadd.f32 0.0, %v233
    %235 = vdwg.mxu0
    %v236 = vand.u32 %v58, 4294901760
    %v237 = vsub.f32 %v58, %v236
    %v238 = vand.u32 %v237, 4294901760
    %v239 = vsub.f32 %v237, %v238
    %v240 = vand.u32 %v239, 4294901760
    %241 = vmatprep.subr.mxu0 %v240
    %v242 = vand.u32 %v57, 4294901760
    %v243 = vsub.f32 %v57, %v242
    %v244 = vand.u32 %v243, 4294901760
    %v245 = vsub.f32 %v243, %v244
    %v246 = vand.u32 %v245, 4294901760
    %247 = vmatpush1.msra.mxu0 %v246
    %v248 = vand.u32 %v56, 4294901760
    %v249 = vsub.f32 %v56, %v248
    %v250 = vand.u32 %v249, 4294901760
    %v251 = vsub.f32 %v249, %v250
    %v252 = vand.u32 %v251, 4294901760
    %253 = vmatprep.subr.mxu0 %v252
    %v254 = vand.u32 %v55, 4294901760
    %v255 = vsub.f32 %v55, %v254
    %v256 = vand.u32 %v255, 4294901760
    %v257 = vsub.f32 %v255, %v256
    %v258 = vand.u32 %v257, 4294901760
    %259 = vmatpush1.msra.mxu0 %v258
    %v260 = vand.u32 %v54, 4294901760
    %v261 = vsub.f32 %v54, %v260
    %v262 = vand.u32 %v261, 4294901760
    %v263 = vsub.f32 %v261, %v262
    %v264 = vand.u32 %v263, 4294901760
    %265 = vmatprep.subr.mxu0 %v264
    %v266 = vand.u32 %v53, 4294901760
    %v267 = vsub.f32 %v53, %v266
    %v268 = vand.u32 %v267, 4294901760
    %v269 = vsub.f32 %v267, %v268
    %v270 = vand.u32 %v269, 4294901760
    %271 = vmatpush1.msra.mxu0 %v270
    %v272 = vand.u32 %v52, 4294901760
    %v273 = vsub.f32 %v52, %v272
    %v274 = vand.u32 %v273, 4294901760
    %v275 = vsub.f32 %v273, %v274
    %v276 = vand.u32 %v275, 4294901760
    %277 = vmatprep.subr.mxu0 %v276
    %v278 = vand.u32 %v51, 4294901760
    %v279 = vsub.f32 %v51, %v278
    %v280 = vand.u32 %v279, 4294901760
    %v281 = vsub.f32 %v279, %v280
    %v282 = vand.u32 %v281, 4294901760
    %283 = vmatpush1.msra.mxu0 %v282
    %v284 = vand.u32 %v50, 4294901760
    %v285 = vsub.f32 %v50, %v284
    %v286 = vand.u32 %v285, 4294901760
    %v287 = vsub.f32 %v285, %v286
    %v288 = vand.u32 %v287, 4294901760
    %289 = vmatprep.subr.mxu0 %v288
    %v290 = vand.u32 %v49, 4294901760
    %v291 = vsub.f32 %v49, %v290
    %v292 = vand.u32 %v291, 4294901760
    %v293 = vsub.f32 %v291, %v292
    %v294 = vand.u32 %v293, 4294901760
    %295 = vmatpush1.msra.mxu0 %v294
    %v296 = vand.u32 %v48, 4294901760
    %v297 = vsub.f32 %v48, %v296
    %v298 = vand.u32 %v297, 4294901760
    %v299 = vsub.f32 %v297, %v298
    %v300 = vand.u32 %v299, 4294901760
    %301 = vmatprep.subr.mxu0 %v300
    %v302 = vand.u32 %v47, 4294901760
    %v303 = vsub.f32 %v47, %v302
    %v304 = vand.u32 %v303, 4294901760
    %v305 = vsub.f32 %v303, %v304
    %v306 = vand.u32 %v305, 4294901760
    %307 = vmatpush1.msra.mxu0 %v306
    %v308 = vand.u32 %v46, 4294901760
    %v309 = vsub.f32 %v46, %v308
    %v310 = vand.u32 %v309, 4294901760
    %v311 = vsub.f32 %v309, %v310
    %v312 = vand.u32 %v311, 4294901760
    %313 = vmatprep.subr.mxu0 %v312
    %v314 = vand.u32 %v45, 4294901760
    %v315 = vsub.f32 %v45, %v314
    %v316 = vand.u32 %v315, 4294901760
    %v317 = vsub.f32 %v315, %v316
    %v318 = vand.u32 %v317, 4294901760
    %319 = vmatpush1.msra.mxu0 %v318
    %v320 = vand.u32 %v44, 4294901760
    %v321 = vsub.f32 %v44, %v320
    %v322 = vand.u32 %v321, 4294901760
    %v323 = vsub.f32 %v321, %v322
    %v324 = vand.u32 %v323, 4294901760
    %325 = vmatprep.subr.mxu0 %v324
    %v326 = vand.u32 %v43, 4294901760
    %v327 = vsub.f32 %v43, %v326
    %v328 = vand.u32 %v327, 4294901760
    %v329 = vsub.f32 %v327, %v328
    %v330 = vand.u32 %v329, 4294901760
    %331 = vmatpush1.msra.mxu0 %v330
    %v332 = vand.u32 %v42, 4294901760
    %v333 = vsub.f32 %v42, %v332
    %v334 = vand.u32 %v333, 4294901760
    %v335 = vsub.f32 %v333, %v334
    %v336 = vand.u32 %v335, 4294901760
    %337 = vmatprep.subr.mxu0 %v336
    %v338 = vand.u32 %v41, 4294901760
    %v339 = vsub.f32 %v41, %v338
    %v340 = vand.u32 %v339, 4294901760
    %v341 = vsub.f32 %v339, %v340
    %v342 = vand.u32 %v341, 4294901760
    %343 = vmatpush1.msra.mxu0 %v342
    %v344 = vand.u32 %v40, 4294901760
    %v345 = vsub.f32 %v40, %v344
    %v346 = vand.u32 %v345, 4294901760
    %v347 = vsub.f32 %v345, %v346
    %v348 = vand.u32 %v347, 4294901760
    %349 = vmatprep.subr.mxu0 %v348
    %v350 = vand.u32 %v39, 4294901760
    %v351 = vsub.f32 %v39, %v350
    %v352 = vand.u32 %v351, 4294901760
    %v353 = vsub.f32 %v351, %v352
    %v354 = vand.u32 %v353, 4294901760
    %355 = vmatpush1.msra.mxu0 %v354
    %v356 = vand.u32 %v38, 4294901760
    %v357 = vsub.f32 %v38, %v356
    %v358 = vand.u32 %v357, 4294901760
    %v359 = vsub.f32 %v357, %v358
    %v360 = vand.u32 %v359, 4294901760
    %361 = vmatprep.subr.mxu0 %v360
    %v362 = vand.u32 %v37, 4294901760
    %v363 = vsub.f32 %v37, %v362
    %v364 = vand.u32 %v363, 4294901760
    %v365 = vsub.f32 %v363, %v364
    %v366 = vand.u32 %v365, 4294901760
    %367 = vmatpush1.msra.mxu0 %v366
    %v368 = vand.u32 %v36, 4294901760
    %v369 = vsub.f32 %v36, %v368
    %v370 = vand.u32 %v369, 4294901760
    %v371 = vsub.f32 %v369, %v370
    %v372 = vand.u32 %v371, 4294901760
    %373 = vmatprep.subr.mxu0 %v372
    %v374 = vand.u32 %v35, 4294901760
    %v375 = vsub.f32 %v35, %v374
    %v376 = vand.u32 %v375, 4294901760
    %v377 = vsub.f32 %v375, %v376
    %v378 = vand.u32 %v377, 4294901760
    %379 = vmatpush1.msra.mxu0 %v378
    %v380 = vand.u32 %v34, 4294901760
    %v381 = vsub.f32 %v34, %v380
    %v382 = vand.u32 %v381, 4294901760
    %v383 = vsub.f32 %v381, %v382
    %v384 = vand.u32 %v383, 4294901760
    %385 = vmatprep.subr.mxu0 %v384
    %v386 = vand.u32 %v33, 4294901760
    %v387 = vsub.f32 %v33, %v386
    %v388 = vand.u32 %v387, 4294901760
    %v389 = vsub.f32 %v387, %v388
    %v390 = vand.u32 %v389, 4294901760
    %391 = vmatpush1.msra.mxu0 %v390
    %v392 = vand.u32 %v32, 4294901760
    %v393 = vsub.f32 %v32, %v392
    %v394 = vand.u32 %v393, 4294901760
    %v395 = vsub.f32 %v393, %v394
    %v396 = vand.u32 %v395, 4294901760
    %397 = vmatprep.subr.mxu0 %v396
    %v398 = vand.u32 %v31, 4294901760
    %v399 = vsub.f32 %v31, %v398
    %v400 = vand.u32 %v399, 4294901760
    %v401 = vsub.f32 %v399, %v400
    %v402 = vand.u32 %v401, 4294901760
    %403 = vmatpush1.msra.mxu0 %v402
    %v404 = vand.u32 %v30, 4294901760
    %v405 = vsub.f32 %v30, %v404
    %v406 = vand.u32 %v405, 4294901760
    %v407 = vsub.f32 %v405, %v406
    %v408 = vand.u32 %v407, 4294901760
    %409 = vmatprep.subr.mxu0 %v408
    %v410 = vand.u32 %v29, 4294901760
    %v411 = vsub.f32 %v29, %v410
    %v412 = vand.u32 %v411, 4294901760
    %v413 = vsub.f32 %v411, %v412
    %v414 = vand.u32 %v413, 4294901760
    %415 = vmatpush1.msra.mxu0 %v414
    %v416 = vand.u32 %v28, 4294901760
    %v417 = vsub.f32 %v28, %v416
    %v418 = vand.u32 %v417, 4294901760
    %v419 = vsub.f32 %v417, %v418
    %v420 = vand.u32 %v419, 4294901760
    %421 = vmatprep.subr.mxu0 %v420
    %v422 = vand.u32 %v27, 4294901760
    %v423 = vsub.f32 %v27, %v422
    %v424 = vand.u32 %v423, 4294901760
    %v425 = vsub.f32 %v423, %v424
    %v426 = vand.u32 %v425, 4294901760
    %427 = vmatpush1.msra.mxu0 %v426
    %v428 = vand.u32 %v90, 4294901760
    %v429 = vsub.f32 %v90, %v428
    %v430 = vand.u32 %v429, 4294901760
    %v431 = vsub.f32 %v429, %v430
    %v432 = vand.u32 %v431, 4294901760
    %433 = vmatprep.subr.mxu0 %v432
    %v434 = vand.u32 %v89, 4294901760
    %v435 = vsub.f32 %v89, %v434
    %v436 = vand.u32 %v435, 4294901760
    %v437 = vsub.f32 %v435, %v436
    %v438 = vand.u32 %v437, 4294901760
    %439 = vmatpush2.msra.mxu0 %v438
    %v440 = vand.u32 %v88, 4294901760
    %v441 = vsub.f32 %v88, %v440
    %v442 = vand.u32 %v441, 4294901760
    %v443 = vsub.f32 %v441, %v442
    %v444 = vand.u32 %v443, 4294901760
    %445 = vmatprep.subr.mxu0 %v444
    %v446 = vand.u32 %v87, 4294901760
    %v447 = vsub.f32 %v87, %v446
    %v448 = vand.u32 %v447, 4294901760
    %v449 = vsub.f32 %v447, %v448
    %v450 = vand.u32 %v449, 4294901760
    %451 = vmatpush2.msra.mxu0 %v450
    %v452 = vand.u32 %v86, 4294901760
    %v453 = vsub.f32 %v86, %v452
    %v454 = vand.u32 %v453, 4294901760
    %v455 = vsub.f32 %v453, %v454
    %v456 = vand.u32 %v455, 4294901760
    %457 = vmatprep.subr.mxu0 %v456
    %v458 = vand.u32 %v85, 4294901760
    %v459 = vsub.f32 %v85, %v458
    %v460 = vand.u32 %v459, 4294901760
    %v461 = vsub.f32 %v459, %v460
    %v462 = vand.u32 %v461, 4294901760
    %463 = vmatpush2.msra.mxu0 %v462
    %v464 = vand.u32 %v84, 4294901760
    %v465 = vsub.f32 %v84, %v464
    %v466 = vand.u32 %v465, 4294901760
    %v467 = vsub.f32 %v465, %v466
    %v468 = vand.u32 %v467, 4294901760
    %469 = vmatprep.subr.mxu0 %v468
    %v470 = vand.u32 %v83, 4294901760
    %v471 = vsub.f32 %v83, %v470
    %v472 = vand.u32 %v471, 4294901760
    %v473 = vsub.f32 %v471, %v472
    %v474 = vand.u32 %v473, 4294901760
    %475 = vmatpush2.msra.mxu0 %v474
    %v476 = vand.u32 %v82, 4294901760
    %v477 = vsub.f32 %v82, %v476
    %v478 = vand.u32 %v477, 4294901760
    %v479 = vsub.f32 %v477, %v478
    %v480 = vand.u32 %v479, 4294901760
    %481 = vmatprep.subr.mxu0 %v480
    %v482 = vand.u32 %v81, 4294901760
    %v483 = vsub.f32 %v81, %v482
    %v484 = vand.u32 %v483, 4294901760
    %v485 = vsub.f32 %v483, %v484
    %v486 = vand.u32 %v485, 4294901760
    %487 = vmatpush2.msra.mxu0 %v486
    %v488 = vand.u32 %v80, 4294901760
    %v489 = vsub.f32 %v80, %v488
    %v490 = vand.u32 %v489, 4294901760
    %v491 = vsub.f32 %v489, %v490
    %v492 = vand.u32 %v491, 4294901760
    %493 = vmatprep.subr.mxu0 %v492
    %v494 = vand.u32 %v79, 4294901760
    %v495 = vsub.f32 %v79, %v494
    %v496 = vand.u32 %v495, 4294901760
    %v497 = vsub.f32 %v495, %v496
    %v498 = vand.u32 %v497, 4294901760
    %499 = vmatpush2.msra.mxu0 %v498
    %v500 = vand.u32 %v78, 4294901760
    %v501 = vsub.f32 %v78, %v500
    %v502 = vand.u32 %v501, 4294901760
    %v503 = vsub.f32 %v501, %v502
    %v504 = vand.u32 %v503, 4294901760
    %505 = vmatprep.subr.mxu0 %v504
    %v506 = vand.u32 %v77, 4294901760
    %v507 = vsub.f32 %v77, %v506
    %v508 = vand.u32 %v507, 4294901760
    %v509 = vsub.f32 %v507, %v508
    %v510 = vand.u32 %v509, 4294901760
    %511 = vmatpush2.msra.mxu0 %v510
    %v512 = vand.u32 %v76, 4294901760
    %v513 = vsub.f32 %v76, %v512
    %v514 = vand.u32 %v513, 4294901760
    %v515 = vsub.f32 %v513, %v514
    %v516 = vand.u32 %v515, 4294901760
    %517 = vmatprep.subr.mxu0 %v516
    %v518 = vand.u32 %v75, 4294901760
    %v519 = vsub.f32 %v75, %v518
    %v520 = vand.u32 %v519, 4294901760
    %v521 = vsub.f32 %v519, %v520
    %v522 = vand.u32 %v521, 4294901760
    %523 = vmatpush2.msra.mxu0 %v522
    %v524 = vand.u32 %v74, 4294901760
    %v525 = vsub.f32 %v74, %v524
    %v526 = vand.u32 %v525, 4294901760
    %v527 = vsub.f32 %v525, %v526
    %v528 = vand.u32 %v527, 4294901760
    %529 = vmatprep.subr.mxu0 %v528
    %v530 = vand.u32 %v73, 4294901760
    %v531 = vsub.f32 %v73, %v530
    %v532 = vand.u32 %v531, 4294901760
    %v533 = vsub.f32 %v531, %v532
    %v534 = vand.u32 %v533, 4294901760
    %535 = vmatpush2.msra.mxu0 %v534
    %v536 = vand.u32 %v72, 4294901760
    %v537 = vsub.f32 %v72, %v536
    %v538 = vand.u32 %v537, 4294901760
    %v539 = vsub.f32 %v537, %v538
    %v540 = vand.u32 %v539, 4294901760
    %541 = vmatprep.subr.mxu0 %v540
    %v542 = vand.u32 %v71, 4294901760
    %v543 = vsub.f32 %v71, %v542
    %v544 = vand.u32 %v543, 4294901760
    %v545 = vsub.f32 %v543, %v544
    %v546 = vand.u32 %v545, 4294901760
    %547 = vmatpush2.msra.mxu0 %v546
    %v548 = vand.u32 %v70, 4294901760
    %v549 = vsub.f32 %v70, %v548
    %v550 = vand.u32 %v549, 4294901760
    %v551 = vsub.f32 %v549, %v550
    %v552 = vand.u32 %v551, 4294901760
    %553 = vmatprep.subr.mxu0 %v552
    %v554 = vand.u32 %v69, 4294901760
    %v555 = vsub.f32 %v69, %v554
    %v556 = vand.u32 %v555, 4294901760
    %v557 = vsub.f32 %v555, %v556
    %v558 = vand.u32 %v557, 4294901760
    %559 = vmatpush2.msra.mxu0 %v558
    %v560 = vand.u32 %v68, 4294901760
    %v561 = vsub.f32 %v68, %v560
    %v562 = vand.u32 %v561, 4294901760
    %v563 = vsub.f32 %v561, %v562
    %v564 = vand.u32 %v563, 4294901760
    %565 = vmatprep.subr.mxu0 %v564
    %v566 = vand.u32 %v67, 4294901760
    %v567 = vsub.f32 %v67, %v566
    %v568 = vand.u32 %v567, 4294901760
    %v569 = vsub.f32 %v567, %v568
    %v570 = vand.u32 %v569, 4294901760
    %571 = vmatpush2.msra.mxu0 %v570
    %v572 = vand.u32 %v66, 4294901760
    %v573 = vsub.f32 %v66, %v572
    %v574 = vand.u32 %v573, 4294901760
    %v575 = vsub.f32 %v573, %v574
    %v576 = vand.u32 %v575, 4294901760
    %577 = vmatprep.subr.mxu0 %v576
    %v578 = vand.u32 %v65, 4294901760
    %v579 = vsub.f32 %v65, %v578
    %v580 = vand.u32 %v579, 4294901760
    %v581 = vsub.f32 %v579, %v580
    %v582 = vand.u32 %v581, 4294901760
    %583 = vmatpush2.msra.mxu0 %v582
    %v584 = vand.u32 %v64, 4294901760
    %v585 = vsub.f32 %v64, %v584
    %v586 = vand.u32 %v585, 4294901760
    %v587 = vsub.f32 %v585, %v586
    %v588 = vand.u32 %v587, 4294901760
    %589 = vmatprep.subr.mxu0 %v588
    %v590 = vand.u32 %v63, 4294901760
    %v591 = vsub.f32 %v63, %v590
    %v592 = vand.u32 %v591, 4294901760
    %v593 = vsub.f32 %v591, %v592
    %v594 = vand.u32 %v593, 4294901760
    %595 = vmatpush2.msra.mxu0 %v594
    %v596 = vand.u32 %v62, 4294901760
    %v597 = vsub.f32 %v62, %v596
    %v598 = vand.u32 %v597, 4294901760
    %v599 = vsub.f32 %v597, %v598
    %v600 = vand.u32 %v599, 4294901760
    %601 = vmatprep.subr.mxu0 %v600
    %v602 = vand.u32 %v61, 4294901760
    %v603 = vsub.f32 %v61, %v602
    %v604 = vand.u32 %v603, 4294901760
    %v605 = vsub.f32 %v603, %v604
    %v606 = vand.u32 %v605, 4294901760
    %607 = vmatpush2.msra.mxu0 %v606
    %v608 = vand.u32 %v60, 4294901760
    %v609 = vsub.f32 %v60, %v608
    %v610 = vand.u32 %v609, 4294901760
    %v611 = vsub.f32 %v609, %v610
    %v612 = vand.u32 %v611, 4294901760
    %613 = vmatprep.subr.mxu0 %v612
    %v614 = vand.u32 %v59, 4294901760
    %v615 = vsub.f32 %v59, %v614
    %v616 = vand.u32 %v615, 4294901760
    %v617 = vsub.f32 %v615, %v616
    %v618 = vand.u32 %v617, 4294901760
    %619 = vmatpush2.msra.mxu0 %v618
    %v620 = vand.u32 %v26, 4294901760
    %621 = vmatprep.mubr.f32.mxu0 %v620
    %v622 = vand.u32 %v25, 4294901760
    %623 = vmatmul.mubr.f32.gmra.mxu0 %v622
    %v624 = vpop.f32.mrf.mxu0
    %v625 = vadd.f32 %v232, %v624
    %v626 = vpop.f32.mrf.mxu0
    %v627 = vadd.f32 %v234, %v626
    %628 = vdwg.mxu0
    %v629 = vand.u32 %v58, 4294901760
    %v630 = vsub.f32 %v58, %v629
    %631 = vmatprep.subr.mxu0 %v630
    %v632 = vand.u32 %v57, 4294901760
    %v633 = vsub.f32 %v57, %v632
    %634 = vmatpush1.msra.mxu0 %v633
    %v635 = vand.u32 %v56, 4294901760
    %v636 = vsub.f32 %v56, %v635
    %637 = vmatprep.subr.mxu0 %v636
    %v638 = vand.u32 %v55, 4294901760
    %v639 = vsub.f32 %v55, %v638
    %640 = vmatpush1.msra.mxu0 %v639
    %v641 = vand.u32 %v54, 4294901760
    %v642 = vsub.f32 %v54, %v641
    %643 = vmatprep.subr.mxu0 %v642
    %v644 = vand.u32 %v53, 4294901760
    %v645 = vsub.f32 %v53, %v644
    %646 = vmatpush1.msra.mxu0 %v645
    %v647 = vand.u32 %v52, 4294901760
    %v648 = vsub.f32 %v52, %v647
    %649 = vmatprep.subr.mxu0 %v648
    %v650 = vand.u32 %v51, 4294901760
    %v651 = vsub.f32 %v51, %v650
    %652 = vmatpush1.msra.mxu0 %v651
    %v653 = vand.u32 %v50, 4294901760
    %v654 = vsub.f32 %v50, %v653
    %655 = vmatprep.subr.mxu0 %v654
    %v656 = vand.u32 %v49, 4294901760
    %v657 = vsub.f32 %v49, %v656
    %658 = vmatpush1.msra.mxu0 %v657
    %v659 = vand.u32 %v48, 4294901760
    %v660 = vsub.f32 %v48, %v659
    %661 = vmatprep.subr.mxu0 %v660
    %v662 = vand.u32 %v47, 4294901760
    %v663 = vsub.f32 %v47, %v662
    %664 = vmatpush1.msra.mxu0 %v663
    %v665 = vand.u32 %v46, 4294901760
    %v666 = vsub.f32 %v46, %v665
    %667 = vmatprep.subr.mxu0 %v666
    %v668 = vand.u32 %v45, 4294901760
    %v669 = vsub.f32 %v45, %v668
    %670 = vmatpush1.msra.mxu0 %v669
    %v671 = vand.u32 %v44, 4294901760
    %v672 = vsub.f32 %v44, %v671
    %673 = vmatprep.subr.mxu0 %v672
    %v674 = vand.u32 %v43, 4294901760
    %v675 = vsub.f32 %v43, %v674
    %676 = vmatpush1.msra.mxu0 %v675
    %v677 = vand.u32 %v42, 4294901760
    %v678 = vsub.f32 %v42, %v677
    %679 = vmatprep.subr.mxu0 %v678
    %v680 = vand.u32 %v41, 4294901760
    %v681 = vsub.f32 %v41, %v680
    %682 = vmatpush1.msra.mxu0 %v681
    %v683 = vand.u32 %v40, 4294901760
    %v684 = vsub.f32 %v40, %v683
    %685 = vmatprep.subr.mxu0 %v684
    %v686 = vand.u32 %v39, 4294901760
    %v687 = vsub.f32 %v39, %v686
    %688 = vmatpush1.msra.mxu0 %v687
    %v689 = vand.u32 %v38, 4294901760
    %v690 = vsub.f32 %v38, %v689
    %691 = vmatprep.subr.mxu0 %v690
    %v692 = vand.u32 %v37, 4294901760
    %v693 = vsub.f32 %v37, %v692
    %694 = vmatpush1.msra.mxu0 %v693
    %v695 = vand.u32 %v36, 4294901760
    %v696 = vsub.f32 %v36, %v695
    %697 = vmatprep.subr.mxu0 %v696
    %v698 = vand.u32 %v35, 4294901760
    %v699 = vsub.f32 %v35, %v698
    %700 = vmatpush1.msra.mxu0 %v699
    %v701 = vand.u32 %v34, 4294901760
    %v702 = vsub.f32 %v34, %v701
    %703 = vmatprep.subr.mxu0 %v702
    %v704 = vand.u32 %v33, 4294901760
    %v705 = vsub.f32 %v33, %v704
    %706 = vmatpush1.msra.mxu0 %v705
    %v707 = vand.u32 %v32, 4294901760
    %v708 = vsub.f32 %v32, %v707
    %709 = vmatprep.subr.mxu0 %v708
    %v710 = vand.u32 %v31, 4294901760
    %v711 = vsub.f32 %v31, %v710
    %712 = vmatpush1.msra.mxu0 %v711
    %v713 = vand.u32 %v30, 4294901760
    %v714 = vsub.f32 %v30, %v713
    %715 = vmatprep.subr.mxu0 %v714
    %v716 = vand.u32 %v29, 4294901760
    %v717 = vsub.f32 %v29, %v716
    %718 = vmatpush1.msra.mxu0 %v717
    %v719 = vand.u32 %v28, 4294901760
    %v720 = vsub.f32 %v28, %v719
    %721 = vmatprep.subr.mxu0 %v720
    %v722 = vand.u32 %v27, 4294901760
    %v723 = vsub.f32 %v27, %v722
    %724 = vmatpush1.msra.mxu0 %v723
    %v725 = vand.u32 %v90, 4294901760
    %v726 = vsub.f32 %v90, %v725
    %727 = vmatprep.subr.mxu0 %v726
    %v728 = vand.u32 %v89, 4294901760
    %v729 = vsub.f32 %v89, %v728
    %730 = vmatpush2.msra.mxu0 %v729
    %v731 = vand.u32 %v88, 4294901760
    %v732 = vsub.f32 %v88, %v731
    %733 = vmatprep.subr.mxu0 %v732
    %v734 = vand.u32 %v87, 4294901760
    %v735 = vsub.f32 %v87, %v734
    %736 = vmatpush2.msra.mxu0 %v735
    %v737 = vand.u32 %v86, 4294901760
    %v738 = vsub.f32 %v86, %v737
    %739 = vmatprep.subr.mxu0 %v738
    %v740 = vand.u32 %v85, 4294901760
    %v741 = vsub.f32 %v85, %v740
    %742 = vmatpush2.msra.mxu0 %v741
    %v743 = vand.u32 %v84, 4294901760
    %v744 = vsub.f32 %v84, %v743
    %745 = vmatprep.subr.mxu0 %v744
    %v746 = vand.u32 %v83, 4294901760
    %v747 = vsub.f32 %v83, %v746
    %748 = vmatpush2.msra.mxu0 %v747
    %v749 = vand.u32 %v82, 4294901760
    %v750 = vsub.f32 %v82, %v749
    %751 = vmatprep.subr.mxu0 %v750
    %v752 = vand.u32 %v81, 4294901760
    %v753 = vsub.f32 %v81, %v752
    %754 = vmatpush2.msra.mxu0 %v753
    %v755 = vand.u32 %v80, 4294901760
    %v756 = vsub.f32 %v80, %v755
    %757 = vmatprep.subr.mxu0 %v756
    %v758 = vand.u32 %v79, 4294901760
    %v759 = vsub.f32 %v79, %v758
    %760 = vmatpush2.msra.mxu0 %v759
    %v761 = vand.u32 %v78, 4294901760
    %v762 = vsub.f32 %v78, %v761
    %763 = vmatprep.subr.mxu0 %v762
    %v764 = vand.u32 %v77, 4294901760
    %v765 = vsub.f32 %v77, %v764
    %766 = vmatpush2.msra.mxu0 %v765
    %v767 = vand.u32 %v76, 4294901760
    %v768 = vsub.f32 %v76, %v767
    %769 = vmatprep.subr.mxu0 %v768
    %v770 = vand.u32 %v75, 4294901760
    %v771 = vsub.f32 %v75, %v770
    %772 = vmatpush2.msra.mxu0 %v771
    %v773 = vand.u32 %v74, 4294901760
    %v774 = vsub.f32 %v74, %v773
    %775 = vmatprep.subr.mxu0 %v774
    %v776 = vand.u32 %v73, 4294901760
    %v777 = vsub.f32 %v73, %v776
    %778 = vmatpush2.msra.mxu0 %v777
    %v779 = vand.u32 %v72, 4294901760
    %v780 = vsub.f32 %v72, %v779
    %781 = vmatprep.subr.mxu0 %v780
    %v782 = vand.u32 %v71, 4294901760
    %v783 = vsub.f32 %v71, %v782
    %784 = vmatpush2.msra.mxu0 %v783
    %v785 = vand.u32 %v70, 4294901760
    %v786 = vsub.f32 %v70, %v785
    %787 = vmatprep.subr.mxu0 %v786
    %v788 = vand.u32 %v69, 4294901760
    %v789 = vsub.f32 %v69, %v788
    %790 = vmatpush2.msra.mxu0 %v789
    %v791 = vand.u32 %v68, 4294901760
    %v792 = vsub.f32 %v68, %v791
    %793 = vmatprep.subr.mxu0 %v792
    %v794 = vand.u32 %v67, 4294901760
    %v795 = vsub.f32 %v67, %v794
    %796 = vmatpush2.msra.mxu0 %v795
    %v797 = vand.u32 %v66, 4294901760
    %v798 = vsub.f32 %v66, %v797
    %799 = vmatprep.subr.mxu0 %v798
    %v800 = vand.u32 %v65, 4294901760
    %v801 = vsub.f32 %v65, %v800
    %802 = vmatpush2.msra.mxu0 %v801
    %v803 = vand.u32 %v64, 4294901760
    %v804 = vsub.f32 %v64, %v803
    %805 = vmatprep.subr.mxu0 %v804
    %v806 = vand.u32 %v63, 4294901760
    %v807 = vsub.f32 %v63, %v806
    %808 = vmatpush2.msra.mxu0 %v807
    %v809 = vand.u32 %v62, 4294901760
    %v810 = vsub.f32 %v62, %v809
    %811 = vmatprep.subr.mxu0 %v810
    %v812 = vand.u32 %v61, 4294901760
    %v813 = vsub.f32 %v61, %v812
    %814 = vmatpush2.msra.mxu0 %v813
    %v815 = vand.u32 %v60, 4294901760
    %v816 = vsub.f32 %v60, %v815
    %817 = vmatprep.subr.mxu0 %v816
    %v818 = vand.u32 %v59, 4294901760
    %v819 = vsub.f32 %v59, %v818
    %820 = vmatpush2.msra.mxu0 %v819
    %v821 = vand.u32 %v26, 4294901760
    %v822 = vsub.f32 %v26, %v821
    %823 = vmatprep.mubr.f32.mxu0 %v822
    %v824 = vand.u32 %v25, 4294901760
    %v825 = vsub.f32 %v25, %v824
    %826 = vmatmul.mubr.f32.gmra.mxu0 %v825
    %v827 = vpop.f32.mrf.mxu0
    %v828 = vadd.f32 %v625, %v827
    %v829 = vpop.f32.mrf.mxu0
    %v830 = vadd.f32 %v627, %v829
    %831 = vdwg.mxu0
    %v832 = vand.u32 %v58, 4294901760
    %833 = vmatprep.subr.mxu0 %v832
    %v834 = vand.u32 %v57, 4294901760
    %835 = vmatpush1.msra.mxu0 %v834
    %v836 = vand.u32 %v56, 4294901760
    %837 = vmatprep.subr.mxu0 %v836
    %v838 = vand.u32 %v55, 4294901760
    %839 = vmatpush1.msra.mxu0 %v838
    %v840 = vand.u32 %v54, 4294901760
    %841 = vmatprep.subr.mxu0 %v840
    %v842 = vand.u32 %v53, 4294901760
    %843 = vmatpush1.msra.mxu0 %v842
    %v844 = vand.u32 %v52, 4294901760
    %845 = vmatprep.subr.mxu0 %v844
    %v846 = vand.u32 %v51, 4294901760
    %847 = vmatpush1.msra.mxu0 %v846
    %v848 = vand.u32 %v50, 4294901760
    %849 = vmatprep.subr.mxu0 %v848
    %v850 = vand.u32 %v49, 4294901760
    %851 = vmatpush1.msra.mxu0 %v850
    %v852 = vand.u32 %v48, 4294901760
    %853 = vmatprep.subr.mxu0 %v852
    %v854 = vand.u32 %v47, 4294901760
    %855 = vmatpush1.msra.mxu0 %v854
    %v856 = vand.u32 %v46, 4294901760
    %857 = vmatprep.subr.mxu0 %v856
    %v858 = vand.u32 %v45, 4294901760
    %859 = vmatpush1.msra.mxu0 %v858
    %v860 = vand.u32 %v44, 4294901760
    %861 = vmatprep.subr.mxu0 %v860
    %v862 = vand.u32 %v43, 4294901760
    %863 = vmatpush1.msra.mxu0 %v862
    %v864 = vand.u32 %v42, 4294901760
    %865 = vmatprep.subr.mxu0 %v864
    %v866 = vand.u32 %v41, 4294901760
    %867 = vmatpush1.msra.mxu0 %v866
    %v868 = vand.u32 %v40, 4294901760
    %869 = vmatprep.subr.mxu0 %v868
    %v870 = vand.u32 %v39, 4294901760
    %871 = vmatpush1.msra.mxu0 %v870
    %v872 = vand.u32 %v38, 4294901760
    %873 = vmatprep.subr.mxu0 %v872
    %v874 = vand.u32 %v37, 4294901760
    %875 = vmatpush1.msra.mxu0 %v874
    %v876 = vand.u32 %v36, 4294901760
    %877 = vmatprep.subr.mxu0 %v876
    %v878 = vand.u32 %v35, 4294901760
    %879 = vmatpush1.msra.mxu0 %v878
    %v880 = vand.u32 %v34, 4294901760
    %881 = vmatprep.subr.mxu0 %v880
    %v882 = vand.u32 %v33, 4294901760
    %883 = vmatpush1.msra.mxu0 %v882
    %v884 = vand.u32 %v32, 4294901760
    %885 = vmatprep.subr.mxu0 %v884
    %v886 = vand.u32 %v31, 4294901760
    %887 = vmatpush1.msra.mxu0 %v886
    %v888 = vand.u32 %v30, 4294901760
    %889 = vmatprep.subr.mxu0 %v888
    %v890 = vand.u32 %v29, 4294901760
    %891 = vmatpush1.msra.mxu0 %v890
    %v892 = vand.u32 %v28, 4294901760
    %893 = vmatprep.subr.mxu0 %v892
    %v894 = vand.u32 %v27, 4294901760
    %895 = vmatpush1.msra.mxu0 %v894
    %v896 = vand.u32 %v90, 4294901760
    %897 = vmatprep.subr.mxu0 %v896
    %v898 = vand.u32 %v89, 4294901760
    %899 = vmatpush2.msra.mxu0 %v898
    %v900 = vand.u32 %v88, 4294901760
    %901 = vmatprep.subr.mxu0 %v900
    %v902 = vand.u32 %v87, 4294901760
    %903 = vmatpush2.msra.mxu0 %v902
    %v904 = vand.u32 %v86, 4294901760
    %905 = vmatprep.subr.mxu0 %v904
    %v906 = vand.u32 %v85, 4294901760
    %907 = vmatpush2.msra.mxu0 %v906
    %v908 = vand.u32 %v84, 4294901760
    %909 = vmatprep.subr.mxu0 %v908
    %v910 = vand.u32 %v83, 4294901760
    %911 = vmatpush2.msra.mxu0 %v910
    %v912 = vand.u32 %v82, 4294901760
    %913 = vmatprep.subr.mxu0 %v912
    %v914 = vand.u32 %v81, 4294901760
    %915 = vmatpush2.msra.mxu0 %v914
    %v916 = vand.u32 %v80, 4294901760
    %917 = vmatprep.subr.mxu0 %v916
    %v918 = vand.u32 %v79, 4294901760
    %919 = vmatpush2.msra.mxu0 %v918
    %v920 = vand.u32 %v78, 4294901760
    %921 = vmatprep.subr.mxu0 %v920
    %v922 = vand.u32 %v77, 4294901760
    %923 = vmatpush2.msra.mxu0 %v922
    %v924 = vand.u32 %v76, 4294901760
    %925 = vmatprep.subr.mxu0 %v924
    %v926 = vand.u32 %v75, 4294901760
    %927 = vmatpush2.msra.mxu0 %v926
    %v928 = vand.u32 %v74, 4294901760
    %929 = vmatprep.subr.mxu0 %v928
    %v930 = vand.u32 %v73, 4294901760
    %931 = vmatpush2.msra.mxu0 %v930
    %v932 = vand.u32 %v72, 4294901760
    %933 = vmatprep.subr.mxu0 %v932
    %v934 = vand.u32 %v71, 4294901760
    %935 = vmatpush2.msra.mxu0 %v934
    %v936 = vand.u32 %v70, 4294901760
    %937 = vmatprep.subr.mxu0 %v936
    %v938 = vand.u32 %v69, 4294901760
    %939 = vmatpush2.msra.mxu0 %v938
    %v940 = vand.u32 %v68, 4294901760
    %941 = vmatprep.subr.mxu0 %v940
    %v942 = vand.u32 %v67, 4294901760
    %943 = vmatpush2.msra.mxu0 %v942
    %v944 = vand.u32 %v66, 4294901760
    %945 = vmatprep.subr.mxu0 %v944
    %v946 = vand.u32 %v65, 4294901760
    %947 = vmatpush2.msra.mxu0 %v946
    %v948 = vand.u32 %v64, 4294901760
    %949 = vmatprep.subr.mxu0 %v948
    %v950 = vand.u32 %v63, 4294901760
    %951 = vmatpush2.msra.mxu0 %v950
    %v952 = vand.u32 %v62, 4294901760
    %953 = vmatprep.subr.mxu0 %v952
    %v954 = vand.u32 %v61, 4294901760
    %955 = vmatpush2.msra.mxu0 %v954
    %v956 = vand.u32 %v60, 4294901760
    %957 = vmatprep.subr.mxu0 %v956
    %v958 = vand.u32 %v59, 4294901760
    %959 = vmatpush2.msra.mxu0 %v958
    %v960 = vand.u32 %v26, 4294901760
    %v961 = vsub.f32 %v26, %v960
    %v962 = vand.u32 %v961, 4294901760
    %963 = vmatprep.mubr.f32.mxu0 %v962
    %v964 = vand.u32 %v25, 4294901760
    %v965 = vsub.f32 %v25, %v964
    %v966 = vand.u32 %v965, 4294901760
    %967 = vmatmul.mubr.f32.gmra.mxu0 %v966
    %v968 = vpop.f32.mrf.mxu0
    %v969 = vadd.f32 %v828, %v968
    %v970 = vpop.f32.mrf.mxu0
    %v971 = vadd.f32 %v830, %v970
    %972 = vdwg.mxu0
    %v973 = vand.u32 %v58, 4294901760
    %v974 = vsub.f32 %v58, %v973
    %v975 = vand.u32 %v974, 4294901760
    %976 = vmatprep.subr.mxu0 %v975
    %v977 = vand.u32 %v57, 4294901760
    %v978 = vsub.f32 %v57, %v977
    %v979 = vand.u32 %v978, 4294901760
    %980 = vmatpush1.msra.mxu0 %v979
    %v981 = vand.u32 %v56, 4294901760
    %v982 = vsub.f32 %v56, %v981
    %v983 = vand.u32 %v982, 4294901760
    %984 = vmatprep.subr.mxu0 %v983
    %v985 = vand.u32 %v55, 4294901760
    %v986 = vsub.f32 %v55, %v985
    %v987 = vand.u32 %v986, 4294901760
    %988 = vmatpush1.msra.mxu0 %v987
    %v989 = vand.u32 %v54, 4294901760
    %v990 = vsub.f32 %v54, %v989
    %v991 = vand.u32 %v990, 4294901760
    %992 = vmatprep.subr.mxu0 %v991
    %v993 = vand.u32 %v53, 4294901760
    %v994 = vsub.f32 %v53, %v993
    %v995 = vand.u32 %v994, 4294901760
    %996 = vmatpush1.msra.mxu0 %v995
    %v997 = vand.u32 %v52, 4294901760
    %v998 = vsub.f32 %v52, %v997
    %v999 = vand.u32 %v998, 4294901760
    %1000 = vmatprep.subr.mxu0 %v999
    %v1001 = vand.u32 %v51, 4294901760
    %v1002 = vsub.f32 %v51, %v1001
    %v1003 = vand.u32 %v1002, 4294901760
    %1004 = vmatpush1.msra.mxu0 %v1003
    %v1005 = vand.u32 %v50, 4294901760
    %v1006 = vsub.f32 %v50, %v1005
    %v1007 = vand.u32 %v1006, 4294901760
    %1008 = vmatprep.subr.mxu0 %v1007
    %v1009 = vand.u32 %v49, 4294901760
    %v1010 = vsub.f32 %v49, %v1009
    %v1011 = vand.u32 %v1010, 4294901760
    %1012 = vmatpush1.msra.mxu0 %v1011
    %v1013 = vand.u32 %v48, 4294901760
    %v1014 = vsub.f32 %v48, %v1013
    %v1015 = vand.u32 %v1014, 4294901760
    %1016 = vmatprep.subr.mxu0 %v1015
    %v1017 = vand.u32 %v47, 4294901760
    %v1018 = vsub.f32 %v47, %v1017
    %v1019 = vand.u32 %v1018, 4294901760
    %1020 = vmatpush1.msra.mxu0 %v1019
    %v1021 = vand.u32 %v46, 4294901760
    %v1022 = vsub.f32 %v46, %v1021
    %v1023 = vand.u32 %v1022, 4294901760
    %1024 = vmatprep.subr.mxu0 %v1023
    %v1025 = vand.u32 %v45, 4294901760
    %v1026 = vsub.f32 %v45, %v1025
    %v1027 = vand.u32 %v1026, 4294901760
    %1028 = vmatpush1.msra.mxu0 %v1027
    %v1029 = vand.u32 %v44, 4294901760
    %v1030 = vsub.f32 %v44, %v1029
    %v1031 = vand.u32 %v1030, 4294901760
    %1032 = vmatprep.subr.mxu0 %v1031
    %v1033 = vand.u32 %v43, 4294901760
    %v1034 = vsub.f32 %v43, %v1033
    %v1035 = vand.u32 %v1034, 4294901760
    %1036 = vmatpush1.msra.mxu0 %v1035
    %v1037 = vand.u32 %v42, 4294901760
    %v1038 = vsub.f32 %v42, %v1037
    %v1039 = vand.u32 %v1038, 4294901760
    %1040 = vmatprep.subr.mxu0 %v1039
    %v1041 = vand.u32 %v41, 4294901760
    %v1042 = vsub.f32 %v41, %v1041
    %v1043 = vand.u32 %v1042, 4294901760
    %1044 = vmatpush1.msra.mxu0 %v1043
    %v1045 = vand.u32 %v40, 4294901760
    %v1046 = vsub.f32 %v40, %v1045
    %v1047 = vand.u32 %v1046, 4294901760
    %1048 = vmatprep.subr.mxu0 %v1047
    %v1049 = vand.u32 %v39, 4294901760
    %v1050 = vsub.f32 %v39, %v1049
    %v1051 = vand.u32 %v1050, 4294901760
    %1052 = vmatpush1.msra.mxu0 %v1051
    %v1053 = vand.u32 %v38, 4294901760
    %v1054 = vsub.f32 %v38, %v1053
    %v1055 = vand.u32 %v1054, 4294901760
    %1056 = vmatprep.subr.mxu0 %v1055
    %v1057 = vand.u32 %v37, 4294901760
    %v1058 = vsub.f32 %v37, %v1057
    %v1059 = vand.u32 %v1058, 4294901760
    %1060 = vmatpush1.msra.mxu0 %v1059
    %v1061 = vand.u32 %v36, 4294901760
    %v1062 = vsub.f32 %v36, %v1061
    %v1063 = vand.u32 %v1062, 4294901760
    %1064 = vmatprep.subr.mxu0 %v1063
    %v1065 = vand.u32 %v35, 4294901760
    %v1066 = vsub.f32 %v35, %v1065
    %v1067 = vand.u32 %v1066, 4294901760
    %1068 = vmatpush1.msra.mxu0 %v1067
    %v1069 = vand.u32 %v34, 4294901760
    %v1070 = vsub.f32 %v34, %v1069
    %v1071 = vand.u32 %v1070, 4294901760
    %1072 = vmatprep.subr.mxu0 %v1071
    %v1073 = vand.u32 %v33, 4294901760
    %v1074 = vsub.f32 %v33, %v1073
    %v1075 = vand.u32 %v1074, 4294901760
    %1076 = vmatpush1.msra.mxu0 %v1075
    %v1077 = vand.u32 %v32, 4294901760
    %v1078 = vsub.f32 %v32, %v1077
    %v1079 = vand.u32 %v1078, 4294901760
    %1080 = vmatprep.subr.mxu0 %v1079
    %v1081 = vand.u32 %v31, 4294901760
    %v1082 = vsub.f32 %v31, %v1081
    %v1083 = vand.u32 %v1082, 4294901760
    %1084 = vmatpush1.msra.mxu0 %v1083
    %v1085 = vand.u32 %v30, 4294901760
    %v1086 = vsub.f32 %v30, %v1085
    %v1087 = vand.u32 %v1086, 4294901760
    %1088 = vmatprep.subr.mxu0 %v1087
    %v1089 = vand.u32 %v29, 4294901760
    %v1090 = vsub.f32 %v29, %v1089
    %v1091 = vand.u32 %v1090, 4294901760
    %1092 = vmatpush1.msra.mxu0 %v1091
    %v1093 = vand.u32 %v28, 4294901760
    %v1094 = vsub.f32 %v28, %v1093
    %v1095 = vand.u32 %v1094, 4294901760
    %1096 = vmatprep.subr.mxu0 %v1095
    %v1097 = vand.u32 %v27, 4294901760
    %v1098 = vsub.f32 %v27, %v1097
    %v1099 = vand.u32 %v1098, 4294901760
    %1100 = vmatpush1.msra.mxu0 %v1099
    %v1101 = vand.u32 %v90, 4294901760
    %v1102 = vsub.f32 %v90, %v1101
    %v1103 = vand.u32 %v1102, 4294901760
    %1104 = vmatprep.subr.mxu0 %v1103
    %v1105 = vand.u32 %v89, 4294901760
    %v1106 = vsub.f32 %v89, %v1105
    %v1107 = vand.u32 %v1106, 4294901760
    %1108 = vmatpush2.msra.mxu0 %v1107
    %v1109 = vand.u32 %v88, 4294901760
    %v1110 = vsub.f32 %v88, %v1109
    %v1111 = vand.u32 %v1110, 4294901760
    %1112 = vmatprep.subr.mxu0 %v1111
    %v1113 = vand.u32 %v87, 4294901760
    %v1114 = vsub.f32 %v87, %v1113
    %v1115 = vand.u32 %v1114, 4294901760
    %1116 = vmatpush2.msra.mxu0 %v1115
    %v1117 = vand.u32 %v86, 4294901760
    %v1118 = vsub.f32 %v86, %v1117
    %v1119 = vand.u32 %v1118, 4294901760
    %1120 = vmatprep.subr.mxu0 %v1119
    %v1121 = vand.u32 %v85, 4294901760
    %v1122 = vsub.f32 %v85, %v1121
    %v1123 = vand.u32 %v1122, 4294901760
    %1124 = vmatpush2.msra.mxu0 %v1123
    %v1125 = vand.u32 %v84, 4294901760
    %v1126 = vsub.f32 %v84, %v1125
    %v1127 = vand.u32 %v1126, 4294901760
    %1128 = vmatprep.subr.mxu0 %v1127
    %v1129 = vand.u32 %v83, 4294901760
    %v1130 = vsub.f32 %v83, %v1129
    %v1131 = vand.u32 %v1130, 4294901760
    %1132 = vmatpush2.msra.mxu0 %v1131
    %v1133 = vand.u32 %v82, 4294901760
    %v1134 = vsub.f32 %v82, %v1133
    %v1135 = vand.u32 %v1134, 4294901760
    %1136 = vmatprep.subr.mxu0 %v1135
    %v1137 = vand.u32 %v81, 4294901760
    %v1138 = vsub.f32 %v81, %v1137
    %v1139 = vand.u32 %v1138, 4294901760
    %1140 = vmatpush2.msra.mxu0 %v1139
    %v1141 = vand.u32 %v80, 4294901760
    %v1142 = vsub.f32 %v80, %v1141
    %v1143 = vand.u32 %v1142, 4294901760
    %1144 = vmatprep.subr.mxu0 %v1143
    %v1145 = vand.u32 %v79, 4294901760
    %v1146 = vsub.f32 %v79, %v1145
    %v1147 = vand.u32 %v1146, 4294901760
    %1148 = vmatpush2.msra.mxu0 %v1147
    %v1149 = vand.u32 %v78, 4294901760
    %v1150 = vsub.f32 %v78, %v1149
    %v1151 = vand.u32 %v1150, 4294901760
    %1152 = vmatprep.subr.mxu0 %v1151
    %v1153 = vand.u32 %v77, 4294901760
    %v1154 = vsub.f32 %v77, %v1153
    %v1155 = vand.u32 %v1154, 4294901760
    %1156 = vmatpush2.msra.mxu0 %v1155
    %v1157 = vand.u32 %v76, 4294901760
    %v1158 = vsub.f32 %v76, %v1157
    %v1159 = vand.u32 %v1158, 4294901760
    %1160 = vmatprep.subr.mxu0 %v1159
    %v1161 = vand.u32 %v75, 4294901760
    %v1162 = vsub.f32 %v75, %v1161
    %v1163 = vand.u32 %v1162, 4294901760
    %1164 = vmatpush2.msra.mxu0 %v1163
    %v1165 = vand.u32 %v74, 4294901760
    %v1166 = vsub.f32 %v74, %v1165
    %v1167 = vand.u32 %v1166, 4294901760
    %1168 = vmatprep.subr.mxu0 %v1167
    %v1169 = vand.u32 %v73, 4294901760
    %v1170 = vsub.f32 %v73, %v1169
    %v1171 = vand.u32 %v1170, 4294901760
    %1172 = vmatpush2.msra.mxu0 %v1171
    %v1173 = vand.u32 %v72, 4294901760
    %v1174 = vsub.f32 %v72, %v1173
    %v1175 = vand.u32 %v1174, 4294901760
    %1176 = vmatprep.subr.mxu0 %v1175
    %v1177 = vand.u32 %v71, 4294901760
    %v1178 = vsub.f32 %v71, %v1177
    %v1179 = vand.u32 %v1178, 4294901760
    %1180 = vmatpush2.msra.mxu0 %v1179
    %v1181 = vand.u32 %v70, 4294901760
    %v1182 = vsub.f32 %v70, %v1181
    %v1183 = vand.u32 %v1182, 4294901760
    %1184 = vmatprep.subr.mxu0 %v1183
    %v1185 = vand.u32 %v69, 4294901760
    %v1186 = vsub.f32 %v69, %v1185
    %v1187 = vand.u32 %v1186, 4294901760
    %1188 = vmatpush2.msra.mxu0 %v1187
    %v1189 = vand.u32 %v68, 4294901760
    %v1190 = vsub.f32 %v68, %v1189
    %v1191 = vand.u32 %v1190, 4294901760
    %1192 = vmatprep.subr.mxu0 %v1191
    %v1193 = vand.u32 %v67, 4294901760
    %v1194 = vsub.f32 %v67, %v1193
    %v1195 = vand.u32 %v1194, 4294901760
    %1196 = vmatpush2.msra.mxu0 %v1195
    %v1197 = vand.u32 %v66, 4294901760
    %v1198 = vsub.f32 %v66, %v1197
    %v1199 = vand.u32 %v1198, 4294901760
    %1200 = vmatprep.subr.mxu0 %v1199
    %v1201 = vand.u32 %v65, 4294901760
    %v1202 = vsub.f32 %v65, %v1201
    %v1203 = vand.u32 %v1202, 4294901760
    %1204 = vmatpush2.msra.mxu0 %v1203
    %v1205 = vand.u32 %v64, 4294901760
    %v1206 = vsub.f32 %v64, %v1205
    %v1207 = vand.u32 %v1206, 4294901760
    %1208 = vmatprep.subr.mxu0 %v1207
    %v1209 = vand.u32 %v63, 4294901760
    %v1210 = vsub.f32 %v63, %v1209
    %v1211 = vand.u32 %v1210, 4294901760
    %1212 = vmatpush2.msra.mxu0 %v1211
    %v1213 = vand.u32 %v62, 4294901760
    %v1214 = vsub.f32 %v62, %v1213
    %v1215 = vand.u32 %v1214, 4294901760
    %1216 = vmatprep.subr.mxu0 %v1215
    %v1217 = vand.u32 %v61, 4294901760
    %v1218 = vsub.f32 %v61, %v1217
    %v1219 = vand.u32 %v1218, 4294901760
    %1220 = vmatpush2.msra.mxu0 %v1219
    %v1221 = vand.u32 %v60, 4294901760
    %v1222 = vsub.f32 %v60, %v1221
    %v1223 = vand.u32 %v1222, 4294901760
    %1224 = vmatprep.subr.mxu0 %v1223
    %v1225 = vand.u32 %v59, 4294901760
    %v1226 = vsub.f32 %v59, %v1225
    %v1227 = vand.u32 %v1226, 4294901760
    %1228 = vmatpush2.msra.mxu0 %v1227
    %v1229 = vand.u32 %v26, 4294901760
    %1230 = vmatprep.mubr.f32.mxu0 %v1229
    %v1231 = vand.u32 %v25, 4294901760
    %1232 = vmatmul.mubr.f32.gmra.mxu0 %v1231
    %v1233 = vpop.f32.mrf.mxu0
    %v1234 = vadd.f32 %v969, %v1233
    %v1235 = vpop.f32.mrf.mxu0
    %v1236 = vadd.f32 %v971, %v1235
    %1237 = vdwg.mxu0
    %v1238 = vand.u32 %v58, 4294901760
    %1239 = vmatprep.subr.mxu0 %v1238
    %v1240 = vand.u32 %v57, 4294901760
    %1241 = vmatpush1.msra.mxu0 %v1240
    %v1242 = vand.u32 %v56, 4294901760
    %1243 = vmatprep.subr.mxu0 %v1242
    %v1244 = vand.u32 %v55, 4294901760
    %1245 = vmatpush1.msra.mxu0 %v1244
    %v1246 = vand.u32 %v54, 4294901760
    %1247 = vmatprep.subr.mxu0 %v1246
    %v1248 = vand.u32 %v53, 4294901760
    %1249 = vmatpush1.msra.mxu0 %v1248
    %v1250 = vand.u32 %v52, 4294901760
    %1251 = vmatprep.subr.mxu0 %v1250
    %v1252 = vand.u32 %v51, 4294901760
    %1253 = vmatpush1.msra.mxu0 %v1252
    %v1254 = vand.u32 %v50, 4294901760
    %1255 = vmatprep.subr.mxu0 %v1254
    %v1256 = vand.u32 %v49, 4294901760
    %1257 = vmatpush1.msra.mxu0 %v1256
    %v1258 = vand.u32 %v48, 4294901760
    %1259 = vmatprep.subr.mxu0 %v1258
    %v1260 = vand.u32 %v47, 4294901760
    %1261 = vmatpush1.msra.mxu0 %v1260
    %v1262 = vand.u32 %v46, 4294901760
    %1263 = vmatprep.subr.mxu0 %v1262
    %v1264 = vand.u32 %v45, 4294901760
    %1265 = vmatpush1.msra.mxu0 %v1264
    %v1266 = vand.u32 %v44, 4294901760
    %1267 = vmatprep.subr.mxu0 %v1266
    %v1268 = vand.u32 %v43, 4294901760
    %1269 = vmatpush1.msra.mxu0 %v1268
    %v1270 = vand.u32 %v42, 4294901760
    %1271 = vmatprep.subr.mxu0 %v1270
    %v1272 = vand.u32 %v41, 4294901760
    %1273 = vmatpush1.msra.mxu0 %v1272
    %v1274 = vand.u32 %v40, 4294901760
    %1275 = vmatprep.subr.mxu0 %v1274
    %v1276 = vand.u32 %v39, 4294901760
    %1277 = vmatpush1.msra.mxu0 %v1276
    %v1278 = vand.u32 %v38, 4294901760
    %1279 = vmatprep.subr.mxu0 %v1278
    %v1280 = vand.u32 %v37, 4294901760
    %1281 = vmatpush1.msra.mxu0 %v1280
    %v1282 = vand.u32 %v36, 4294901760
    %1283 = vmatprep.subr.mxu0 %v1282
    %v1284 = vand.u32 %v35, 4294901760
    %1285 = vmatpush1.msra.mxu0 %v1284
    %v1286 = vand.u32 %v34, 4294901760
    %1287 = vmatprep.subr.mxu0 %v1286
    %v1288 = vand.u32 %v33, 4294901760
    %1289 = vmatpush1.msra.mxu0 %v1288
    %v1290 = vand.u32 %v32, 4294901760
    %1291 = vmatprep.subr.mxu0 %v1290
    %v1292 = vand.u32 %v31, 4294901760
    %1293 = vmatpush1.msra.mxu0 %v1292
    %v1294 = vand.u32 %v30, 4294901760
    %1295 = vmatprep.subr.mxu0 %v1294
    %v1296 = vand.u32 %v29, 4294901760
    %1297 = vmatpush1.msra.mxu0 %v1296
    %v1298 = vand.u32 %v28, 4294901760
    %1299 = vmatprep.subr.mxu0 %v1298
    %v1300 = vand.u32 %v27, 4294901760
    %1301 = vmatpush1.msra.mxu0 %v1300
    %v1302 = vand.u32 %v90, 4294901760
    %1303 = vmatprep.subr.mxu0 %v1302
    %v1304 = vand.u32 %v89, 4294901760
    %1305 = vmatpush2.msra.mxu0 %v1304
    %v1306 = vand.u32 %v88, 4294901760
    %1307 = vmatprep.subr.mxu0 %v1306
    %v1308 = vand.u32 %v87, 4294901760
    %1309 = vmatpush2.msra.mxu0 %v1308
    %v1310 = vand.u32 %v86, 4294901760
    %1311 = vmatprep.subr.mxu0 %v1310
    %v1312 = vand.u32 %v85, 4294901760
    %1313 = vmatpush2.msra.mxu0 %v1312
    %v1314 = vand.u32 %v84, 4294901760
    %1315 = vmatprep.subr.mxu0 %v1314
    %v1316 = vand.u32 %v83, 4294901760
    %1317 = vmatpush2.msra.mxu0 %v1316
    %v1318 = vand.u32 %v82, 4294901760
    %1319 = vmatprep.subr.mxu0 %v1318
    %v1320 = vand.u32 %v81, 4294901760
    %1321 = vmatpush2.msra.mxu0 %v1320
    %v1322 = vand.u32 %v80, 4294901760
    %1323 = vmatprep.subr.mxu0 %v1322
    %v1324 = vand.u32 %v79, 4294901760
    %1325 = vmatpush2.msra.mxu0 %v1324
    %v1326 = vand.u32 %v78, 4294901760
    %1327 = vmatprep.subr.mxu0 %v1326
    %v1328 = vand.u32 %v77, 4294901760
    %1329 = vmatpush2.msra.mxu0 %v1328
    %v1330 = vand.u32 %v76, 4294901760
    %1331 = vmatprep.subr.mxu0 %v1330
    %v1332 = vand.u32 %v75, 4294901760
    %1333 = vmatpush2.msra.mxu0 %v1332
    %v1334 = vand.u32 %v74, 4294901760
    %1335 = vmatprep.subr.mxu0 %v1334
    %v1336 = vand.u32 %v73, 4294901760
    %1337 = vmatpush2.msra.mxu0 %v1336
    %v1338 = vand.u32 %v72, 4294901760
    %1339 = vmatprep.subr.mxu0 %v1338
    %v1340 = vand.u32 %v71, 4294901760
    %1341 = vmatpush2.msra.mxu0 %v1340
    %v1342 = vand.u32 %v70, 4294901760
    %1343 = vmatprep.subr.mxu0 %v1342
    %v1344 = vand.u32 %v69, 4294901760
    %1345 = vmatpush2.msra.mxu0 %v1344
    %v1346 = vand.u32 %v68, 4294901760
    %1347 = vmatprep.subr.mxu0 %v1346
    %v1348 = vand.u32 %v67, 4294901760
    %1349 = vmatpush2.msra.mxu0 %v1348
    %v1350 = vand.u32 %v66, 4294901760
    %1351 = vmatprep.subr.mxu0 %v1350
    %v1352 = vand.u32 %v65, 4294901760
    %1353 = vmatpush2.msra.mxu0 %v1352
    %v1354 = vand.u32 %v64, 4294901760
    %1355 = vmatprep.subr.mxu0 %v1354
    %v1356 = vand.u32 %v63, 4294901760
    %1357 = vmatpush2.msra.mxu0 %v1356
    %v1358 = vand.u32 %v62, 4294901760
    %1359 = vmatprep.subr.mxu0 %v1358
    %v1360 = vand.u32 %v61, 4294901760
    %1361 = vmatpush2.msra.mxu0 %v1360
    %v1362 = vand.u32 %v60, 4294901760
    %1363 = vmatprep.subr.mxu0 %v1362
    %v1364 = vand.u32 %v59, 4294901760
    %1365 = vmatpush2.msra.mxu0 %v1364
    %v1366 = vand.u32 %v26, 4294901760
    %1367 = vmatprep.mubr.f32.mxu0 %v1366
    %v1368 = vand.u32 %v25, 4294901760
    %1369 = vmatmul.mubr.f32.gmra.mxu0 %v1368
    %v1370 = vpop.f32.mrf.mxu0
    %v1371 = vadd.f32 %v1234, %v1370
    %v1372 = vpop.f32.mrf.mxu0
    %v1373 = vadd.f32 %v1236, %v1372
    %1374 = vdwg.mxu0
    %v1375 = vsub.f32 %v1371, 0.5
    %v1376 = vsub.f32 %v1373, 0.5
    %v1377 = vmul.f32 %v1375, -100.0
    %v1378 = vmul.f32 %v1376, -100.0
    %v1379 = vmul.f32 %v1377, 1.442695
    %v1380 = vpow.pop %v1379
    %v1381 = vmul.f32 %v1378, 1.442695
    %v1382 = vpow.pop %v1381
    %v1383 = vadd.f32 %v1380, 1.0
    %v1384 = vadd.f32 %v1382, 1.0
    %v1385 = vrcp.pop %v1383
    %v1386 = vmul.f32 1.0, %v1385
    %v1387 = vrcp.pop %v1384
    %v1388 = vmul.f32 1.0, %v1387
    %1389 = vst [vmem:[%s2] sm:$0xff] %v1386
    %1390 = vst [vmem:[%s2 + $0x8] sm:$0xff] %v1388
    %v1391 = vld [vmem:[#allocation2] sm:$0xff]
    %v1392 = vld [vmem:[#allocation2 + $0x8] sm:$0xff]
    %v1393 = vld [vmem:[#allocation2 + $0x10] sm:$0xff]
    %v1394 = vld [vmem:[#allocation2 + $0x18] sm:$0xff]
    %v1395 = vld [vmem:[#allocation2 + $0x20] sm:$0xff]
    %v1396 = vld [vmem:[#allocation2 + $0x28] sm:$0xff]
    %v1397 = vld [vmem:[#allocation2 + $0x30] sm:$0xff]
    %v1398 = vld [vmem:[#allocation2 + $0x38] sm:$0xff]
    %v1399 = vld [vmem:[#allocation2 + $0x40] sm:$0xff]
    %v1400 = vld [vmem:[#allocation2 + $0x48] sm:$0xff]
    %v1401 = vld [vmem:[#allocation2 + $0x50] sm:$0xff]
    %v1402 = vld [vmem:[#allocation2 + $0x58] sm:$0xff]
    %v1403 = vld [vmem:[#allocation2 + $0x60] sm:$0xff]
    %v1404 = vld [vmem:[#allocation2 + $0x68] sm:$0xff]
    %v1405 = vld [vmem:[#allocation2 + $0x70] sm:$0xff]
    %v1406 = vld [vmem:[#allocation2 + $0x78] sm:$0xff]
    %v1407 = vld [vmem:[#allocation2 + $0x80] sm:$0xff]
    %v1408 = vld [vmem:[#allocation2 + $0x88] sm:$0xff]
    %v1409 = vld [vmem:[#allocation2 + $0x90] sm:$0xff]
    %v1410 = vld [vmem:[#allocation2 + $0x98] sm:$0xff]
    %v1411 = vld [vmem:[#allocation2 + $0xa0] sm:$0xff]
    %v1412 = vld [vmem:[#allocation2 + $0xa8] sm:$0xff]
    %v1413 = vld [vmem:[#allocation2 + $0xb0] sm:$0xff]
    %v1414 = vld [vmem:[#allocation2 + $0xb8] sm:$0xff]
    %v1415 = vld [vmem:[#allocation2 + $0xc0] sm:$0xff]
    %v1416 = vld [vmem:[#allocation2 + $0xc8] sm:$0xff]
    %v1417 = vld [vmem:[#allocation2 + $0xd0] sm:$0xff]
    %v1418 = vld [vmem:[#allocation2 + $0xd8] sm:$0xff]
    %v1419 = vld [vmem:[#allocation2 + $0xe0] sm:$0xff]
    %v1420 = vld [vmem:[#allocation2 + $0xe8] sm:$0xff]
    %v1421 = vld [vmem:[#allocation2 + $0xf0] sm:$0xff]
    %v1422 = vld [vmem:[#allocation2 + $0xf8] sm:$0xff]
    %v1423 = vld [vmem:[#allocation2 + $0x100] sm:$0xff]
    %v1424 = vld [vmem:[#allocation2 + $0x108] sm:$0xff]
    %v1425 = vld [vmem:[#allocation2 + $0x110] sm:$0xff]
    %v1426 = vld [vmem:[#allocation2 + $0x118] sm:$0xff]
    %v1427 = vld [vmem:[#allocation2 + $0x120] sm:$0xff]
    %v1428 = vld [vmem:[#allocation2 + $0x128] sm:$0xff]
    %v1429 = vld [vmem:[#allocation2 + $0x130] sm:$0xff]
    %v1430 = vld [vmem:[#allocation2 + $0x138] sm:$0xff]
    %v1431 = vld [vmem:[#allocation2 + $0x140] sm:$0xff]
    %v1432 = vld [vmem:[#allocation2 + $0x148] sm:$0xff]
    %v1433 = vld [vmem:[#allocation2 + $0x150] sm:$0xff]
    %v1434 = vld [vmem:[#allocation2 + $0x158] sm:$0xff]
    %v1435 = vld [vmem:[#allocation2 + $0x160] sm:$0xff]
    %v1436 = vld [vmem:[#allocation2 + $0x168] sm:$0xff]
    %v1437 = vld [vmem:[#allocation2 + $0x170] sm:$0xff]
    %v1438 = vld [vmem:[#allocation2 + $0x178] sm:$0xff]
    %v1439 = vld [vmem:[#allocation2 + $0x180] sm:$0xff]
    %v1440 = vld [vmem:[#allocation2 + $0x188] sm:$0xff]
    %v1441 = vld [vmem:[#allocation2 + $0x190] sm:$0xff]
    %v1442 = vld [vmem:[#allocation2 + $0x198] sm:$0xff]
    %v1443 = vld [vmem:[#allocation2 + $0x1a0] sm:$0xff]
    %v1444 = vld [vmem:[#allocation2 + $0x1a8] sm:$0xff]
    %v1445 = vld [vmem:[#allocation2 + $0x1b0] sm:$0xff]
    %v1446 = vld [vmem:[#allocation2 + $0x1b8] sm:$0xff]
    %v1447 = vld [vmem:[#allocation2 + $0x1c0] sm:$0xff]
    %v1448 = vld [vmem:[#allocation2 + $0x1c8] sm:$0xff]
    %v1449 = vld [vmem:[#allocation2 + $0x1d0] sm:$0xff]
    %v1450 = vld [vmem:[#allocation2 + $0x1d8] sm:$0xff]
    %v1451 = vld [vmem:[#allocation2 + $0x1e0] sm:$0xff]
    %v1452 = vld [vmem:[#allocation2 + $0x1e8] sm:$0xff]
    %v1453 = vld [vmem:[#allocation2 + $0x1f0] sm:$0xff]
    %v1454 = vld [vmem:[#allocation2 + $0x1f8] sm:$0xff]
    %v1455 = vand.u32 %v1422, 4294901760
    %1456 = vmatprep.subr.mxu0 %v1455
    %v1457 = vand.u32 %v1421, 4294901760
    %1458 = vmatpush1.msra.mxu0 %v1457
    %v1459 = vand.u32 %v1420, 4294901760
    %1460 = vmatprep.subr.mxu0 %v1459
    %v1461 = vand.u32 %v1419, 4294901760
    %1462 = vmatpush1.msra.mxu0 %v1461
    %v1463 = vand.u32 %v1418, 4294901760
    %1464 = vmatprep.subr.mxu0 %v1463
    %v1465 = vand.u32 %v1417, 4294901760
    %1466 = vmatpush1.msra.mxu0 %v1465
    %v1467 = vand.u32 %v1416, 4294901760
    %1468 = vmatprep.subr.mxu0 %v1467
    %v1469 = vand.u32 %v1415, 4294901760
    %1470 = vmatpush1.msra.mxu0 %v1469
    %v1471 = vand.u32 %v1414, 4294901760
    %1472 = vmatprep.subr.mxu0 %v1471
    %v1473 = vand.u32 %v1413, 4294901760
    %1474 = vmatpush1.msra.mxu0 %v1473
    %v1475 = vand.u32 %v1412, 4294901760
    %1476 = vmatprep.subr.mxu0 %v1475
    %v1477 = vand.u32 %v1411, 4294901760
    %1478 = vmatpush1.msra.mxu0 %v1477
    %v1479 = vand.u32 %v1410, 4294901760
    %1480 = vmatprep.subr.mxu0 %v1479
    %v1481 = vand.u32 %v1409, 4294901760
    %1482 = vmatpush1.msra.mxu0 %v1481
    %v1483 = vand.u32 %v1408, 4294901760
    %1484 = vmatprep.subr.mxu0 %v1483
    %v1485 = vand.u32 %v1407, 4294901760
    %1486 = vmatpush1.msra.mxu0 %v1485
    %v1487 = vand.u32 %v1406, 4294901760
    %1488 = vmatprep.subr.mxu0 %v1487
    %v1489 = vand.u32 %v1405, 4294901760
    %1490 = vmatpush1.msra.mxu0 %v1489
    %v1491 = vand.u32 %v1404, 4294901760
    %1492 = vmatprep.subr.mxu0 %v1491
    %v1493 = vand.u32 %v1403, 4294901760
    %1494 = vmatpush1.msra.mxu0 %v1493
    %v1495 = vand.u32 %v1402, 4294901760
    %1496 = vmatprep.subr.mxu0 %v1495
    %v1497 = vand.u32 %v1401, 4294901760
    %1498 = vmatpush1.msra.mxu0 %v1497
    %v1499 = vand.u32 %v1400, 4294901760
    %1500 = vmatprep.subr.mxu0 %v1499
    %v1501 = vand.u32 %v1399, 4294901760
    %1502 = vmatpush1.msra.mxu0 %v1501
    %v1503 = vand.u32 %v1398, 4294901760
    %1504 = vmatprep.subr.mxu0 %v1503
    %v1505 = vand.u32 %v1397, 4294901760
    %1506 = vmatpush1.msra.mxu0 %v1505
    %v1507 = vand.u32 %v1396, 4294901760
    %1508 = vmatprep.subr.mxu0 %v1507
    %v1509 = vand.u32 %v1395, 4294901760
    %1510 = vmatpush1.msra.mxu0 %v1509
    %v1511 = vand.u32 %v1394, 4294901760
    %1512 = vmatprep.subr.mxu0 %v1511
    %v1513 = vand.u32 %v1393, 4294901760
    %1514 = vmatpush1.msra.mxu0 %v1513
    %v1515 = vand.u32 %v1392, 4294901760
    %1516 = vmatprep.subr.mxu0 %v1515
    %v1517 = vand.u32 %v1391, 4294901760
    %1518 = vmatpush1.msra.mxu0 %v1517
    %v1519 = vand.u32 %v1454, 4294901760
    %1520 = vmatprep.subr.mxu0 %v1519
    %v1521 = vand.u32 %v1453, 4294901760
    %1522 = vmatpush2.msra.mxu0 %v1521
    %v1523 = vand.u32 %v1452, 4294901760
    %1524 = vmatprep.subr.mxu0 %v1523
    %v1525 = vand.u32 %v1451, 4294901760
    %1526 = vmatpush2.msra.mxu0 %v1525
    %v1527 = vand.u32 %v1450, 4294901760
    %1528 = vmatprep.subr.mxu0 %v1527
    %v1529 = vand.u32 %v1449, 4294901760
    %1530 = vmatpush2.msra.mxu0 %v1529
    %v1531 = vand.u32 %v1448, 4294901760
    %1532 = vmatprep.subr.mxu0 %v1531
    %v1533 = vand.u32 %v1447, 4294901760
    %1534 = vmatpush2.msra.mxu0 %v1533
    %v1535 = vand.u32 %v1446, 4294901760
    %1536 = vmatprep.subr.mxu0 %v1535
    %v1537 = vand.u32 %v1445, 4294901760
    %1538 = vmatpush2.msra.mxu0 %v1537
    %v1539 = vand.u32 %v1444, 4294901760
    %1540 = vmatprep.subr.mxu0 %v1539
    %v1541 = vand.u32 %v1443, 4294901760
    %1542 = vmatpush2.msra.mxu0 %v1541
    %v1543 = vand.u32 %v1442, 4294901760
    %1544 = vmatprep.subr.mxu0 %v1543
    %v1545 = vand.u32 %v1441, 4294901760
    %1546 = vmatpush2.msra.mxu0 %v1545
    %v1547 = vand.u32 %v1440, 4294901760
    %1548 = vmatprep.subr.mxu0 %v1547
    %v1549 = vand.u32 %v1439, 4294901760
    %1550 = vmatpush2.msra.mxu0 %v1549
    %v1551 = vand.u32 %v1438, 4294901760
    %1552 = vmatprep.subr.mxu0 %v1551
    %v1553 = vand.u32 %v1437, 4294901760
    %1554 = vmatpush2.msra.mxu0 %v1553
    %v1555 = vand.u32 %v1436, 4294901760
    %1556 = vmatprep.subr.mxu0 %v1555
    %v1557 = vand.u32 %v1435, 4294901760
    %1558 = vmatpush2.msra.mxu0 %v1557
    %v1559 = vand.u32 %v1434, 4294901760
    %1560 = vmatprep.subr.mxu0 %v1559
    %v1561 = vand.u32 %v1433, 4294901760
    %1562 = vmatpush2.msra.mxu0 %v1561
    %v1563 = vand.u32 %v1432, 4294901760
    %1564 = vmatprep.subr.mxu0 %v1563
    %v1565 = vand.u32 %v1431, 4294901760
    %1566 = vmatpush2.msra.mxu0 %v1565
    %v1567 = vand.u32 %v1430, 4294901760
    %1568 = vmatprep.subr.mxu0 %v1567
    %v1569 = vand.u32 %v1429, 4294901760
    %1570 = vmatpush2.msra.mxu0 %v1569
    %v1571 = vand.u32 %v1428, 4294901760
    %1572 = vmatprep.subr.mxu0 %v1571
    %v1573 = vand.u32 %v1427, 4294901760
    %1574 = vmatpush2.msra.mxu0 %v1573
    %v1575 = vand.u32 %v1426, 4294901760
    %1576 = vmatprep.subr.mxu0 %v1575
    %v1577 = vand.u32 %v1425, 4294901760
    %1578 = vmatpush2.msra.mxu0 %v1577
    %v1579 = vand.u32 %v1424, 4294901760
    %1580 = vmatprep.subr.mxu0 %v1579
    %v1581 = vand.u32 %v1423, 4294901760
    %1582 = vmatpush2.msra.mxu0 %v1581
    %v1583 = vand.u32 %v1388, 4294901760
    %v1584 = vsub.f32 %v1388, %v1583
    %v1585 = vand.u32 %v1584, 4294901760
    %v1586 = vsub.f32 %v1584, %v1585
    %v1587 = vand.u32 %v1586, 4294901760
    %1588 = vmatprep.mubr.f32.mxu0 %v1587
    %v1589 = vand.u32 %v1386, 4294901760
    %v1590 = vsub.f32 %v1386, %v1589
    %v1591 = vand.u32 %v1590, 4294901760
    %v1592 = vsub.f32 %v1590, %v1591
    %v1593 = vand.u32 %v1592, 4294901760
    %1594 = vmatmul.mubr.f32.gmra.mxu0 %v1593
    %v1595 = vpop.f32.mrf.mxu0
    %v1596 = vadd.f32 0.0, %v1595
    %v1597 = vpop.f32.mrf.mxu0
    %v1598 = vadd.f32 0.0, %v1597
    %1599 = vdwg.mxu0
    %v1600 = vand.u32 %v1422, 4294901760
    %v1601 = vsub.f32 %v1422, %v1600
    %v1602 = vand.u32 %v1601, 4294901760
    %v1603 = vsub.f32 %v1601, %v1602
    %v1604 = vand.u32 %v1603, 4294901760
    %1605 = vmatprep.subr.mxu0 %v1604
    %v1606 = vand.u32 %v1421, 4294901760
    %v1607 = vsub.f32 %v1421, %v1606
    %v1608 = vand.u32 %v1607, 4294901760
    %v1609 = vsub.f32 %v1607, %v1608
    %v1610 = vand.u32 %v1609, 4294901760
    %1611 = vmatpush1.msra.mxu0 %v1610
    %v1612 = vand.u32 %v1420, 4294901760
    %v1613 = vsub.f32 %v1420, %v1612
    %v1614 = vand.u32 %v1613, 4294901760
    %v1615 = vsub.f32 %v1613, %v1614
    %v1616 = vand.u32 %v1615, 4294901760
    %1617 = vmatprep.subr.mxu0 %v1616
    %v1618 = vand.u32 %v1419, 4294901760
    %v1619 = vsub.f32 %v1419, %v1618
    %v1620 = vand.u32 %v1619, 4294901760
    %v1621 = vsub.f32 %v1619, %v1620
    %v1622 = vand.u32 %v1621, 4294901760
    %1623 = vmatpush1.msra.mxu0 %v1622
    %v1624 = vand.u32 %v1418, 4294901760
    %v1625 = vsub.f32 %v1418, %v1624
    %v1626 = vand.u32 %v1625, 4294901760
    %v1627 = vsub.f32 %v1625, %v1626
    %v1628 = vand.u32 %v1627, 4294901760
    %1629 = vmatprep.subr.mxu0 %v1628
    %v1630 = vand.u32 %v1417, 4294901760
    %v1631 = vsub.f32 %v1417, %v1630
    %v1632 = vand.u32 %v1631, 4294901760
    %v1633 = vsub.f32 %v1631, %v1632
    %v1634 = vand.u32 %v1633, 4294901760
    %1635 = vmatpush1.msra.mxu0 %v1634
    %v1636 = vand.u32 %v1416, 4294901760
    %v1637 = vsub.f32 %v1416, %v1636
    %v1638 = vand.u32 %v1637, 4294901760
    %v1639 = vsub.f32 %v1637, %v1638
    %v1640 = vand.u32 %v1639, 4294901760
    %1641 = vmatprep.subr.mxu0 %v1640
    %v1642 = vand.u32 %v1415, 4294901760
    %v1643 = vsub.f32 %v1415, %v1642
    %v1644 = vand.u32 %v1643, 4294901760
    %v1645 = vsub.f32 %v1643, %v1644
    %v1646 = vand.u32 %v1645, 4294901760
    %1647 = vmatpush1.msra.mxu0 %v1646
    %v1648 = vand.u32 %v1414, 4294901760
    %v1649 = vsub.f32 %v1414, %v1648
    %v1650 = vand.u32 %v1649, 4294901760
    %v1651 = vsub.f32 %v1649, %v1650
    %v1652 = vand.u32 %v1651, 4294901760
    %1653 = vmatprep.subr.mxu0 %v1652
    %v1654 = vand.u32 %v1413, 4294901760
    %v1655 = vsub.f32 %v1413, %v1654
    %v1656 = vand.u32 %v1655, 4294901760
    %v1657 = vsub.f32 %v1655, %v1656
    %v1658 = vand.u32 %v1657, 4294901760
    %1659 = vmatpush1.msra.mxu0 %v1658
    %v1660 = vand.u32 %v1412, 4294901760
    %v1661 = vsub.f32 %v1412, %v1660
    %v1662 = vand.u32 %v1661, 4294901760
    %v1663 = vsub.f32 %v1661, %v1662
    %v1664 = vand.u32 %v1663, 4294901760
    %1665 = vmatprep.subr.mxu0 %v1664
    %v1666 = vand.u32 %v1411, 4294901760
    %v1667 = vsub.f32 %v1411, %v1666
    %v1668 = vand.u32 %v1667, 4294901760
    %v1669 = vsub.f32 %v1667, %v1668
    %v1670 = vand.u32 %v1669, 4294901760
    %1671 = vmatpush1.msra.mxu0 %v1670
    %v1672 = vand.u32 %v1410, 4294901760
    %v1673 = vsub.f32 %v1410, %v1672
    %v1674 = vand.u32 %v1673, 4294901760
    %v1675 = vsub.f32 %v1673, %v1674
    %v1676 = vand.u32 %v1675, 4294901760
    %1677 = vmatprep.subr.mxu0 %v1676
    %v1678 = vand.u32 %v1409, 4294901760
    %v1679 = vsub.f32 %v1409, %v1678
    %v1680 = vand.u32 %v1679, 4294901760
    %v1681 = vsub.f32 %v1679, %v1680
    %v1682 = vand.u32 %v1681, 4294901760
    %1683 = vmatpush1.msra.mxu0 %v1682
    %v1684 = vand.u32 %v1408, 4294901760
    %v1685 = vsub.f32 %v1408, %v1684
    %v1686 = vand.u32 %v1685, 4294901760
    %v1687 = vsub.f32 %v1685, %v1686
    %v1688 = vand.u32 %v1687, 4294901760
    %1689 = vmatprep.subr.mxu0 %v1688
    %v1690 = vand.u32 %v1407, 4294901760
    %v1691 = vsub.f32 %v1407, %v1690
    %v1692 = vand.u32 %v1691, 4294901760
    %v1693 = vsub.f32 %v1691, %v1692
    %v1694 = vand.u32 %v1693, 4294901760
    %1695 = vmatpush1.msra.mxu0 %v1694
    %v1696 = vand.u32 %v1406, 4294901760
    %v1697 = vsub.f32 %v1406, %v1696
    %v1698 = vand.u32 %v1697, 4294901760
    %v1699 = vsub.f32 %v1697, %v1698
    %v1700 = vand.u32 %v1699, 4294901760
    %1701 = vmatprep.subr.mxu0 %v1700
    %v1702 = vand.u32 %v1405, 4294901760
    %v1703 = vsub.f32 %v1405, %v1702
    %v1704 = vand.u32 %v1703, 4294901760
    %v1705 = vsub.f32 %v1703, %v1704
    %v1706 = vand.u32 %v1705, 4294901760
    %1707 = vmatpush1.msra.mxu0 %v1706
    %v1708 = vand.u32 %v1404, 4294901760
    %v1709 = vsub.f32 %v1404, %v1708
    %v1710 = vand.u32 %v1709, 4294901760
    %v1711 = vsub.f32 %v1709, %v1710
    %v1712 = vand.u32 %v1711, 4294901760
    %1713 = vmatprep.subr.mxu0 %v1712
    %v1714 = vand.u32 %v1403, 4294901760
    %v1715 = vsub.f32 %v1403, %v1714
    %v1716 = vand.u32 %v1715, 4294901760
    %v1717 = vsub.f32 %v1715, %v1716
    %v1718 = vand.u32 %v1717, 4294901760
    %1719 = vmatpush1.msra.mxu0 %v1718
    %v1720 = vand.u32 %v1402, 4294901760
    %v1721 = vsub.f32 %v1402, %v1720
    %v1722 = vand.u32 %v1721, 4294901760
    %v1723 = vsub.f32 %v1721, %v1722
    %v1724 = vand.u32 %v1723, 4294901760
    %1725 = vmatprep.subr.mxu0 %v1724
    %v1726 = vand.u32 %v1401, 4294901760
    %v1727 = vsub.f32 %v1401, %v1726
    %v1728 = vand.u32 %v1727, 4294901760
    %v1729 = vsub.f32 %v1727, %v1728
    %v1730 = vand.u32 %v1729, 4294901760
    %1731 = vmatpush1.msra.mxu0 %v1730
    %v1732 = vand.u32 %v1400, 4294901760
    %v1733 = vsub.f32 %v1400, %v1732
    %v1734 = vand.u32 %v1733, 4294901760
    %v1735 = vsub.f32 %v1733, %v1734
    %v1736 = vand.u32 %v1735, 4294901760
    %1737 = vmatprep.subr.mxu0 %v1736
    %v1738 = vand.u32 %v1399, 4294901760
    %v1739 = vsub.f32 %v1399, %v1738
    %v1740 = vand.u32 %v1739, 4294901760
    %v1741 = vsub.f32 %v1739, %v1740
    %v1742 = vand.u32 %v1741, 4294901760
    %1743 = vmatpush1.msra.mxu0 %v1742
    %v1744 = vand.u32 %v1398, 4294901760
    %v1745 = vsub.f32 %v1398, %v1744
    %v1746 = vand.u32 %v1745, 4294901760
    %v1747 = vsub.f32 %v1745, %v1746
    %v1748 = vand.u32 %v1747, 4294901760
    %1749 = vmatprep.subr.mxu0 %v1748
    %v1750 = vand.u32 %v1397, 4294901760
    %v1751 = vsub.f32 %v1397, %v1750
    %v1752 = vand.u32 %v1751, 4294901760
    %v1753 = vsub.f32 %v1751, %v1752
    %v1754 = vand.u32 %v1753, 4294901760
    %1755 = vmatpush1.msra.mxu0 %v1754
    %v1756 = vand.u32 %v1396, 4294901760
    %v1757 = vsub.f32 %v1396, %v1756
    %v1758 = vand.u32 %v1757, 4294901760
    %v1759 = vsub.f32 %v1757, %v1758
    %v1760 = vand.u32 %v1759, 4294901760
    %1761 = vmatprep.subr.mxu0 %v1760
    %v1762 = vand.u32 %v1395, 4294901760
    %v1763 = vsub.f32 %v1395, %v1762
    %v1764 = vand.u32 %v1763, 4294901760
    %v1765 = vsub.f32 %v1763, %v1764
    %v1766 = vand.u32 %v1765, 4294901760
    %1767 = vmatpush1.msra.mxu0 %v1766
    %v1768 = vand.u32 %v1394, 4294901760
    %v1769 = vsub.f32 %v1394, %v1768
    %v1770 = vand.u32 %v1769, 4294901760
    %v1771 = vsub.f32 %v1769, %v1770
    %v1772 = vand.u32 %v1771, 4294901760
    %1773 = vmatprep.subr.mxu0 %v1772
    %v1774 = vand.u32 %v1393, 4294901760
    %v1775 = vsub.f32 %v1393, %v1774
    %v1776 = vand.u32 %v1775, 4294901760
    %v1777 = vsub.f32 %v1775, %v1776
    %v1778 = vand.u32 %v1777, 4294901760
    %1779 = vmatpush1.msra.mxu0 %v1778
    %v1780 = vand.u32 %v1392, 4294901760
    %v1781 = vsub.f32 %v1392, %v1780
    %v1782 = vand.u32 %v1781, 4294901760
    %v1783 = vsub.f32 %v1781, %v1782
    %v1784 = vand.u32 %v1783, 4294901760
    %1785 = vmatprep.subr.mxu0 %v1784
    %v1786 = vand.u32 %v1391, 4294901760
    %v1787 = vsub.f32 %v1391, %v1786
    %v1788 = vand.u32 %v1787, 4294901760
    %v1789 = vsub.f32 %v1787, %v1788
    %v1790 = vand.u32 %v1789, 4294901760
    %1791 = vmatpush1.msra.mxu0 %v1790
    %v1792 = vand.u32 %v1454, 4294901760
    %v1793 = vsub.f32 %v1454, %v1792
    %v1794 = vand.u32 %v1793, 4294901760
    %v1795 = vsub.f32 %v1793, %v1794
    %v1796 = vand.u32 %v1795, 4294901760
    %1797 = vmatprep.subr.mxu0 %v1796
    %v1798 = vand.u32 %v1453, 4294901760
    %v1799 = vsub.f32 %v1453, %v1798
    %v1800 = vand.u32 %v1799, 4294901760
    %v1801 = vsub.f32 %v1799, %v1800
    %v1802 = vand.u32 %v1801, 4294901760
    %1803 = vmatpush2.msra.mxu0 %v1802
    %v1804 = vand.u32 %v1452, 4294901760
    %v1805 = vsub.f32 %v1452, %v1804
    %v1806 = vand.u32 %v1805, 4294901760
    %v1807 = vsub.f32 %v1805, %v1806
    %v1808 = vand.u32 %v1807, 4294901760
    %1809 = vmatprep.subr.mxu0 %v1808
    %v1810 = vand.u32 %v1451, 4294901760
    %v1811 = vsub.f32 %v1451, %v1810
    %v1812 = vand.u32 %v1811, 4294901760
    %v1813 = vsub.f32 %v1811, %v1812
    %v1814 = vand.u32 %v1813, 4294901760
    %1815 = vmatpush2.msra.mxu0 %v1814
    %v1816 = vand.u32 %v1450, 4294901760
    %v1817 = vsub.f32 %v1450, %v1816
    %v1818 = vand.u32 %v1817, 4294901760
    %v1819 = vsub.f32 %v1817, %v1818
    %v1820 = vand.u32 %v1819, 4294901760
    %1821 = vmatprep.subr.mxu0 %v1820
    %v1822 = vand.u32 %v1449, 4294901760
    %v1823 = vsub.f32 %v1449, %v1822
    %v1824 = vand.u32 %v1823, 4294901760
    %v1825 = vsub.f32 %v1823, %v1824
    %v1826 = vand.u32 %v1825, 4294901760
    %1827 = vmatpush2.msra.mxu0 %v1826
    %v1828 = vand.u32 %v1448, 4294901760
    %v1829 = vsub.f32 %v1448, %v1828
    %v1830 = vand.u32 %v1829, 4294901760
    %v1831 = vsub.f32 %v1829, %v1830
    %v1832 = vand.u32 %v1831, 4294901760
    %1833 = vmatprep.subr.mxu0 %v1832
    %v1834 = vand.u32 %v1447, 4294901760
    %v1835 = vsub.f32 %v1447, %v1834
    %v1836 = vand.u32 %v1835, 4294901760
    %v1837 = vsub.f32 %v1835, %v1836
    %v1838 = vand.u32 %v1837, 4294901760
    %1839 = vmatpush2.msra.mxu0 %v1838
    %v1840 = vand.u32 %v1446, 4294901760
    %v1841 = vsub.f32 %v1446, %v1840
    %v1842 = vand.u32 %v1841, 4294901760
    %v1843 = vsub.f32 %v1841, %v1842
    %v1844 = vand.u32 %v1843, 4294901760
    %1845 = vmatprep.subr.mxu0 %v1844
    %v1846 = vand.u32 %v1445, 4294901760
    %v1847 = vsub.f32 %v1445, %v1846
    %v1848 = vand.u32 %v1847, 4294901760
    %v1849 = vsub.f32 %v1847, %v1848
    %v1850 = vand.u32 %v1849, 4294901760
    %1851 = vmatpush2.msra.mxu0 %v1850
    %v1852 = vand.u32 %v1444, 4294901760
    %v1853 = vsub.f32 %v1444, %v1852
    %v1854 = vand.u32 %v1853, 4294901760
    %v1855 = vsub.f32 %v1853, %v1854
    %v1856 = vand.u32 %v1855, 4294901760
    %1857 = vmatprep.subr.mxu0 %v1856
    %v1858 = vand.u32 %v1443, 4294901760
    %v1859 = vsub.f32 %v1443, %v1858
    %v1860 = vand.u32 %v1859, 4294901760
    %v1861 = vsub.f32 %v1859, %v1860
    %v1862 = vand.u32 %v1861, 4294901760
    %1863 = vmatpush2.msra.mxu0 %v1862
    %v1864 = vand.u32 %v1442, 4294901760
    %v1865 = vsub.f32 %v1442, %v1864
    %v1866 = vand.u32 %v1865, 4294901760
    %v1867 = vsub.f32 %v1865, %v1866
    %v1868 = vand.u32 %v1867, 4294901760
    %1869 = vmatprep.subr.mxu0 %v1868
    %v1870 = vand.u32 %v1441, 4294901760
    %v1871 = vsub.f32 %v1441, %v1870
    %v1872 = vand.u32 %v1871, 4294901760
    %v1873 = vsub.f32 %v1871, %v1872
    %v1874 = vand.u32 %v1873, 4294901760
    %1875 = vmatpush2.msra.mxu0 %v1874
    %v1876 = vand.u32 %v1440, 4294901760
    %v1877 = vsub.f32 %v1440, %v1876
    %v1878 = vand.u32 %v1877, 4294901760
    %v1879 = vsub.f32 %v1877, %v1878
    %v1880 = vand.u32 %v1879, 4294901760
    %1881 = vmatprep.subr.mxu0 %v1880
    %v1882 = vand.u32 %v1439, 4294901760
    %v1883 = vsub.f32 %v1439, %v1882
    %v1884 = vand.u32 %v1883, 4294901760
    %v1885 = vsub.f32 %v1883, %v1884
    %v1886 = vand.u32 %v1885, 4294901760
    %1887 = vmatpush2.msra.mxu0 %v1886
    %v1888 = vand.u32 %v1438, 4294901760
    %v1889 = vsub.f32 %v1438, %v1888
    %v1890 = vand.u32 %v1889, 4294901760
    %v1891 = vsub.f32 %v1889, %v1890
    %v1892 = vand.u32 %v1891, 4294901760
    %1893 = vmatprep.subr.mxu0 %v1892
    %v1894 = vand.u32 %v1437, 4294901760
    %v1895 = vsub.f32 %v1437, %v1894
    %v1896 = vand.u32 %v1895, 4294901760
    %v1897 = vsub.f32 %v1895, %v1896
    %v1898 = vand.u32 %v1897, 4294901760
    %1899 = vmatpush2.msra.mxu0 %v1898
    %v1900 = vand.u32 %v1436, 4294901760
    %v1901 = vsub.f32 %v1436, %v1900
    %v1902 = vand.u32 %v1901, 4294901760
    %v1903 = vsub.f32 %v1901, %v1902
    %v1904 = vand.u32 %v1903, 4294901760
    %1905 = vmatprep.subr.mxu0 %v1904
    %v1906 = vand.u32 %v1435, 4294901760
    %v1907 = vsub.f32 %v1435, %v1906
    %v1908 = vand.u32 %v1907, 4294901760
    %v1909 = vsub.f32 %v1907, %v1908
    %v1910 = vand.u32 %v1909, 4294901760
    %1911 = vmatpush2.msra.mxu0 %v1910
    %v1912 = vand.u32 %v1434, 4294901760
    %v1913 = vsub.f32 %v1434, %v1912
    %v1914 = vand.u32 %v1913, 4294901760
    %v1915 = vsub.f32 %v1913, %v1914
    %v1916 = vand.u32 %v1915, 4294901760
    %1917 = vmatprep.subr.mxu0 %v1916
    %v1918 = vand.u32 %v1433, 4294901760
    %v1919 = vsub.f32 %v1433, %v1918
    %v1920 = vand.u32 %v1919, 4294901760
    %v1921 = vsub.f32 %v1919, %v1920
    %v1922 = vand.u32 %v1921, 4294901760
    %1923 = vmatpush2.msra.mxu0 %v1922
    %v1924 = vand.u32 %v1432, 4294901760
    %v1925 = vsub.f32 %v1432, %v1924
    %v1926 = vand.u32 %v1925, 4294901760
    %v1927 = vsub.f32 %v1925, %v1926
    %v1928 = vand.u32 %v1927, 4294901760
    %1929 = vmatprep.subr.mxu0 %v1928
    %v1930 = vand.u32 %v1431, 4294901760
    %v1931 = vsub.f32 %v1431, %v1930
    %v1932 = vand.u32 %v1931, 4294901760
    %v1933 = vsub.f32 %v1931, %v1932
    %v1934 = vand.u32 %v1933, 4294901760
    %1935 = vmatpush2.msra.mxu0 %v1934
    %v1936 = vand.u32 %v1430, 4294901760
    %v1937 = vsub.f32 %v1430, %v1936
    %v1938 = vand.u32 %v1937, 4294901760
    %v1939 = vsub.f32 %v1937, %v1938
    %v1940 = vand.u32 %v1939, 4294901760
    %1941 = vmatprep.subr.mxu0 %v1940
    %v1942 = vand.u32 %v1429, 4294901760
    %v1943 = vsub.f32 %v1429, %v1942
    %v1944 = vand.u32 %v1943, 4294901760
    %v1945 = vsub.f32 %v1943, %v1944
    %v1946 = vand.u32 %v1945, 4294901760
    %1947 = vmatpush2.msra.mxu0 %v1946
    %v1948 = vand.u32 %v1428, 4294901760
    %v1949 = vsub.f32 %v1428, %v1948
    %v1950 = vand.u32 %v1949, 4294901760
    %v1951 = vsub.f32 %v1949, %v1950
    %v1952 = vand.u32 %v1951, 4294901760
    %1953 = vmatprep.subr.mxu0 %v1952
    %v1954 = vand.u32 %v1427, 4294901760
    %v1955 = vsub.f32 %v1427, %v1954
    %v1956 = vand.u32 %v1955, 4294901760
    %v1957 = vsub.f32 %v1955, %v1956
    %v1958 = vand.u32 %v1957, 4294901760
    %1959 = vmatpush2.msra.mxu0 %v1958
    %v1960 = vand.u32 %v1426, 4294901760
    %v1961 = vsub.f32 %v1426, %v1960
    %v1962 = vand.u32 %v1961, 4294901760
    %v1963 = vsub.f32 %v1961, %v1962
    %v1964 = vand.u32 %v1963, 4294901760
    %1965 = vmatprep.subr.mxu0 %v1964
    %v1966 = vand.u32 %v1425, 4294901760
    %v1967 = vsub.f32 %v1425, %v1966
    %v1968 = vand.u32 %v1967, 4294901760
    %v1969 = vsub.f32 %v1967, %v1968
    %v1970 = vand.u32 %v1969, 4294901760
    %1971 = vmatpush2.msra.mxu0 %v1970
    %v1972 = vand.u32 %v1424, 4294901760
    %v1973 = vsub.f32 %v1424, %v1972
    %v1974 = vand.u32 %v1973, 4294901760
    %v1975 = vsub.f32 %v1973, %v1974
    %v1976 = vand.u32 %v1975, 4294901760
    %1977 = vmatprep.subr.mxu0 %v1976
    %v1978 = vand.u32 %v1423, 4294901760
    %v1979 = vsub.f32 %v1423, %v1978
    %v1980 = vand.u32 %v1979, 4294901760
    %v1981 = vsub.f32 %v1979, %v1980
    %v1982 = vand.u32 %v1981, 4294901760
    %1983 = vmatpush2.msra.mxu0 %v1982
    %v1984 = vand.u32 %v1388, 4294901760
    %1985 = vmatprep.mubr.f32.mxu0 %v1984
    %v1986 = vand.u32 %v1386, 4294901760
    %1987 = vmatmul.mubr.f32.gmra.mxu0 %v1986
    %v1988 = vpop.f32.mrf.mxu0
    %v1989 = vadd.f32 %v1596, %v1988
    %v1990 = vpop.f32.mrf.mxu0
    %v1991 = vadd.f32 %v1598, %v1990
    %1992 = vdwg.mxu0
    %v1993 = vand.u32 %v1422, 4294901760
    %v1994 = vsub.f32 %v1422, %v1993
    %1995 = vmatprep.subr.mxu0 %v1994
    %v1996 = vand.u32 %v1421, 4294901760
    %v1997 = vsub.f32 %v1421, %v1996
    %1998 = vmatpush1.msra.mxu0 %v1997
    %v1999 = vand.u32 %v1420, 4294901760
    %v2000 = vsub.f32 %v1420, %v1999
    %2001 = vmatprep.subr.mxu0 %v2000
    %v2002 = vand.u32 %v1419, 4294901760
    %v2003 = vsub.f32 %v1419, %v2002
    %2004 = vmatpush1.msra.mxu0 %v2003
    %v2005 = vand.u32 %v1418, 4294901760
    %v2006 = vsub.f32 %v1418, %v2005
    %2007 = vmatprep.subr.mxu0 %v2006
    %v2008 = vand.u32 %v1417, 4294901760
    %v2009 = vsub.f32 %v1417, %v2008
    %2010 = vmatpush1.msra.mxu0 %v2009
    %v2011 = vand.u32 %v1416, 4294901760
    %v2012 = vsub.f32 %v1416, %v2011
    %2013 = vmatprep.subr.mxu0 %v2012
    %v2014 = vand.u32 %v1415, 4294901760
    %v2015 = vsub.f32 %v1415, %v2014
    %2016 = vmatpush1.msra.mxu0 %v2015
    %v2017 = vand.u32 %v1414, 4294901760
    %v2018 = vsub.f32 %v1414, %v2017
    %2019 = vmatprep.subr.mxu0 %v2018
    %v2020 = vand.u32 %v1413, 4294901760
    %v2021 = vsub.f32 %v1413, %v2020
    %2022 = vmatpush1.msra.mxu0 %v2021
    %v2023 = vand.u32 %v1412, 4294901760
    %v2024 = vsub.f32 %v1412, %v2023
    %2025 = vmatprep.subr.mxu0 %v2024
    %v2026 = vand.u32 %v1411, 4294901760
    %v2027 = vsub.f32 %v1411, %v2026
    %2028 = vmatpush1.msra.mxu0 %v2027
    %v2029 = vand.u32 %v1410, 4294901760
    %v2030 = vsub.f32 %v1410, %v2029
    %2031 = vmatprep.subr.mxu0 %v2030
    %v2032 = vand.u32 %v1409, 4294901760
    %v2033 = vsub.f32 %v1409, %v2032
    %2034 = vmatpush1.msra.mxu0 %v2033
    %v2035 = vand.u32 %v1408, 4294901760
    %v2036 = vsub.f32 %v1408, %v2035
    %2037 = vmatprep.subr.mxu0 %v2036
    %v2038 = vand.u32 %v1407, 4294901760
    %v2039 = vsub.f32 %v1407, %v2038
    %2040 = vmatpush1.msra.mxu0 %v2039
    %v2041 = vand.u32 %v1406, 4294901760
    %v2042 = vsub.f32 %v1406, %v2041
    %2043 = vmatprep.subr.mxu0 %v2042
    %v2044 = vand.u32 %v1405, 4294901760
    %v2045 = vsub.f32 %v1405, %v2044
    %2046 = vmatpush1.msra.mxu0 %v2045
    %v2047 = vand.u32 %v1404, 4294901760
    %v2048 = vsub.f32 %v1404, %v2047
    %2049 = vmatprep.subr.mxu0 %v2048
    %v2050 = vand.u32 %v1403, 4294901760
    %v2051 = vsub.f32 %v1403, %v2050
    %2052 = vmatpush1.msra.mxu0 %v2051
    %v2053 = vand.u32 %v1402, 4294901760
    %v2054 = vsub.f32 %v1402, %v2053
    %2055 = vmatprep.subr.mxu0 %v2054
    %v2056 = vand.u32 %v1401, 4294901760
    %v2057 = vsub.f32 %v1401, %v2056
    %2058 = vmatpush1.msra.mxu0 %v2057
    %v2059 = vand.u32 %v1400, 4294901760
    %v2060 = vsub.f32 %v1400, %v2059
    %2061 = vmatprep.subr.mxu0 %v2060
    %v2062 = vand.u32 %v1399, 4294901760
    %v2063 = vsub.f32 %v1399, %v2062
    %2064 = vmatpush1.msra.mxu0 %v2063
    %v2065 = vand.u32 %v1398, 4294901760
    %v2066 = vsub.f32 %v1398, %v2065
    %2067 = vmatprep.subr.mxu0 %v2066
    %v2068 = vand.u32 %v1397, 4294901760
    %v2069 = vsub.f32 %v1397, %v2068
    %2070 = vmatpush1.msra.mxu0 %v2069
    %v2071 = vand.u32 %v1396, 4294901760
    %v2072 = vsub.f32 %v1396, %v2071
    %2073 = vmatprep.subr.mxu0 %v2072
    %v2074 = vand.u32 %v1395, 4294901760
    %v2075 = vsub.f32 %v1395, %v2074
    %2076 = vmatpush1.msra.mxu0 %v2075
    %v2077 = vand.u32 %v1394, 4294901760
    %v2078 = vsub.f32 %v1394, %v2077
    %2079 = vmatprep.subr.mxu0 %v2078
    %v2080 = vand.u32 %v1393, 4294901760
    %v2081 = vsub.f32 %v1393, %v2080
    %2082 = vmatpush1.msra.mxu0 %v2081
    %v2083 = vand.u32 %v1392, 4294901760
    %v2084 = vsub.f32 %v1392, %v2083
    %2085 = vmatprep.subr.mxu0 %v2084
    %v2086 = vand.u32 %v1391, 4294901760
    %v2087 = vsub.f32 %v1391, %v2086
    %2088 = vmatpush1.msra.mxu0 %v2087
    %v2089 = vand.u32 %v1454, 4294901760
    %v2090 = vsub.f32 %v1454, %v2089
    %2091 = vmatprep.subr.mxu0 %v2090
    %v2092 = vand.u32 %v1453, 4294901760
    %v2093 = vsub.f32 %v1453, %v2092
    %2094 = vmatpush2.msra.mxu0 %v2093
    %v2095 = vand.u32 %v1452, 4294901760
    %v2096 = vsub.f32 %v1452, %v2095
    %2097 = vmatprep.subr.mxu0 %v2096
    %v2098 = vand.u32 %v1451, 4294901760
    %v2099 = vsub.f32 %v1451, %v2098
    %2100 = vmatpush2.msra.mxu0 %v2099
    %v2101 = vand.u32 %v1450, 4294901760
    %v2102 = vsub.f32 %v1450, %v2101
    %2103 = vmatprep.subr.mxu0 %v2102
    %v2104 = vand.u32 %v1449, 4294901760
    %v2105 = vsub.f32 %v1449, %v2104
    %2106 = vmatpush2.msra.mxu0 %v2105
    %v2107 = vand.u32 %v1448, 4294901760
    %v2108 = vsub.f32 %v1448, %v2107
    %2109 = vmatprep.subr.mxu0 %v2108
    %v2110 = vand.u32 %v1447, 4294901760
    %v2111 = vsub.f32 %v1447, %v2110
    %2112 = vmatpush2.msra.mxu0 %v2111
    %v2113 = vand.u32 %v1446, 4294901760
    %v2114 = vsub.f32 %v1446, %v2113
    %2115 = vmatprep.subr.mxu0 %v2114
    %v2116 = vand.u32 %v1445, 4294901760
    %v2117 = vsub.f32 %v1445, %v2116
    %2118 = vmatpush2.msra.mxu0 %v2117
    %v2119 = vand.u32 %v1444, 4294901760
    %v2120 = vsub.f32 %v1444, %v2119
    %2121 = vmatprep.subr.mxu0 %v2120
    %v2122 = vand.u32 %v1443, 4294901760
    %v2123 = vsub.f32 %v1443, %v2122
    %2124 = vmatpush2.msra.mxu0 %v2123
    %v2125 = vand.u32 %v1442, 4294901760
    %v2126 = vsub.f32 %v1442, %v2125
    %2127 = vmatprep.subr.mxu0 %v2126
    %v2128 = vand.u32 %v1441, 4294901760
    %v2129 = vsub.f32 %v1441, %v2128
    %2130 = vmatpush2.msra.mxu0 %v2129
    %v2131 = vand.u32 %v1440, 4294901760
    %v2132 = vsub.f32 %v1440, %v2131
    %2133 = vmatprep.subr.mxu0 %v2132
    %v2134 = vand.u32 %v1439, 4294901760
    %v2135 = vsub.f32 %v1439, %v2134
    %2136 = vmatpush2.msra.mxu0 %v2135
    %v2137 = vand.u32 %v1438, 4294901760
    %v2138 = vsub.f32 %v1438, %v2137
    %2139 = vmatprep.subr.mxu0 %v2138
    %v2140 = vand.u32 %v1437, 4294901760
    %v2141 = vsub.f32 %v1437, %v2140
    %2142 = vmatpush2.msra.mxu0 %v2141
    %v2143 = vand.u32 %v1436, 4294901760
    %v2144 = vsub.f32 %v1436, %v2143
    %2145 = vmatprep.subr.mxu0 %v2144
    %v2146 = vand.u32 %v1435, 4294901760
    %v2147 = vsub.f32 %v1435, %v2146
    %2148 = vmatpush2.msra.mxu0 %v2147
    %v2149 = vand.u32 %v1434, 4294901760
    %v2150 = vsub.f32 %v1434, %v2149
    %2151 = vmatprep.subr.mxu0 %v2150
    %v2152 = vand.u32 %v1433, 4294901760
    %v2153 = vsub.f32 %v1433, %v2152
    %2154 = vmatpush2.msra.mxu0 %v2153
    %v2155 = vand.u32 %v1432, 4294901760
    %v2156 = vsub.f32 %v1432, %v2155
    %2157 = vmatprep.subr.mxu0 %v2156
    %v2158 = vand.u32 %v1431, 4294901760
    %v2159 = vsub.f32 %v1431, %v2158
    %2160 = vmatpush2.msra.mxu0 %v2159
    %v2161 = vand.u32 %v1430, 4294901760
    %v2162 = vsub.f32 %v1430, %v2161
    %2163 = vmatprep.subr.mxu0 %v2162
    %v2164 = vand.u32 %v1429, 4294901760
    %v2165 = vsub.f32 %v1429, %v2164
    %2166 = vmatpush2.msra.mxu0 %v2165
    %v2167 = vand.u32 %v1428, 4294901760
    %v2168 = vsub.f32 %v1428, %v2167
    %2169 = vmatprep.subr.mxu0 %v2168
    %v2170 = vand.u32 %v1427, 4294901760
    %v2171 = vsub.f32 %v1427, %v2170
    %2172 = vmatpush2.msra.mxu0 %v2171
    %v2173 = vand.u32 %v1426, 4294901760
    %v2174 = vsub.f32 %v1426, %v2173
    %2175 = vmatprep.subr.mxu0 %v2174
    %v2176 = vand.u32 %v1425, 4294901760
    %v2177 = vsub.f32 %v1425, %v2176
    %2178 = vmatpush2.msra.mxu0 %v2177
    %v2179 = vand.u32 %v1424, 4294901760
    %v2180 = vsub.f32 %v1424, %v2179
    %2181 = vmatprep.subr.mxu0 %v2180
    %v2182 = vand.u32 %v1423, 4294901760
    %v2183 = vsub.f32 %v1423, %v2182
    %2184 = vmatpush2.msra.mxu0 %v2183
    %v2185 = vand.u32 %v1388, 4294901760
    %v2186 = vsub.f32 %v1388, %v2185
    %2187 = vmatprep.mubr.f32.mxu0 %v2186
    %v2188 = vand.u32 %v1386, 4294901760
    %v2189 = vsub.f32 %v1386, %v2188
    %2190 = vmatmul.mubr.f32.gmra.mxu0 %v2189
    %v2191 = vpop.f32.mrf.mxu0
    %v2192 = vadd.f32 %v1989, %v2191
    %v2193 = vpop.f32.mrf.mxu0
    %v2194 = vadd.f32 %v1991, %v2193
    %2195 = vdwg.mxu0
    %v2196 = vand.u32 %v1422, 4294901760
    %2197 = vmatprep.subr.mxu0 %v2196
    %v2198 = vand.u32 %v1421, 4294901760
    %2199 = vmatpush1.msra.mxu0 %v2198
    %v2200 = vand.u32 %v1420, 4294901760
    %2201 = vmatprep.subr.mxu0 %v2200
    %v2202 = vand.u32 %v1419, 4294901760
    %2203 = vmatpush1.msra.mxu0 %v2202
    %v2204 = vand.u32 %v1418, 4294901760
    %2205 = vmatprep.subr.mxu0 %v2204
    %v2206 = vand.u32 %v1417, 4294901760
    %2207 = vmatpush1.msra.mxu0 %v2206
    %v2208 = vand.u32 %v1416, 4294901760
    %2209 = vmatprep.subr.mxu0 %v2208
    %v2210 = vand.u32 %v1415, 4294901760
    %2211 = vmatpush1.msra.mxu0 %v2210
    %v2212 = vand.u32 %v1414, 4294901760
    %2213 = vmatprep.subr.mxu0 %v2212
    %v2214 = vand.u32 %v1413, 4294901760
    %2215 = vmatpush1.msra.mxu0 %v2214
    %v2216 = vand.u32 %v1412, 4294901760
    %2217 = vmatprep.subr.mxu0 %v2216
    %v2218 = vand.u32 %v1411, 4294901760
    %2219 = vmatpush1.msra.mxu0 %v2218
    %v2220 = vand.u32 %v1410, 4294901760
    %2221 = vmatprep.subr.mxu0 %v2220
    %v2222 = vand.u32 %v1409, 4294901760
    %2223 = vmatpush1.msra.mxu0 %v2222
    %v2224 = vand.u32 %v1408, 4294901760
    %2225 = vmatprep.subr.mxu0 %v2224
    %v2226 = vand.u32 %v1407, 4294901760
    %2227 = vmatpush1.msra.mxu0 %v2226
    %v2228 = vand.u32 %v1406, 4294901760
    %2229 = vmatprep.subr.mxu0 %v2228
    %v2230 = vand.u32 %v1405, 4294901760
    %2231 = vmatpush1.msra.mxu0 %v2230
    %v2232 = vand.u32 %v1404, 4294901760
    %2233 = vmatprep.subr.mxu0 %v2232
    %v2234 = vand.u32 %v1403, 4294901760
    %2235 = vmatpush1.msra.mxu0 %v2234
    %v2236 = vand.u32 %v1402, 4294901760
    %2237 = vmatprep.subr.mxu0 %v2236
    %v2238 = vand.u32 %v1401, 4294901760
    %2239 = vmatpush1.msra.mxu0 %v2238
    %v2240 = vand.u32 %v1400, 4294901760
    %2241 = vmatprep.subr.mxu0 %v2240
    %v2242 = vand.u32 %v1399, 4294901760
    %2243 = vmatpush1.msra.mxu0 %v2242
    %v2244 = vand.u32 %v1398, 4294901760
    %2245 = vmatprep.subr.mxu0 %v2244
    %v2246 = vand.u32 %v1397, 4294901760
    %2247 = vmatpush1.msra.mxu0 %v2246
    %v2248 = vand.u32 %v1396, 4294901760
    %2249 = vmatprep.subr.mxu0 %v2248
    %v2250 = vand.u32 %v1395, 4294901760
    %2251 = vmatpush1.msra.mxu0 %v2250
    %v2252 = vand.u32 %v1394, 4294901760
    %2253 = vmatprep.subr.mxu0 %v2252
    %v2254 = vand.u32 %v1393, 4294901760
    %2255 = vmatpush1.msra.mxu0 %v2254
    %v2256 = vand.u32 %v1392, 4294901760
    %2257 = vmatprep.subr.mxu0 %v2256
    %v2258 = vand.u32 %v1391, 4294901760
    %2259 = vmatpush1.msra.mxu0 %v2258
    %v2260 = vand.u32 %v1454, 4294901760
    %2261 = vmatprep.subr.mxu0 %v2260
    %v2262 = vand.u32 %v1453, 4294901760
    %2263 = vmatpush2.msra.mxu0 %v2262
    %v2264 = vand.u32 %v1452, 4294901760
    %2265 = vmatprep.subr.mxu0 %v2264
    %v2266 = vand.u32 %v1451, 4294901760
    %2267 = vmatpush2.msra.mxu0 %v2266
    %v2268 = vand.u32 %v1450, 4294901760
    %2269 = vmatprep.subr.mxu0 %v2268
    %v2270 = vand.u32 %v1449, 4294901760
    %2271 = vmatpush2.msra.mxu0 %v2270
    %v2272 = vand.u32 %v1448, 4294901760
    %2273 = vmatprep.subr.mxu0 %v2272
    %v2274 = vand.u32 %v1447, 4294901760
    %2275 = vmatpush2.msra.mxu0 %v2274
    %v2276 = vand.u32 %v1446, 4294901760
    %2277 = vmatprep.subr.mxu0 %v2276
    %v2278 = vand.u32 %v1445, 4294901760
    %2279 = vmatpush2.msra.mxu0 %v2278
    %v2280 = vand.u32 %v1444, 4294901760
    %2281 = vmatprep.subr.mxu0 %v2280
    %v2282 = vand.u32 %v1443, 4294901760
    %2283 = vmatpush2.msra.mxu0 %v2282
    %v2284 = vand.u32 %v1442, 4294901760
    %2285 = vmatprep.subr.mxu0 %v2284
    %v2286 = vand.u32 %v1441, 4294901760
    %2287 = vmatpush2.msra.mxu0 %v2286
    %v2288 = vand.u32 %v1440, 4294901760
    %2289 = vmatprep.subr.mxu0 %v2288
    %v2290 = vand.u32 %v1439, 4294901760
    %2291 = vmatpush2.msra.mxu0 %v2290
    %v2292 = vand.u32 %v1438, 4294901760
    %2293 = vmatprep.subr.mxu0 %v2292
    %v2294 = vand.u32 %v1437, 4294901760
    %2295 = vmatpush2.msra.mxu0 %v2294
    %v2296 = vand.u32 %v1436, 4294901760
    %2297 = vmatprep.subr.mxu0 %v2296
    %v2298 = vand.u32 %v1435, 4294901760
    %2299 = vmatpush2.msra.mxu0 %v2298
    %v2300 = vand.u32 %v1434, 4294901760
    %2301 = vmatprep.subr.mxu0 %v2300
    %v2302 = vand.u32 %v1433, 4294901760
    %2303 = vmatpush2.msra.mxu0 %v2302
    %v2304 = vand.u32 %v1432, 4294901760
    %2305 = vmatprep.subr.mxu0 %v2304
    %v2306 = vand.u32 %v1431, 4294901760
    %2307 = vmatpush2.msra.mxu0 %v2306
    %v2308 = vand.u32 %v1430, 4294901760
    %2309 = vmatprep.subr.mxu0 %v2308
    %v2310 = vand.u32 %v1429, 4294901760
    %2311 = vmatpush2.msra.mxu0 %v2310
    %v2312 = vand.u32 %v1428, 4294901760
    %2313 = vmatprep.subr.mxu0 %v2312
    %v2314 = vand.u32 %v1427, 4294901760
    %2315 = vmatpush2.msra.mxu0 %v2314
    %v2316 = vand.u32 %v1426, 4294901760
    %2317 = vmatprep.subr.mxu0 %v2316
    %v2318 = vand.u32 %v1425, 4294901760
    %2319 = vmatpush2.msra.mxu0 %v2318
    %v2320 = vand.u32 %v1424, 4294901760
    %2321 = vmatprep.subr.mxu0 %v2320
    %v2322 = vand.u32 %v1423, 4294901760
    %2323 = vmatpush2.msra.mxu0 %v2322
    %v2324 = vand.u32 %v1388, 4294901760
    %v2325 = vsub.f32 %v1388, %v2324
    %v2326 = vand.u32 %v2325, 4294901760
    %2327 = vmatprep.mubr.f32.mxu0 %v2326
    %v2328 = vand.u32 %v1386, 4294901760
    %v2329 = vsub.f32 %v1386, %v2328
    %v2330 = vand.u32 %v2329, 4294901760
    %2331 = vmatmul.mubr.f32.gmra.mxu0 %v2330
    %v2332 = vpop.f32.mrf.mxu0
    %v2333 = vadd.f32 %v2192, %v2332
    %v2334 = vpop.f32.mrf.mxu0
    %v2335 = vadd.f32 %v2194, %v2334
    %2336 = vdwg.mxu0
    %v2337 = vand.u32 %v1422, 4294901760
    %v2338 = vsub.f32 %v1422, %v2337
    %v2339 = vand.u32 %v2338, 4294901760
    %2340 = vmatprep.subr.mxu0 %v2339
    %v2341 = vand.u32 %v1421, 4294901760
    %v2342 = vsub.f32 %v1421, %v2341
    %v2343 = vand.u32 %v2342, 4294901760
    %2344 = vmatpush1.msra.mxu0 %v2343
    %v2345 = vand.u32 %v1420, 4294901760
    %v2346 = vsub.f32 %v1420, %v2345
    %v2347 = vand.u32 %v2346, 4294901760
    %2348 = vmatprep.subr.mxu0 %v2347
    %v2349 = vand.u32 %v1419, 4294901760
    %v2350 = vsub.f32 %v1419, %v2349
    %v2351 = vand.u32 %v2350, 4294901760
    %2352 = vmatpush1.msra.mxu0 %v2351
    %v2353 = vand.u32 %v1418, 4294901760
    %v2354 = vsub.f32 %v1418, %v2353
    %v2355 = vand.u32 %v2354, 4294901760
    %2356 = vmatprep.subr.mxu0 %v2355
    %v2357 = vand.u32 %v1417, 4294901760
    %v2358 = vsub.f32 %v1417, %v2357
    %v2359 = vand.u32 %v2358, 4294901760
    %2360 = vmatpush1.msra.mxu0 %v2359
    %v2361 = vand.u32 %v1416, 4294901760
    %v2362 = vsub.f32 %v1416, %v2361
    %v2363 = vand.u32 %v2362, 4294901760
    %2364 = vmatprep.subr.mxu0 %v2363
    %v2365 = vand.u32 %v1415, 4294901760
    %v2366 = vsub.f32 %v1415, %v2365
    %v2367 = vand.u32 %v2366, 4294901760
    %2368 = vmatpush1.msra.mxu0 %v2367
    %v2369 = vand.u32 %v1414, 4294901760
    %v2370 = vsub.f32 %v1414, %v2369
    %v2371 = vand.u32 %v2370, 4294901760
    %2372 = vmatprep.subr.mxu0 %v2371
    %v2373 = vand.u32 %v1413, 4294901760
    %v2374 = vsub.f32 %v1413, %v2373
    %v2375 = vand.u32 %v2374, 4294901760
    %2376 = vmatpush1.msra.mxu0 %v2375
    %v2377 = vand.u32 %v1412, 4294901760
    %v2378 = vsub.f32 %v1412, %v2377
    %v2379 = vand.u32 %v2378, 4294901760
    %2380 = vmatprep.subr.mxu0 %v2379
    %v2381 = vand.u32 %v1411, 4294901760
    %v2382 = vsub.f32 %v1411, %v2381
    %v2383 = vand.u32 %v2382, 4294901760
    %2384 = vmatpush1.msra.mxu0 %v2383
    %v2385 = vand.u32 %v1410, 4294901760
    %v2386 = vsub.f32 %v1410, %v2385
    %v2387 = vand.u32 %v2386, 4294901760
    %2388 = vmatprep.subr.mxu0 %v2387
    %v2389 = vand.u32 %v1409, 4294901760
    %v2390 = vsub.f32 %v1409, %v2389
    %v2391 = vand.u32 %v2390, 4294901760
    %2392 = vmatpush1.msra.mxu0 %v2391
    %v2393 = vand.u32 %v1408, 4294901760
    %v2394 = vsub.f32 %v1408, %v2393
    %v2395 = vand.u32 %v2394, 4294901760
    %2396 = vmatprep.subr.mxu0 %v2395
    %v2397 = vand.u32 %v1407, 4294901760
    %v2398 = vsub.f32 %v1407, %v2397
    %v2399 = vand.u32 %v2398, 4294901760
    %2400 = vmatpush1.msra.mxu0 %v2399
    %v2401 = vand.u32 %v1406, 4294901760
    %v2402 = vsub.f32 %v1406, %v2401
    %v2403 = vand.u32 %v2402, 4294901760
    %2404 = vmatprep.subr.mxu0 %v2403
    %v2405 = vand.u32 %v1405, 4294901760
    %v2406 = vsub.f32 %v1405, %v2405
    %v2407 = vand.u32 %v2406, 4294901760
    %2408 = vmatpush1.msra.mxu0 %v2407
    %v2409 = vand.u32 %v1404, 4294901760
    %v2410 = vsub.f32 %v1404, %v2409
    %v2411 = vand.u32 %v2410, 4294901760
    %2412 = vmatprep.subr.mxu0 %v2411
    %v2413 = vand.u32 %v1403, 4294901760
    %v2414 = vsub.f32 %v1403, %v2413
    %v2415 = vand.u32 %v2414, 4294901760
    %2416 = vmatpush1.msra.mxu0 %v2415
    %v2417 = vand.u32 %v1402, 4294901760
    %v2418 = vsub.f32 %v1402, %v2417
    %v2419 = vand.u32 %v2418, 4294901760
    %2420 = vmatprep.subr.mxu0 %v2419
    %v2421 = vand.u32 %v1401, 4294901760
    %v2422 = vsub.f32 %v1401, %v2421
    %v2423 = vand.u32 %v2422, 4294901760
    %2424 = vmatpush1.msra.mxu0 %v2423
    %v2425 = vand.u32 %v1400, 4294901760
    %v2426 = vsub.f32 %v1400, %v2425
    %v2427 = vand.u32 %v2426, 4294901760
    %2428 = vmatprep.subr.mxu0 %v2427
    %v2429 = vand.u32 %v1399, 4294901760
    %v2430 = vsub.f32 %v1399, %v2429
    %v2431 = vand.u32 %v2430, 4294901760
    %2432 = vmatpush1.msra.mxu0 %v2431
    %v2433 = vand.u32 %v1398, 4294901760
    %v2434 = vsub.f32 %v1398, %v2433
    %v2435 = vand.u32 %v2434, 4294901760
    %2436 = vmatprep.subr.mxu0 %v2435
    %v2437 = vand.u32 %v1397, 4294901760
    %v2438 = vsub.f32 %v1397, %v2437
    %v2439 = vand.u32 %v2438, 4294901760
    %2440 = vmatpush1.msra.mxu0 %v2439
    %v2441 = vand.u32 %v1396, 4294901760
    %v2442 = vsub.f32 %v1396, %v2441
    %v2443 = vand.u32 %v2442, 4294901760
    %2444 = vmatprep.subr.mxu0 %v2443
    %v2445 = vand.u32 %v1395, 4294901760
    %v2446 = vsub.f32 %v1395, %v2445
    %v2447 = vand.u32 %v2446, 4294901760
    %2448 = vmatpush1.msra.mxu0 %v2447
    %v2449 = vand.u32 %v1394, 4294901760
    %v2450 = vsub.f32 %v1394, %v2449
    %v2451 = vand.u32 %v2450, 4294901760
    %2452 = vmatprep.subr.mxu0 %v2451
    %v2453 = vand.u32 %v1393, 4294901760
    %v2454 = vsub.f32 %v1393, %v2453
    %v2455 = vand.u32 %v2454, 4294901760
    %2456 = vmatpush1.msra.mxu0 %v2455
    %v2457 = vand.u32 %v1392, 4294901760
    %v2458 = vsub.f32 %v1392, %v2457
    %v2459 = vand.u32 %v2458, 4294901760
    %2460 = vmatprep.subr.mxu0 %v2459
    %v2461 = vand.u32 %v1391, 4294901760
    %v2462 = vsub.f32 %v1391, %v2461
    %v2463 = vand.u32 %v2462, 4294901760
    %2464 = vmatpush1.msra.mxu0 %v2463
    %v2465 = vand.u32 %v1454, 4294901760
    %v2466 = vsub.f32 %v1454, %v2465
    %v2467 = vand.u32 %v2466, 4294901760
    %2468 = vmatprep.subr.mxu0 %v2467
    %v2469 = vand.u32 %v1453, 4294901760
    %v2470 = vsub.f32 %v1453, %v2469
    %v2471 = vand.u32 %v2470, 4294901760
    %2472 = vmatpush2.msra.mxu0 %v2471
    %v2473 = vand.u32 %v1452, 4294901760
    %v2474 = vsub.f32 %v1452, %v2473
    %v2475 = vand.u32 %v2474, 4294901760
    %2476 = vmatprep.subr.mxu0 %v2475
    %v2477 = vand.u32 %v1451, 4294901760
    %v2478 = vsub.f32 %v1451, %v2477
    %v2479 = vand.u32 %v2478, 4294901760
    %2480 = vmatpush2.msra.mxu0 %v2479
    %v2481 = vand.u32 %v1450, 4294901760
    %v2482 = vsub.f32 %v1450, %v2481
    %v2483 = vand.u32 %v2482, 4294901760
    %2484 = vmatprep.subr.mxu0 %v2483
    %v2485 = vand.u32 %v1449, 4294901760
    %v2486 = vsub.f32 %v1449, %v2485
    %v2487 = vand.u32 %v2486, 4294901760
    %2488 = vmatpush2.msra.mxu0 %v2487
    %v2489 = vand.u32 %v1448, 4294901760
    %v2490 = vsub.f32 %v1448, %v2489
    %v2491 = vand.u32 %v2490, 4294901760
    %2492 = vmatprep.subr.mxu0 %v2491
    %v2493 = vand.u32 %v1447, 4294901760
    %v2494 = vsub.f32 %v1447, %v2493
    %v2495 = vand.u32 %v2494, 4294901760
    %2496 = vmatpush2.msra.mxu0 %v2495
    %v2497 = vand.u32 %v1446, 4294901760
    %v2498 = vsub.f32 %v1446, %v2497
    %v2499 = vand.u32 %v2498, 4294901760
    %2500 = vmatprep.subr.mxu0 %v2499
    %v2501 = vand.u32 %v1445, 4294901760
    %v2502 = vsub.f32 %v1445, %v2501
    %v2503 = vand.u32 %v2502, 4294901760
    %2504 = vmatpush2.msra.mxu0 %v2503
    %v2505 = vand.u32 %v1444, 4294901760
    %v2506 = vsub.f32 %v1444, %v2505
    %v2507 = vand.u32 %v2506, 4294901760
    %2508 = vmatprep.subr.mxu0 %v2507
    %v2509 = vand.u32 %v1443, 4294901760
    %v2510 = vsub.f32 %v1443, %v2509
    %v2511 = vand.u32 %v2510, 4294901760
    %2512 = vmatpush2.msra.mxu0 %v2511
    %v2513 = vand.u32 %v1442, 4294901760
    %v2514 = vsub.f32 %v1442, %v2513
    %v2515 = vand.u32 %v2514, 4294901760
    %2516 = vmatprep.subr.mxu0 %v2515
    %v2517 = vand.u32 %v1441, 4294901760
    %v2518 = vsub.f32 %v1441, %v2517
    %v2519 = vand.u32 %v2518, 4294901760
    %2520 = vmatpush2.msra.mxu0 %v2519
    %v2521 = vand.u32 %v1440, 4294901760
    %v2522 = vsub.f32 %v1440, %v2521
    %v2523 = vand.u32 %v2522, 4294901760
    %2524 = vmatprep.subr.mxu0 %v2523
    %v2525 = vand.u32 %v1439, 4294901760
    %v2526 = vsub.f32 %v1439, %v2525
    %v2527 = vand.u32 %v2526, 4294901760
    %2528 = vmatpush2.msra.mxu0 %v2527
    %v2529 = vand.u32 %v1438, 4294901760
    %v2530 = vsub.f32 %v1438, %v2529
    %v2531 = vand.u32 %v2530, 4294901760
    %2532 = vmatprep.subr.mxu0 %v2531
    %v2533 = vand.u32 %v1437, 4294901760
    %v2534 = vsub.f32 %v1437, %v2533
    %v2535 = vand.u32 %v2534, 4294901760
    %2536 = vmatpush2.msra.mxu0 %v2535
    %v2537 = vand.u32 %v1436, 4294901760
    %v2538 = vsub.f32 %v1436, %v2537
    %v2539 = vand.u32 %v2538, 4294901760
    %2540 = vmatprep.subr.mxu0 %v2539
    %v2541 = vand.u32 %v1435, 4294901760
    %v2542 = vsub.f32 %v1435, %v2541
    %v2543 = vand.u32 %v2542, 4294901760
    %2544 = vmatpush2.msra.mxu0 %v2543
    %v2545 = vand.u32 %v1434, 4294901760
    %v2546 = vsub.f32 %v1434, %v2545
    %v2547 = vand.u32 %v2546, 4294901760
    %2548 = vmatprep.subr.mxu0 %v2547
    %v2549 = vand.u32 %v1433, 4294901760
    %v2550 = vsub.f32 %v1433, %v2549
    %v2551 = vand.u32 %v2550, 4294901760
    %2552 = vmatpush2.msra.mxu0 %v2551
    %v2553 = vand.u32 %v1432, 4294901760
    %v2554 = vsub.f32 %v1432, %v2553
    %v2555 = vand.u32 %v2554, 4294901760
    %2556 = vmatprep.subr.mxu0 %v2555
    %v2557 = vand.u32 %v1431, 4294901760
    %v2558 = vsub.f32 %v1431, %v2557
    %v2559 = vand.u32 %v2558, 4294901760
    %2560 = vmatpush2.msra.mxu0 %v2559
    %v2561 = vand.u32 %v1430, 4294901760
    %v2562 = vsub.f32 %v1430, %v2561
    %v2563 = vand.u32 %v2562, 4294901760
    %2564 = vmatprep.subr.mxu0 %v2563
    %v2565 = vand.u32 %v1429, 4294901760
    %v2566 = vsub.f32 %v1429, %v2565
    %v2567 = vand.u32 %v2566, 4294901760
    %2568 = vmatpush2.msra.mxu0 %v2567
    %v2569 = vand.u32 %v1428, 4294901760
    %v2570 = vsub.f32 %v1428, %v2569
    %v2571 = vand.u32 %v2570, 4294901760
    %2572 = vmatprep.subr.mxu0 %v2571
    %v2573 = vand.u32 %v1427, 4294901760
    %v2574 = vsub.f32 %v1427, %v2573
    %v2575 = vand.u32 %v2574, 4294901760
    %2576 = vmatpush2.msra.mxu0 %v2575
    %v2577 = vand.u32 %v1426, 4294901760
    %v2578 = vsub.f32 %v1426, %v2577
    %v2579 = vand.u32 %v2578, 4294901760
    %2580 = vmatprep.subr.mxu0 %v2579
    %v2581 = vand.u32 %v1425, 4294901760
    %v2582 = vsub.f32 %v1425, %v2581
    %v2583 = vand.u32 %v2582, 4294901760
    %2584 = vmatpush2.msra.mxu0 %v2583
    %v2585 = vand.u32 %v1424, 4294901760
    %v2586 = vsub.f32 %v1424, %v2585
    %v2587 = vand.u32 %v2586, 4294901760
    %2588 = vmatprep.subr.mxu0 %v2587
    %v2589 = vand.u32 %v1423, 4294901760
    %v2590 = vsub.f32 %v1423, %v2589
    %v2591 = vand.u32 %v2590, 4294901760
    %2592 = vmatpush2.msra.mxu0 %v2591
    %v2593 = vand.u32 %v1388, 4294901760
    %2594 = vmatprep.mubr.f32.mxu0 %v2593
    %v2595 = vand.u32 %v1386, 4294901760
    %2596 = vmatmul.mubr.f32.gmra.mxu0 %v2595
    %v2597 = vpop.f32.mrf.mxu0
    %v2598 = vadd.f32 %v2333, %v2597
    %v2599 = vpop.f32.mrf.mxu0
    %v2600 = vadd.f32 %v2335, %v2599
    %2601 = vdwg.mxu0
    %v2602 = vand.u32 %v1422, 4294901760
    %2603 = vmatprep.subr.mxu0 %v2602
    %v2604 = vand.u32 %v1421, 4294901760
    %2605 = vmatpush1.msra.mxu0 %v2604
    %v2606 = vand.u32 %v1420, 4294901760
    %2607 = vmatprep.subr.mxu0 %v2606
    %v2608 = vand.u32 %v1419, 4294901760
    %2609 = vmatpush1.msra.mxu0 %v2608
    %v2610 = vand.u32 %v1418, 4294901760
    %2611 = vmatprep.subr.mxu0 %v2610
    %v2612 = vand.u32 %v1417, 4294901760
    %2613 = vmatpush1.msra.mxu0 %v2612
    %v2614 = vand.u32 %v1416, 4294901760
    %2615 = vmatprep.subr.mxu0 %v2614
    %v2616 = vand.u32 %v1415, 4294901760
    %2617 = vmatpush1.msra.mxu0 %v2616
    %v2618 = vand.u32 %v1414, 4294901760
    %2619 = vmatprep.subr.mxu0 %v2618
    %v2620 = vand.u32 %v1413, 4294901760
    %2621 = vmatpush1.msra.mxu0 %v2620
    %v2622 = vand.u32 %v1412, 4294901760
    %2623 = vmatprep.subr.mxu0 %v2622
    %v2624 = vand.u32 %v1411, 4294901760
    %2625 = vmatpush1.msra.mxu0 %v2624
    %v2626 = vand.u32 %v1410, 4294901760
    %2627 = vmatprep.subr.mxu0 %v2626
    %v2628 = vand.u32 %v1409, 4294901760
    %2629 = vmatpush1.msra.mxu0 %v2628
    %v2630 = vand.u32 %v1408, 4294901760
    %2631 = vmatprep.subr.mxu0 %v2630
    %v2632 = vand.u32 %v1407, 4294901760
    %2633 = vmatpush1.msra.mxu0 %v2632
    %v2634 = vand.u32 %v1406, 4294901760
    %2635 = vmatprep.subr.mxu0 %v2634
    %v2636 = vand.u32 %v1405, 4294901760
    %2637 = vmatpush1.msra.mxu0 %v2636
    %v2638 = vand.u32 %v1404, 4294901760
    %2639 = vmatprep.subr.mxu0 %v2638
    %v2640 = vand.u32 %v1403, 4294901760
    %2641 = vmatpush1.msra.mxu0 %v2640
    %v2642 = vand.u32 %v1402, 4294901760
    %2643 = vmatprep.subr.mxu0 %v2642
    %v2644 = vand.u32 %v1401, 4294901760
    %2645 = vmatpush1.msra.mxu0 %v2644
    %v2646 = vand.u32 %v1400, 4294901760
    %2647 = vmatprep.subr.mxu0 %v2646
    %v2648 = vand.u32 %v1399, 4294901760
    %2649 = vmatpush1.msra.mxu0 %v2648
    %v2650 = vand.u32 %v1398, 4294901760
    %2651 = vmatprep.subr.mxu0 %v2650
    %v2652 = vand.u32 %v1397, 4294901760
    %2653 = vmatpush1.msra.mxu0 %v2652
    %v2654 = vand.u32 %v1396, 4294901760
    %2655 = vmatprep.subr.mxu0 %v2654
    %v2656 = vand.u32 %v1395, 4294901760
    %2657 = vmatpush1.msra.mxu0 %v2656
    %v2658 = vand.u32 %v1394, 4294901760
    %2659 = vmatprep.subr.mxu0 %v2658
    %v2660 = vand.u32 %v1393, 4294901760
    %2661 = vmatpush1.msra.mxu0 %v2660
    %v2662 = vand.u32 %v1392, 4294901760
    %2663 = vmatprep.subr.mxu0 %v2662
    %v2664 = vand.u32 %v1391, 4294901760
    %2665 = vmatpush1.msra.mxu0 %v2664
    %v2666 = vand.u32 %v1454, 4294901760
    %2667 = vmatprep.subr.mxu0 %v2666
    %v2668 = vand.u32 %v1453, 4294901760
    %2669 = vmatpush2.msra.mxu0 %v2668
    %v2670 = vand.u32 %v1452, 4294901760
    %2671 = vmatprep.subr.mxu0 %v2670
    %v2672 = vand.u32 %v1451, 4294901760
    %2673 = vmatpush2.msra.mxu0 %v2672
    %v2674 = vand.u32 %v1450, 4294901760
    %2675 = vmatprep.subr.mxu0 %v2674
    %v2676 = vand.u32 %v1449, 4294901760
    %2677 = vmatpush2.msra.mxu0 %v2676
    %v2678 = vand.u32 %v1448, 4294901760
    %2679 = vmatprep.subr.mxu0 %v2678
    %v2680 = vand.u32 %v1447, 4294901760
    %2681 = vmatpush2.msra.mxu0 %v2680
    %v2682 = vand.u32 %v1446, 4294901760
    %2683 = vmatprep.subr.mxu0 %v2682
    %v2684 = vand.u32 %v1445, 4294901760
    %2685 = vmatpush2.msra.mxu0 %v2684
    %v2686 = vand.u32 %v1444, 4294901760
    %2687 = vmatprep.subr.mxu0 %v2686
    %v2688 = vand.u32 %v1443, 4294901760
    %2689 = vmatpush2.msra.mxu0 %v2688
    %v2690 = vand.u32 %v1442, 4294901760
    %2691 = vmatprep.subr.mxu0 %v2690
    %v2692 = vand.u32 %v1441, 4294901760
    %2693 = vmatpush2.msra.mxu0 %v2692
    %v2694 = vand.u32 %v1440, 4294901760
    %2695 = vmatprep.subr.mxu0 %v2694
    %v2696 = vand.u32 %v1439, 4294901760
    %2697 = vmatpush2.msra.mxu0 %v2696
    %v2698 = vand.u32 %v1438, 4294901760
    %2699 = vmatprep.subr.mxu0 %v2698
    %v2700 = vand.u32 %v1437, 4294901760
    %2701 = vmatpush2.msra.mxu0 %v2700
    %v2702 = vand.u32 %v1436, 4294901760
    %2703 = vmatprep.subr.mxu0 %v2702
    %v2704 = vand.u32 %v1435, 4294901760
    %2705 = vmatpush2.msra.mxu0 %v2704
    %v2706 = vand.u32 %v1434, 4294901760
    %2707 = vmatprep.subr.mxu0 %v2706
    %v2708 = vand.u32 %v1433, 4294901760
    %2709 = vmatpush2.msra.mxu0 %v2708
    %v2710 = vand.u32 %v1432, 4294901760
    %2711 = vmatprep.subr.mxu0 %v2710
    %v2712 = vand.u32 %v1431, 4294901760
    %2713 = vmatpush2.msra.mxu0 %v2712
    %v2714 = vand.u32 %v1430, 4294901760
    %2715 = vmatprep.subr.mxu0 %v2714
    %v2716 = vand.u32 %v1429, 4294901760
    %2717 = vmatpush2.msra.mxu0 %v2716
    %v2718 = vand.u32 %v1428, 4294901760
    %2719 = vmatprep.subr.mxu0 %v2718
    %v2720 = vand.u32 %v1427, 4294901760
    %2721 = vmatpush2.msra.mxu0 %v2720
    %v2722 = vand.u32 %v1426, 4294901760
    %2723 = vmatprep.subr.mxu0 %v2722
    %v2724 = vand.u32 %v1425, 4294901760
    %2725 = vmatpush2.msra.mxu0 %v2724
    %v2726 = vand.u32 %v1424, 4294901760
    %2727 = vmatprep.subr.mxu0 %v2726
    %v2728 = vand.u32 %v1423, 4294901760
    %2729 = vmatpush2.msra.mxu0 %v2728
    %v2730 = vand.u32 %v1388, 4294901760
    %2731 = vmatprep.mubr.f32.mxu0 %v2730
    %v2732 = vand.u32 %v1386, 4294901760
    %2733 = vmatmul.mubr.f32.gmra.mxu0 %v2732
    %v2734 = vpop.f32.mrf.mxu0
    %v2735 = vadd.f32 %v2598, %v2734
    %v2736 = vpop.f32.mrf.mxu0
    %v2737 = vadd.f32 %v2600, %v2736
    %2738 = vdwg.mxu0
    %v2739 = vsub.f32 %v2735, 0.5
    %v2740 = vsub.f32 %v2737, 0.5
    %v2741 = vmul.f32 %v2739, -100.0
    %v2742 = vmul.f32 %v2740, -100.0
    %v2743 = vmul.f32 %v2741, 1.442695
    %v2744 = vpow.pop %v2743
    %v2745 = vmul.f32 %v2742, 1.442695
    %v2746 = vpow.pop %v2745
    %v2747 = vadd.f32 %v2744, 1.0
    %v2748 = vadd.f32 %v2746, 1.0
    %v2749 = vrcp.pop %v2747
    %v2750 = vmul.f32 1.0, %v2749
    %v2751 = vrcp.pop %v2748
    %v2752 = vmul.f32 1.0, %v2751
    %2753 = vst [vmem:[%s2 + $0x10] sm:$0xff] %v2750
    %2754 = vst [vmem:[%s2 + $0x18] sm:$0xff] %v2752
    %v2755 = vld [vmem:[#allocation2] sm:$0xff]
    %v2756 = vld [vmem:[#allocation2 + $0x8] sm:$0xff]
    %v2757 = vld [vmem:[#allocation2 + $0x10] sm:$0xff]
    %v2758 = vld [vmem:[#allocation2 + $0x18] sm:$0xff]
    %v2759 = vld [vmem:[#allocation2 + $0x20] sm:$0xff]
    %v2760 = vld [vmem:[#allocation2 + $0x28] sm:$0xff]
    %v2761 = vld [vmem:[#allocation2 + $0x30] sm:$0xff]
    %v2762 = vld [vmem:[#allocation2 + $0x38] sm:$0xff]
    %v2763 = vld [vmem:[#allocation2 + $0x40] sm:$0xff]
    %v2764 = vld [vmem:[#allocation2 + $0x48] sm:$0xff]
    %v2765 = vld [vmem:[#allocation2 + $0x50] sm:$0xff]
    %v2766 = vld [vmem:[#allocation2 + $0x58] sm:$0xff]
    %v2767 = vld [vmem:[#allocation2 + $0x60] sm:$0xff]
    %v2768 = vld [vmem:[#allocation2 + $0x68] sm:$0xff]
    %v2769 = vld [vmem:[#allocation2 + $0x70] sm:$0xff]
    %v2770 = vld [vmem:[#allocation2 + $0x78] sm:$0xff]
    %v2771 = vld [vmem:[#allocation2 + $0x80] sm:$0xff]
    %v2772 = vld [vmem:[#allocation2 + $0x88] sm:$0xff]
    %v2773 = vld [vmem:[#allocation2 + $0x90] sm:$0xff]
    %v2774 = vld [vmem:[#allocation2 + $0x98] sm:$0xff]
    %v2775 = vld [vmem:[#allocation2 + $0xa0] sm:$0xff]
    %v2776 = vld [vmem:[#allocation2 + $0xa8] sm:$0xff]
    %v2777 = vld [vmem:[#allocation2 + $0xb0] sm:$0xff]
    %v2778 = vld [vmem:[#allocation2 + $0xb8] sm:$0xff]
    %v2779 = vld [vmem:[#allocation2 + $0xc0] sm:$0xff]
    %v2780 = vld [vmem:[#allocation2 + $0xc8] sm:$0xff]
    %v2781 = vld [vmem:[#allocation2 + $0xd0] sm:$0xff]
    %v2782 = vld [vmem:[#allocation2 + $0xd8] sm:$0xff]
    %v2783 = vld [vmem:[#allocation2 + $0xe0] sm:$0xff]
    %v2784 = vld [vmem:[#allocation2 + $0xe8] sm:$0xff]
    %v2785 = vld [vmem:[#allocation2 + $0xf0] sm:$0xff]
    %v2786 = vld [vmem:[#allocation2 + $0xf8] sm:$0xff]
    %v2787 = vld [vmem:[#allocation2 + $0x100] sm:$0xff]
    %v2788 = vld [vmem:[#allocation2 + $0x108] sm:$0xff]
    %v2789 = vld [vmem:[#allocation2 + $0x110] sm:$0xff]
    %v2790 = vld [vmem:[#allocation2 + $0x118] sm:$0xff]
    %v2791 = vld [vmem:[#allocation2 + $0x120] sm:$0xff]
    %v2792 = vld [vmem:[#allocation2 + $0x128] sm:$0xff]
    %v2793 = vld [vmem:[#allocation2 + $0x130] sm:$0xff]
    %v2794 = vld [vmem:[#allocation2 + $0x138] sm:$0xff]
    %v2795 = vld [vmem:[#allocation2 + $0x140] sm:$0xff]
    %v2796 = vld [vmem:[#allocation2 + $0x148] sm:$0xff]
    %v2797 = vld [vmem:[#allocation2 + $0x150] sm:$0xff]
    %v2798 = vld [vmem:[#allocation2 + $0x158] sm:$0xff]
    %v2799 = vld [vmem:[#allocation2 + $0x160] sm:$0xff]
    %v2800 = vld [vmem:[#allocation2 + $0x168] sm:$0xff]
    %v2801 = vld [vmem:[#allocation2 + $0x170] sm:$0xff]
    %v2802 = vld [vmem:[#allocation2 + $0x178] sm:$0xff]
    %v2803 = vld [vmem:[#allocation2 + $0x180] sm:$0xff]
    %v2804 = vld [vmem:[#allocation2 + $0x188] sm:$0xff]
    %v2805 = vld [vmem:[#allocation2 + $0x190] sm:$0xff]
    %v2806 = vld [vmem:[#allocation2 + $0x198] sm:$0xff]
    %v2807 = vld [vmem:[#allocation2 + $0x1a0] sm:$0xff]
    %v2808 = vld [vmem:[#allocation2 + $0x1a8] sm:$0xff]
    %v2809 = vld [vmem:[#allocation2 + $0x1b0] sm:$0xff]
    %v2810 = vld [vmem:[#allocation2 + $0x1b8] sm:$0xff]
    %v2811 = vld [vmem:[#allocation2 + $0x1c0] sm:$0xff]
    %v2812 = vld [vmem:[#allocation2 + $0x1c8] sm:$0xff]
    %v2813 = vld [vmem:[#allocation2 + $0x1d0] sm:$0xff]
    %v2814 = vld [vmem:[#allocation2 + $0x1d8] sm:$0xff]
    %v2815 = vld [vmem:[#allocation2 + $0x1e0] sm:$0xff]
    %v2816 = vld [vmem:[#allocation2 + $0x1e8] sm:$0xff]
    %v2817 = vld [vmem:[#allocation2 + $0x1f0] sm:$0xff]
    %v2818 = vld [vmem:[#allocation2 + $0x1f8] sm:$0xff]
    %v2819 = vand.u32 %v2786, 4294901760
    %2820 = vmatprep.subr.mxu0 %v2819
    %v2821 = vand.u32 %v2785, 4294901760
    %2822 = vmatpush1.msra.mxu0 %v2821
    %v2823 = vand.u32 %v2784, 4294901760
    %2824 = vmatprep.subr.mxu0 %v2823
    %v2825 = vand.u32 %v2783, 4294901760
    %2826 = vmatpush1.msra.mxu0 %v2825
    %v2827 = vand.u32 %v2782, 4294901760
    %2828 = vmatprep.subr.mxu0 %v2827
    %v2829 = vand.u32 %v2781, 4294901760
    %2830 = vmatpush1.msra.mxu0 %v2829
    %v2831 = vand.u32 %v2780, 4294901760
    %2832 = vmatprep.subr.mxu0 %v2831
    %v2833 = vand.u32 %v2779, 4294901760
    %2834 = vmatpush1.msra.mxu0 %v2833
    %v2835 = vand.u32 %v2778, 4294901760
    %2836 = vmatprep.subr.mxu0 %v2835
    %v2837 = vand.u32 %v2777, 4294901760
    %2838 = vmatpush1.msra.mxu0 %v2837
    %v2839 = vand.u32 %v2776, 4294901760
    %2840 = vmatprep.subr.mxu0 %v2839
    %v2841 = vand.u32 %v2775, 4294901760
    %2842 = vmatpush1.msra.mxu0 %v2841
    %v2843 = vand.u32 %v2774, 4294901760
    %2844 = vmatprep.subr.mxu0 %v2843
    %v2845 = vand.u32 %v2773, 4294901760
    %2846 = vmatpush1.msra.mxu0 %v2845
    %v2847 = vand.u32 %v2772, 4294901760
    %2848 = vmatprep.subr.mxu0 %v2847
    %v2849 = vand.u32 %v2771, 4294901760
    %2850 = vmatpush1.msra.mxu0 %v2849
    %v2851 = vand.u32 %v2770, 4294901760
    %2852 = vmatprep.subr.mxu0 %v2851
    %v2853 = vand.u32 %v2769, 4294901760
    %2854 = vmatpush1.msra.mxu0 %v2853
    %v2855 = vand.u32 %v2768, 4294901760
    %2856 = vmatprep.subr.mxu0 %v2855
    %v2857 = vand.u32 %v2767, 4294901760
    %2858 = vmatpush1.msra.mxu0 %v2857
    %v2859 = vand.u32 %v2766, 4294901760
    %2860 = vmatprep.subr.mxu0 %v2859
    %v2861 = vand.u32 %v2765, 4294901760
    %2862 = vmatpush1.msra.mxu0 %v2861
    %v2863 = vand.u32 %v2764, 4294901760
    %2864 = vmatprep.subr.mxu0 %v2863
    %v2865 = vand.u32 %v2763, 4294901760
    %2866 = vmatpush1.msra.mxu0 %v2865
    %v2867 = vand.u32 %v2762, 4294901760
    %2868 = vmatprep.subr.mxu0 %v2867
    %v2869 = vand.u32 %v2761, 4294901760
    %2870 = vmatpush1.msra.mxu0 %v2869
    %v2871 = vand.u32 %v2760, 4294901760
    %2872 = vmatprep.subr.mxu0 %v2871
    %v2873 = vand.u32 %v2759, 4294901760
    %2874 = vmatpush1.msra.mxu0 %v2873
    %v2875 = vand.u32 %v2758, 4294901760
    %2876 = vmatprep.subr.mxu0 %v2875
    %v2877 = vand.u32 %v2757, 4294901760
    %2878 = vmatpush1.msra.mxu0 %v2877
    %v2879 = vand.u32 %v2756, 4294901760
    %2880 = vmatprep.subr.mxu0 %v2879
    %v2881 = vand.u32 %v2755, 4294901760
    %2882 = vmatpush1.msra.mxu0 %v2881
    %v2883 = vand.u32 %v2818, 4294901760
    %2884 = vmatprep.subr.mxu0 %v2883
    %v2885 = vand.u32 %v2817, 4294901760
    %2886 = vmatpush2.msra.mxu0 %v2885
    %v2887 = vand.u32 %v2816, 4294901760
    %2888 = vmatprep.subr.mxu0 %v2887
    %v2889 = vand.u32 %v2815, 4294901760
    %2890 = vmatpush2.msra.mxu0 %v2889
    %v2891 = vand.u32 %v2814, 4294901760
    %2892 = vmatprep.subr.mxu0 %v2891
    %v2893 = vand.u32 %v2813, 4294901760
    %2894 = vmatpush2.msra.mxu0 %v2893
    %v2895 = vand.u32 %v2812, 4294901760
    %2896 = vmatprep.subr.mxu0 %v2895
    %v2897 = vand.u32 %v2811, 4294901760
    %2898 = vmatpush2.msra.mxu0 %v2897
    %v2899 = vand.u32 %v2810, 4294901760
    %2900 = vmatprep.subr.mxu0 %v2899
    %v2901 = vand.u32 %v2809, 4294901760
    %2902 = vmatpush2.msra.mxu0 %v2901
    %v2903 = vand.u32 %v2808, 4294901760
    %2904 = vmatprep.subr.mxu0 %v2903
    %v2905 = vand.u32 %v2807, 4294901760
    %2906 = vmatpush2.msra.mxu0 %v2905
    %v2907 = vand.u32 %v2806, 4294901760
    %2908 = vmatprep.subr.mxu0 %v2907
    %v2909 = vand.u32 %v2805, 4294901760
    %2910 = vmatpush2.msra.mxu0 %v2909
    %v2911 = vand.u32 %v2804, 4294901760
    %2912 = vmatprep.subr.mxu0 %v2911
    %v2913 = vand.u32 %v2803, 4294901760
    %2914 = vmatpush2.msra.mxu0 %v2913
    %v2915 = vand.u32 %v2802, 4294901760
    %2916 = vmatprep.subr.mxu0 %v2915
    %v2917 = vand.u32 %v2801, 4294901760
    %2918 = vmatpush2.msra.mxu0 %v2917
    %v2919 = vand.u32 %v2800, 4294901760
    %2920 = vmatprep.subr.mxu0 %v2919
    %v2921 = vand.u32 %v2799, 4294901760
    %2922 = vmatpush2.msra.mxu0 %v2921
    %v2923 = vand.u32 %v2798, 4294901760
    %2924 = vmatprep.subr.mxu0 %v2923
    %v2925 = vand.u32 %v2797, 4294901760
    %2926 = vmatpush2.msra.mxu0 %v2925
    %v2927 = vand.u32 %v2796, 4294901760
    %2928 = vmatprep.subr.mxu0 %v2927
    %v2929 = vand.u32 %v2795, 4294901760
    %2930 = vmatpush2.msra.mxu0 %v2929
    %v2931 = vand.u32 %v2794, 4294901760
    %2932 = vmatprep.subr.mxu0 %v2931
    %v2933 = vand.u32 %v2793, 4294901760
    %2934 = vmatpush2.msra.mxu0 %v2933
    %v2935 = vand.u32 %v2792, 4294901760
    %2936 = vmatprep.subr.mxu0 %v2935
    %v2937 = vand.u32 %v2791, 4294901760
    %2938 = vmatpush2.msra.mxu0 %v2937
    %v2939 = vand.u32 %v2790, 4294901760
    %2940 = vmatprep.subr.mxu0 %v2939
    %v2941 = vand.u32 %v2789, 4294901760
    %2942 = vmatpush2.msra.mxu0 %v2941
    %v2943 = vand.u32 %v2788, 4294901760
    %2944 = vmatprep.subr.mxu0 %v2943
    %v2945 = vand.u32 %v2787, 4294901760
    %2946 = vmatpush2.msra.mxu0 %v2945
    %v2947 = vand.u32 %v2752, 4294901760
    %v2948 = vsub.f32 %v2752, %v2947
    %v2949 = vand.u32 %v2948, 4294901760
    %v2950 = vsub.f32 %v2948, %v2949
    %v2951 = vand.u32 %v2950, 4294901760
    %2952 = vmatprep.mubr.f32.mxu0 %v2951
    %v2953 = vand.u32 %v2750, 4294901760
    %v2954 = vsub.f32 %v2750, %v2953
    %v2955 = vand.u32 %v2954, 4294901760
    %v2956 = vsub.f32 %v2954, %v2955
    %v2957 = vand.u32 %v2956, 4294901760
    %2958 = vmatmul.mubr.f32.gmra.mxu0 %v2957
    %v2959 = vpop.f32.mrf.mxu0
    %v2960 = vadd.f32 0.0, %v2959
    %v2961 = vpop.f32.mrf.mxu0
    %v2962 = vadd.f32 0.0, %v2961
    %2963 = vdwg.mxu0
    %v2964 = vand.u32 %v2786, 4294901760
    %v2965 = vsub.f32 %v2786, %v2964
    %v2966 = vand.u32 %v2965, 4294901760
    %v2967 = vsub.f32 %v2965, %v2966
    %v2968 = vand.u32 %v2967, 4294901760
    %2969 = vmatprep.subr.mxu0 %v2968
    %v2970 = vand.u32 %v2785, 4294901760
    %v2971 = vsub.f32 %v2785, %v2970
    %v2972 = vand.u32 %v2971, 4294901760
    %v2973 = vsub.f32 %v2971, %v2972
    %v2974 = vand.u32 %v2973, 4294901760
    %2975 = vmatpush1.msra.mxu0 %v2974
    %v2976 = vand.u32 %v2784, 4294901760
    %v2977 = vsub.f32 %v2784, %v2976
    %v2978 = vand.u32 %v2977, 4294901760
    %v2979 = vsub.f32 %v2977, %v2978
    %v2980 = vand.u32 %v2979, 4294901760
    %2981 = vmatprep.subr.mxu0 %v2980
    %v2982 = vand.u32 %v2783, 4294901760
    %v2983 = vsub.f32 %v2783, %v2982
    %v2984 = vand.u32 %v2983, 4294901760
    %v2985 = vsub.f32 %v2983, %v2984
    %v2986 = vand.u32 %v2985, 4294901760
    %2987 = vmatpush1.msra.mxu0 %v2986
    %v2988 = vand.u32 %v2782, 4294901760
    %v2989 = vsub.f32 %v2782, %v2988
    %v2990 = vand.u32 %v2989, 4294901760
    %v2991 = vsub.f32 %v2989, %v2990
    %v2992 = vand.u32 %v2991, 4294901760
    %2993 = vmatprep.subr.mxu0 %v2992
    %v2994 = vand.u32 %v2781, 4294901760
    %v2995 = vsub.f32 %v2781, %v2994
    %v2996 = vand.u32 %v2995, 4294901760
    %v2997 = vsub.f32 %v2995, %v2996
    %v2998 = vand.u32 %v2997, 4294901760
    %2999 = vmatpush1.msra.mxu0 %v2998
    %v3000 = vand.u32 %v2780, 4294901760
    %v3001 = vsub.f32 %v2780, %v3000
    %v3002 = vand.u32 %v3001, 4294901760
    %v3003 = vsub.f32 %v3001, %v3002
    %v3004 = vand.u32 %v3003, 4294901760
    %3005 = vmatprep.subr.mxu0 %v3004
    %v3006 = vand.u32 %v2779, 4294901760
    %v3007 = vsub.f32 %v2779, %v3006
    %v3008 = vand.u32 %v3007, 4294901760
    %v3009 = vsub.f32 %v3007, %v3008
    %v3010 = vand.u32 %v3009, 4294901760
    %3011 = vmatpush1.msra.mxu0 %v3010
    %v3012 = vand.u32 %v2778, 4294901760
    %v3013 = vsub.f32 %v2778, %v3012
    %v3014 = vand.u32 %v3013, 4294901760
    %v3015 = vsub.f32 %v3013, %v3014
    %v3016 = vand.u32 %v3015, 4294901760
    %3017 = vmatprep.subr.mxu0 %v3016
    %v3018 = vand.u32 %v2777, 4294901760
    %v3019 = vsub.f32 %v2777, %v3018
    %v3020 = vand.u32 %v3019, 4294901760
    %v3021 = vsub.f32 %v3019, %v3020
    %v3022 = vand.u32 %v3021, 4294901760
    %3023 = vmatpush1.msra.mxu0 %v3022
    %v3024 = vand.u32 %v2776, 4294901760
    %v3025 = vsub.f32 %v2776, %v3024
    %v3026 = vand.u32 %v3025, 4294901760
    %v3027 = vsub.f32 %v3025, %v3026
    %v3028 = vand.u32 %v3027, 4294901760
    %3029 = vmatprep.subr.mxu0 %v3028
    %v3030 = vand.u32 %v2775, 4294901760
    %v3031 = vsub.f32 %v2775, %v3030
    %v3032 = vand.u32 %v3031, 4294901760
    %v3033 = vsub.f32 %v3031, %v3032
    %v3034 = vand.u32 %v3033, 4294901760
    %3035 = vmatpush1.msra.mxu0 %v3034
    %v3036 = vand.u32 %v2774, 4294901760
    %v3037 = vsub.f32 %v2774, %v3036
    %v3038 = vand.u32 %v3037, 4294901760
    %v3039 = vsub.f32 %v3037, %v3038
    %v3040 = vand.u32 %v3039, 4294901760
    %3041 = vmatprep.subr.mxu0 %v3040
    %v3042 = vand.u32 %v2773, 4294901760
    %v3043 = vsub.f32 %v2773, %v3042
    %v3044 = vand.u32 %v3043, 4294901760
    %v3045 = vsub.f32 %v3043, %v3044
    %v3046 = vand.u32 %v3045, 4294901760
    %3047 = vmatpush1.msra.mxu0 %v3046
    %v3048 = vand.u32 %v2772, 4294901760
    %v3049 = vsub.f32 %v2772, %v3048
    %v3050 = vand.u32 %v3049, 4294901760
    %v3051 = vsub.f32 %v3049, %v3050
    %v3052 = vand.u32 %v3051, 4294901760
    %3053 = vmatprep.subr.mxu0 %v3052
    %v3054 = vand.u32 %v2771, 4294901760
    %v3055 = vsub.f32 %v2771, %v3054
    %v3056 = vand.u32 %v3055, 4294901760
    %v3057 = vsub.f32 %v3055, %v3056
    %v3058 = vand.u32 %v3057, 4294901760
    %3059 = vmatpush1.msra.mxu0 %v3058
    %v3060 = vand.u32 %v2770, 4294901760
    %v3061 = vsub.f32 %v2770, %v3060
    %v3062 = vand.u32 %v3061, 4294901760
    %v3063 = vsub.f32 %v3061, %v3062
    %v3064 = vand.u32 %v3063, 4294901760
    %3065 = vmatprep.subr.mxu0 %v3064
    %v3066 = vand.u32 %v2769, 4294901760
    %v3067 = vsub.f32 %v2769, %v3066
    %v3068 = vand.u32 %v3067, 4294901760
    %v3069 = vsub.f32 %v3067, %v3068
    %v3070 = vand.u32 %v3069, 4294901760
    %3071 = vmatpush1.msra.mxu0 %v3070
    %v3072 = vand.u32 %v2768, 4294901760
    %v3073 = vsub.f32 %v2768, %v3072
    %v3074 = vand.u32 %v3073, 4294901760
    %v3075 = vsub.f32 %v3073, %v3074
    %v3076 = vand.u32 %v3075, 4294901760
    %3077 = vmatprep.subr.mxu0 %v3076
    %v3078 = vand.u32 %v2767, 4294901760
    %v3079 = vsub.f32 %v2767, %v3078
    %v3080 = vand.u32 %v3079, 4294901760
    %v3081 = vsub.f32 %v3079, %v3080
    %v3082 = vand.u32 %v3081, 4294901760
    %3083 = vmatpush1.msra.mxu0 %v3082
    %v3084 = vand.u32 %v2766, 4294901760
    %v3085 = vsub.f32 %v2766, %v3084
    %v3086 = vand.u32 %v3085, 4294901760
    %v3087 = vsub.f32 %v3085, %v3086
    %v3088 = vand.u32 %v3087, 4294901760
    %3089 = vmatprep.subr.mxu0 %v3088
    %v3090 = vand.u32 %v2765, 4294901760
    %v3091 = vsub.f32 %v2765, %v3090
    %v3092 = vand.u32 %v3091, 4294901760
    %v3093 = vsub.f32 %v3091, %v3092
    %v3094 = vand.u32 %v3093, 4294901760
    %3095 = vmatpush1.msra.mxu0 %v3094
    %v3096 = vand.u32 %v2764, 4294901760
    %v3097 = vsub.f32 %v2764, %v3096
    %v3098 = vand.u32 %v3097, 4294901760
    %v3099 = vsub.f32 %v3097, %v3098
    %v3100 = vand.u32 %v3099, 4294901760
    %3101 = vmatprep.subr.mxu0 %v3100
    %v3102 = vand.u32 %v2763, 4294901760
    %v3103 = vsub.f32 %v2763, %v3102
    %v3104 = vand.u32 %v3103, 4294901760
    %v3105 = vsub.f32 %v3103, %v3104
    %v3106 = vand.u32 %v3105, 4294901760
    %3107 = vmatpush1.msra.mxu0 %v3106
    %v3108 = vand.u32 %v2762, 4294901760
    %v3109 = vsub.f32 %v2762, %v3108
    %v3110 = vand.u32 %v3109, 4294901760
    %v3111 = vsub.f32 %v3109, %v3110
    %v3112 = vand.u32 %v3111, 4294901760
    %3113 = vmatprep.subr.mxu0 %v3112
    %v3114 = vand.u32 %v2761, 4294901760
    %v3115 = vsub.f32 %v2761, %v3114
    %v3116 = vand.u32 %v3115, 4294901760
    %v3117 = vsub.f32 %v3115, %v3116
    %v3118 = vand.u32 %v3117, 4294901760
    %3119 = vmatpush1.msra.mxu0 %v3118
    %v3120 = vand.u32 %v2760, 4294901760
    %v3121 = vsub.f32 %v2760, %v3120
    %v3122 = vand.u32 %v3121, 4294901760
    %v3123 = vsub.f32 %v3121, %v3122
    %v3124 = vand.u32 %v3123, 4294901760
    %3125 = vmatprep.subr.mxu0 %v3124
    %v3126 = vand.u32 %v2759, 4294901760
    %v3127 = vsub.f32 %v2759, %v3126
    %v3128 = vand.u32 %v3127, 4294901760
    %v3129 = vsub.f32 %v3127, %v3128
    %v3130 = vand.u32 %v3129, 4294901760
    %3131 = vmatpush1.msra.mxu0 %v3130
    %v3132 = vand.u32 %v2758, 4294901760
    %v3133 = vsub.f32 %v2758, %v3132
    %v3134 = vand.u32 %v3133, 4294901760
    %v3135 = vsub.f32 %v3133, %v3134
    %v3136 = vand.u32 %v3135, 4294901760
    %3137 = vmatprep.subr.mxu0 %v3136
    %v3138 = vand.u32 %v2757, 4294901760
    %v3139 = vsub.f32 %v2757, %v3138
    %v3140 = vand.u32 %v3139, 4294901760
    %v3141 = vsub.f32 %v3139, %v3140
    %v3142 = vand.u32 %v3141, 4294901760
    %3143 = vmatpush1.msra.mxu0 %v3142
    %v3144 = vand.u32 %v2756, 4294901760
    %v3145 = vsub.f32 %v2756, %v3144
    %v3146 = vand.u32 %v3145, 4294901760
    %v3147 = vsub.f32 %v3145, %v3146
    %v3148 = vand.u32 %v3147, 4294901760
    %3149 = vmatprep.subr.mxu0 %v3148
    %v3150 = vand.u32 %v2755, 4294901760
    %v3151 = vsub.f32 %v2755, %v3150
    %v3152 = vand.u32 %v3151, 4294901760
    %v3153 = vsub.f32 %v3151, %v3152
    %v3154 = vand.u32 %v3153, 4294901760
    %3155 = vmatpush1.msra.mxu0 %v3154
    %v3156 = vand.u32 %v2818, 4294901760
    %v3157 = vsub.f32 %v2818, %v3156
    %v3158 = vand.u32 %v3157, 4294901760
    %v3159 = vsub.f32 %v3157, %v3158
    %v3160 = vand.u32 %v3159, 4294901760
    %3161 = vmatprep.subr.mxu0 %v3160
    %v3162 = vand.u32 %v2817, 4294901760
    %v3163 = vsub.f32 %v2817, %v3162
    %v3164 = vand.u32 %v3163, 4294901760
    %v3165 = vsub.f32 %v3163, %v3164
    %v3166 = vand.u32 %v3165, 4294901760
    %3167 = vmatpush2.msra.mxu0 %v3166
    %v3168 = vand.u32 %v2816, 4294901760
    %v3169 = vsub.f32 %v2816, %v3168
    %v3170 = vand.u32 %v3169, 4294901760
    %v3171 = vsub.f32 %v3169, %v3170
    %v3172 = vand.u32 %v3171, 4294901760
    %3173 = vmatprep.subr.mxu0 %v3172
    %v3174 = vand.u32 %v2815, 4294901760
    %v3175 = vsub.f32 %v2815, %v3174
    %v3176 = vand.u32 %v3175, 4294901760
    %v3177 = vsub.f32 %v3175, %v3176
    %v3178 = vand.u32 %v3177, 4294901760
    %3179 = vmatpush2.msra.mxu0 %v3178
    %v3180 = vand.u32 %v2814, 4294901760
    %v3181 = vsub.f32 %v2814, %v3180
    %v3182 = vand.u32 %v3181, 4294901760
    %v3183 = vsub.f32 %v3181, %v3182
    %v3184 = vand.u32 %v3183, 4294901760
    %3185 = vmatprep.subr.mxu0 %v3184
    %v3186 = vand.u32 %v2813, 4294901760
    %v3187 = vsub.f32 %v2813, %v3186
    %v3188 = vand.u32 %v3187, 4294901760
    %v3189 = vsub.f32 %v3187, %v3188
    %v3190 = vand.u32 %v3189, 4294901760
    %3191 = vmatpush2.msra.mxu0 %v3190
    %v3192 = vand.u32 %v2812, 4294901760
    %v3193 = vsub.f32 %v2812, %v3192
    %v3194 = vand.u32 %v3193, 4294901760
    %v3195 = vsub.f32 %v3193, %v3194
    %v3196 = vand.u32 %v3195, 4294901760
    %3197 = vmatprep.subr.mxu0 %v3196
    %v3198 = vand.u32 %v2811, 4294901760
    %v3199 = vsub.f32 %v2811, %v3198
    %v3200 = vand.u32 %v3199, 4294901760
    %v3201 = vsub.f32 %v3199, %v3200
    %v3202 = vand.u32 %v3201, 4294901760
    %3203 = vmatpush2.msra.mxu0 %v3202
    %v3204 = vand.u32 %v2810, 4294901760
    %v3205 = vsub.f32 %v2810, %v3204
    %v3206 = vand.u32 %v3205, 4294901760
    %v3207 = vsub.f32 %v3205, %v3206
    %v3208 = vand.u32 %v3207, 4294901760
    %3209 = vmatprep.subr.mxu0 %v3208
    %v3210 = vand.u32 %v2809, 4294901760
    %v3211 = vsub.f32 %v2809, %v3210
    %v3212 = vand.u32 %v3211, 4294901760
    %v3213 = vsub.f32 %v3211, %v3212
    %v3214 = vand.u32 %v3213, 4294901760
    %3215 = vmatpush2.msra.mxu0 %v3214
    %v3216 = vand.u32 %v2808, 4294901760
    %v3217 = vsub.f32 %v2808, %v3216
    %v3218 = vand.u32 %v3217, 4294901760
    %v3219 = vsub.f32 %v3217, %v3218
    %v3220 = vand.u32 %v3219, 4294901760
    %3221 = vmatprep.subr.mxu0 %v3220
    %v3222 = vand.u32 %v2807, 4294901760
    %v3223 = vsub.f32 %v2807, %v3222
    %v3224 = vand.u32 %v3223, 4294901760
    %v3225 = vsub.f32 %v3223, %v3224
    %v3226 = vand.u32 %v3225, 4294901760
    %3227 = vmatpush2.msra.mxu0 %v3226
    %v3228 = vand.u32 %v2806, 4294901760
    %v3229 = vsub.f32 %v2806, %v3228
    %v3230 = vand.u32 %v3229, 4294901760
    %v3231 = vsub.f32 %v3229, %v3230
    %v3232 = vand.u32 %v3231, 4294901760
    %3233 = vmatprep.subr.mxu0 %v3232
    %v3234 = vand.u32 %v2805, 4294901760
    %v3235 = vsub.f32 %v2805, %v3234
    %v3236 = vand.u32 %v3235, 4294901760
    %v3237 = vsub.f32 %v3235, %v3236
    %v3238 = vand.u32 %v3237, 4294901760
    %3239 = vmatpush2.msra.mxu0 %v3238
    %v3240 = vand.u32 %v2804, 4294901760
    %v3241 = vsub.f32 %v2804, %v3240
    %v3242 = vand.u32 %v3241, 4294901760
    %v3243 = vsub.f32 %v3241, %v3242
    %v3244 = vand.u32 %v3243, 4294901760
    %3245 = vmatprep.subr.mxu0 %v3244
    %v3246 = vand.u32 %v2803, 4294901760
    %v3247 = vsub.f32 %v2803, %v3246
    %v3248 = vand.u32 %v3247, 4294901760
    %v3249 = vsub.f32 %v3247, %v3248
    %v3250 = vand.u32 %v3249, 4294901760
    %3251 = vmatpush2.msra.mxu0 %v3250
    %v3252 = vand.u32 %v2802, 4294901760
    %v3253 = vsub.f32 %v2802, %v3252
    %v3254 = vand.u32 %v3253, 4294901760
    %v3255 = vsub.f32 %v3253, %v3254
    %v3256 = vand.u32 %v3255, 4294901760
    %3257 = vmatprep.subr.mxu0 %v3256
    %v3258 = vand.u32 %v2801, 4294901760
    %v3259 = vsub.f32 %v2801, %v3258
    %v3260 = vand.u32 %v3259, 4294901760
    %v3261 = vsub.f32 %v3259, %v3260
    %v3262 = vand.u32 %v3261, 4294901760
    %3263 = vmatpush2.msra.mxu0 %v3262
    %v3264 = vand.u32 %v2800, 4294901760
    %v3265 = vsub.f32 %v2800, %v3264
    %v3266 = vand.u32 %v3265, 4294901760
    %v3267 = vsub.f32 %v3265, %v3266
    %v3268 = vand.u32 %v3267, 4294901760
    %3269 = vmatprep.subr.mxu0 %v3268
    %v3270 = vand.u32 %v2799, 4294901760
    %v3271 = vsub.f32 %v2799, %v3270
    %v3272 = vand.u32 %v3271, 4294901760
    %v3273 = vsub.f32 %v3271, %v3272
    %v3274 = vand.u32 %v3273, 4294901760
    %3275 = vmatpush2.msra.mxu0 %v3274
    %v3276 = vand.u32 %v2798, 4294901760
    %v3277 = vsub.f32 %v2798, %v3276
    %v3278 = vand.u32 %v3277, 4294901760
    %v3279 = vsub.f32 %v3277, %v3278
    %v3280 = vand.u32 %v3279, 4294901760
    %3281 = vmatprep.subr.mxu0 %v3280
    %v3282 = vand.u32 %v2797, 4294901760
    %v3283 = vsub.f32 %v2797, %v3282
    %v3284 = vand.u32 %v3283, 4294901760
    %v3285 = vsub.f32 %v3283, %v3284
    %v3286 = vand.u32 %v3285, 4294901760
    %3287 = vmatpush2.msra.mxu0 %v3286
    %v3288 = vand.u32 %v2796, 4294901760
    %v3289 = vsub.f32 %v2796, %v3288
    %v3290 = vand.u32 %v3289, 4294901760
    %v3291 = vsub.f32 %v3289, %v3290
    %v3292 = vand.u32 %v3291, 4294901760
    %3293 = vmatprep.subr.mxu0 %v3292
    %v3294 = vand.u32 %v2795, 4294901760
    %v3295 = vsub.f32 %v2795, %v3294
    %v3296 = vand.u32 %v3295, 4294901760
    %v3297 = vsub.f32 %v3295, %v3296
    %v3298 = vand.u32 %v3297, 4294901760
    %3299 = vmatpush2.msra.mxu0 %v3298
    %v3300 = vand.u32 %v2794, 4294901760
    %v3301 = vsub.f32 %v2794, %v3300
    %v3302 = vand.u32 %v3301, 4294901760
    %v3303 = vsub.f32 %v3301, %v3302
    %v3304 = vand.u32 %v3303, 4294901760
    %3305 = vmatprep.subr.mxu0 %v3304
    %v3306 = vand.u32 %v2793, 4294901760
    %v3307 = vsub.f32 %v2793, %v3306
    %v3308 = vand.u32 %v3307, 4294901760
    %v3309 = vsub.f32 %v3307, %v3308
    %v3310 = vand.u32 %v3309, 4294901760
    %3311 = vmatpush2.msra.mxu0 %v3310
    %v3312 = vand.u32 %v2792, 4294901760
    %v3313 = vsub.f32 %v2792, %v3312
    %v3314 = vand.u32 %v3313, 4294901760
    %v3315 = vsub.f32 %v3313, %v3314
    %v3316 = vand.u32 %v3315, 4294901760
    %3317 = vmatprep.subr.mxu0 %v3316
    %v3318 = vand.u32 %v2791, 4294901760
    %v3319 = vsub.f32 %v2791, %v3318
    %v3320 = vand.u32 %v3319, 4294901760
    %v3321 = vsub.f32 %v3319, %v3320
    %v3322 = vand.u32 %v3321, 4294901760
    %3323 = vmatpush2.msra.mxu0 %v3322
    %v3324 = vand.u32 %v2790, 4294901760
    %v3325 = vsub.f32 %v2790, %v3324
    %v3326 = vand.u32 %v3325, 4294901760
    %v3327 = vsub.f32 %v3325, %v3326
    %v3328 = vand.u32 %v3327, 4294901760
    %3329 = vmatprep.subr.mxu0 %v3328
    %v3330 = vand.u32 %v2789, 4294901760
    %v3331 = vsub.f32 %v2789, %v3330
    %v3332 = vand.u32 %v3331, 4294901760
    %v3333 = vsub.f32 %v3331, %v3332
    %v3334 = vand.u32 %v3333, 4294901760
    %3335 = vmatpush2.msra.mxu0 %v3334
    %v3336 = vand.u32 %v2788, 4294901760
    %v3337 = vsub.f32 %v2788, %v3336
    %v3338 = vand.u32 %v3337, 4294901760
    %v3339 = vsub.f32 %v3337, %v3338
    %v3340 = vand.u32 %v3339, 4294901760
    %3341 = vmatprep.subr.mxu0 %v3340
    %v3342 = vand.u32 %v2787, 4294901760
    %v3343 = vsub.f32 %v2787, %v3342
    %v3344 = vand.u32 %v3343, 4294901760
    %v3345 = vsub.f32 %v3343, %v3344
    %v3346 = vand.u32 %v3345, 4294901760
    %3347 = vmatpush2.msra.mxu0 %v3346
    %v3348 = vand.u32 %v2752, 4294901760
    %3349 = vmatprep.mubr.f32.mxu0 %v3348
    %v3350 = vand.u32 %v2750, 4294901760
    %3351 = vmatmul.mubr.f32.gmra.mxu0 %v3350
    %v3352 = vpop.f32.mrf.mxu0
    %v3353 = vadd.f32 %v2960, %v3352
    %v3354 = vpop.f32.mrf.mxu0
    %v3355 = vadd.f32 %v2962, %v3354
    %3356 = vdwg.mxu0
    %v3357 = vand.u32 %v2786, 4294901760
    %v3358 = vsub.f32 %v2786, %v3357
    %3359 = vmatprep.subr.mxu0 %v3358
    %v3360 = vand.u32 %v2785, 4294901760
    %v3361 = vsub.f32 %v2785, %v3360
    %3362 = vmatpush1.msra.mxu0 %v3361
    %v3363 = vand.u32 %v2784, 4294901760
    %v3364 = vsub.f32 %v2784, %v3363
    %3365 = vmatprep.subr.mxu0 %v3364
    %v3366 = vand.u32 %v2783, 4294901760
    %v3367 = vsub.f32 %v2783, %v3366
    %3368 = vmatpush1.msra.mxu0 %v3367
    %v3369 = vand.u32 %v2782, 4294901760
    %v3370 = vsub.f32 %v2782, %v3369
    %3371 = vmatprep.subr.mxu0 %v3370
    %v3372 = vand.u32 %v2781, 4294901760
    %v3373 = vsub.f32 %v2781, %v3372
    %3374 = vmatpush1.msra.mxu0 %v3373
    %v3375 = vand.u32 %v2780, 4294901760
    %v3376 = vsub.f32 %v2780, %v3375
    %3377 = vmatprep.subr.mxu0 %v3376
    %v3378 = vand.u32 %v2779, 4294901760
    %v3379 = vsub.f32 %v2779, %v3378
    %3380 = vmatpush1.msra.mxu0 %v3379
    %v3381 = vand.u32 %v2778, 4294901760
    %v3382 = vsub.f32 %v2778, %v3381
    %3383 = vmatprep.subr.mxu0 %v3382
    %v3384 = vand.u32 %v2777, 4294901760
    %v3385 = vsub.f32 %v2777, %v3384
    %3386 = vmatpush1.msra.mxu0 %v3385
    %v3387 = vand.u32 %v2776, 4294901760
    %v3388 = vsub.f32 %v2776, %v3387
    %3389 = vmatprep.subr.mxu0 %v3388
    %v3390 = vand.u32 %v2775, 4294901760
    %v3391 = vsub.f32 %v2775, %v3390
    %3392 = vmatpush1.msra.mxu0 %v3391
    %v3393 = vand.u32 %v2774, 4294901760
    %v3394 = vsub.f32 %v2774, %v3393
    %3395 = vmatprep.subr.mxu0 %v3394
    %v3396 = vand.u32 %v2773, 4294901760
    %v3397 = vsub.f32 %v2773, %v3396
    %3398 = vmatpush1.msra.mxu0 %v3397
    %v3399 = vand.u32 %v2772, 4294901760
    %v3400 = vsub.f32 %v2772, %v3399
    %3401 = vmatprep.subr.mxu0 %v3400
    %v3402 = vand.u32 %v2771, 4294901760
    %v3403 = vsub.f32 %v2771, %v3402
    %3404 = vmatpush1.msra.mxu0 %v3403
    %v3405 = vand.u32 %v2770, 4294901760
    %v3406 = vsub.f32 %v2770, %v3405
    %3407 = vmatprep.subr.mxu0 %v3406
    %v3408 = vand.u32 %v2769, 4294901760
    %v3409 = vsub.f32 %v2769, %v3408
    %3410 = vmatpush1.msra.mxu0 %v3409
    %v3411 = vand.u32 %v2768, 4294901760
    %v3412 = vsub.f32 %v2768, %v3411
    %3413 = vmatprep.subr.mxu0 %v3412
    %v3414 = vand.u32 %v2767, 4294901760
    %v3415 = vsub.f32 %v2767, %v3414
    %3416 = vmatpush1.msra.mxu0 %v3415
    %v3417 = vand.u32 %v2766, 4294901760
    %v3418 = vsub.f32 %v2766, %v3417
    %3419 = vmatprep.subr.mxu0 %v3418
    %v3420 = vand.u32 %v2765, 4294901760
    %v3421 = vsub.f32 %v2765, %v3420
    %3422 = vmatpush1.msra.mxu0 %v3421
    %v3423 = vand.u32 %v2764, 4294901760
    %v3424 = vsub.f32 %v2764, %v3423
    %3425 = vmatprep.subr.mxu0 %v3424
    %v3426 = vand.u32 %v2763, 4294901760
    %v3427 = vsub.f32 %v2763, %v3426
    %3428 = vmatpush1.msra.mxu0 %v3427
    %v3429 = vand.u32 %v2762, 4294901760
    %v3430 = vsub.f32 %v2762, %v3429
    %3431 = vmatprep.subr.mxu0 %v3430
    %v3432 = vand.u32 %v2761, 4294901760
    %v3433 = vsub.f32 %v2761, %v3432
    %3434 = vmatpush1.msra.mxu0 %v3433
    %v3435 = vand.u32 %v2760, 4294901760
    %v3436 = vsub.f32 %v2760, %v3435
    %3437 = vmatprep.subr.mxu0 %v3436
    %v3438 = vand.u32 %v2759, 4294901760
    %v3439 = vsub.f32 %v2759, %v3438
    %3440 = vmatpush1.msra.mxu0 %v3439
    %v3441 = vand.u32 %v2758, 4294901760
    %v3442 = vsub.f32 %v2758, %v3441
    %3443 = vmatprep.subr.mxu0 %v3442
    %v3444 = vand.u32 %v2757, 4294901760
    %v3445 = vsub.f32 %v2757, %v3444
    %3446 = vmatpush1.msra.mxu0 %v3445
    %v3447 = vand.u32 %v2756, 4294901760
    %v3448 = vsub.f32 %v2756, %v3447
    %3449 = vmatprep.subr.mxu0 %v3448
    %v3450 = vand.u32 %v2755, 4294901760
    %v3451 = vsub.f32 %v2755, %v3450
    %3452 = vmatpush1.msra.mxu0 %v3451
    %v3453 = vand.u32 %v2818, 4294901760
    %v3454 = vsub.f32 %v2818, %v3453
    %3455 = vmatprep.subr.mxu0 %v3454
    %v3456 = vand.u32 %v2817, 4294901760
    %v3457 = vsub.f32 %v2817, %v3456
    %3458 = vmatpush2.msra.mxu0 %v3457
    %v3459 = vand.u32 %v2816, 4294901760
    %v3460 = vsub.f32 %v2816, %v3459
    %3461 = vmatprep.subr.mxu0 %v3460
    %v3462 = vand.u32 %v2815, 4294901760
    %v3463 = vsub.f32 %v2815, %v3462
    %3464 = vmatpush2.msra.mxu0 %v3463
    %v3465 = vand.u32 %v2814, 4294901760
    %v3466 = vsub.f32 %v2814, %v3465
    %3467 = vmatprep.subr.mxu0 %v3466
    %v3468 = vand.u32 %v2813, 4294901760
    %v3469 = vsub.f32 %v2813, %v3468
    %3470 = vmatpush2.msra.mxu0 %v3469
    %v3471 = vand.u32 %v2812, 4294901760
    %v3472 = vsub.f32 %v2812, %v3471
    %3473 = vmatprep.subr.mxu0 %v3472
    %v3474 = vand.u32 %v2811, 4294901760
    %v3475 = vsub.f32 %v2811, %v3474
    %3476 = vmatpush2.msra.mxu0 %v3475
    %v3477 = vand.u32 %v2810, 4294901760
    %v3478 = vsub.f32 %v2810, %v3477
    %3479 = vmatprep.subr.mxu0 %v3478
    %v3480 = vand.u32 %v2809, 4294901760
    %v3481 = vsub.f32 %v2809, %v3480
    %3482 = vmatpush2.msra.mxu0 %v3481
    %v3483 = vand.u32 %v2808, 4294901760
    %v3484 = vsub.f32 %v2808, %v3483
    %3485 = vmatprep.subr.mxu0 %v3484
    %v3486 = vand.u32 %v2807, 4294901760
    %v3487 = vsub.f32 %v2807, %v3486
    %3488 = vmatpush2.msra.mxu0 %v3487
    %v3489 = vand.u32 %v2806, 4294901760
    %v3490 = vsub.f32 %v2806, %v3489
    %3491 = vmatprep.subr.mxu0 %v3490
    %v3492 = vand.u32 %v2805, 4294901760
    %v3493 = vsub.f32 %v2805, %v3492
    %3494 = vmatpush2.msra.mxu0 %v3493
    %v3495 = vand.u32 %v2804, 4294901760
    %v3496 = vsub.f32 %v2804, %v3495
    %3497 = vmatprep.subr.mxu0 %v3496
    %v3498 = vand.u32 %v2803, 4294901760
    %v3499 = vsub.f32 %v2803, %v3498
    %3500 = vmatpush2.msra.mxu0 %v3499
    %v3501 = vand.u32 %v2802, 4294901760
    %v3502 = vsub.f32 %v2802, %v3501
    %3503 = vmatprep.subr.mxu0 %v3502
    %v3504 = vand.u32 %v2801, 4294901760
    %v3505 = vsub.f32 %v2801, %v3504
    %3506 = vmatpush2.msra.mxu0 %v3505
    %v3507 = vand.u32 %v2800, 4294901760
    %v3508 = vsub.f32 %v2800, %v3507
    %3509 = vmatprep.subr.mxu0 %v3508
    %v3510 = vand.u32 %v2799, 4294901760
    %v3511 = vsub.f32 %v2799, %v3510
    %3512 = vmatpush2.msra.mxu0 %v3511
    %v3513 = vand.u32 %v2798, 4294901760
    %v3514 = vsub.f32 %v2798, %v3513
    %3515 = vmatprep.subr.mxu0 %v3514
    %v3516 = vand.u32 %v2797, 4294901760
    %v3517 = vsub.f32 %v2797, %v3516
    %3518 = vmatpush2.msra.mxu0 %v3517
    %v3519 = vand.u32 %v2796, 4294901760
    %v3520 = vsub.f32 %v2796, %v3519
    %3521 = vmatprep.subr.mxu0 %v3520
    %v3522 = vand.u32 %v2795, 4294901760
    %v3523 = vsub.f32 %v2795, %v3522
    %3524 = vmatpush2.msra.mxu0 %v3523
    %v3525 = vand.u32 %v2794, 4294901760
    %v3526 = vsub.f32 %v2794, %v3525
    %3527 = vmatprep.subr.mxu0 %v3526
    %v3528 = vand.u32 %v2793, 4294901760
    %v3529 = vsub.f32 %v2793, %v3528
    %3530 = vmatpush2.msra.mxu0 %v3529
    %v3531 = vand.u32 %v2792, 4294901760
    %v3532 = vsub.f32 %v2792, %v3531
    %3533 = vmatprep.subr.mxu0 %v3532
    %v3534 = vand.u32 %v2791, 4294901760
    %v3535 = vsub.f32 %v2791, %v3534
    %3536 = vmatpush2.msra.mxu0 %v3535
    %v3537 = vand.u32 %v2790, 4294901760
    %v3538 = vsub.f32 %v2790, %v3537
    %3539 = vmatprep.subr.mxu0 %v3538
    %v3540 = vand.u32 %v2789, 4294901760
    %v3541 = vsub.f32 %v2789, %v3540
    %3542 = vmatpush2.msra.mxu0 %v3541
    %v3543 = vand.u32 %v2788, 4294901760
    %v3544 = vsub.f32 %v2788, %v3543
    %3545 = vmatprep.subr.mxu0 %v3544
    %v3546 = vand.u32 %v2787, 4294901760
    %v3547 = vsub.f32 %v2787, %v3546
    %3548 = vmatpush2.msra.mxu0 %v3547
    %v3549 = vand.u32 %v2752, 4294901760
    %v3550 = vsub.f32 %v2752, %v3549
    %3551 = vmatprep.mubr.f32.mxu0 %v3550
    %v3552 = vand.u32 %v2750, 4294901760
    %v3553 = vsub.f32 %v2750, %v3552
    %3554 = vmatmul.mubr.f32.gmra.mxu0 %v3553
    %v3555 = vpop.f32.mrf.mxu0
    %v3556 = vadd.f32 %v3353, %v3555
    %v3557 = vpop.f32.mrf.mxu0
    %v3558 = vadd.f32 %v3355, %v3557
    %3559 = vdwg.mxu0
    %v3560 = vand.u32 %v2786, 4294901760
    %3561 = vmatprep.subr.mxu0 %v3560
    %v3562 = vand.u32 %v2785, 4294901760
    %3563 = vmatpush1.msra.mxu0 %v3562
    %v3564 = vand.u32 %v2784, 4294901760
    %3565 = vmatprep.subr.mxu0 %v3564
    %v3566 = vand.u32 %v2783, 4294901760
    %3567 = vmatpush1.msra.mxu0 %v3566
    %v3568 = vand.u32 %v2782, 4294901760
    %3569 = vmatprep.subr.mxu0 %v3568
    %v3570 = vand.u32 %v2781, 4294901760
    %3571 = vmatpush1.msra.mxu0 %v3570
    %v3572 = vand.u32 %v2780, 4294901760
    %3573 = vmatprep.subr.mxu0 %v3572
    %v3574 = vand.u32 %v2779, 4294901760
    %3575 = vmatpush1.msra.mxu0 %v3574
    %v3576 = vand.u32 %v2778, 4294901760
    %3577 = vmatprep.subr.mxu0 %v3576
    %v3578 = vand.u32 %v2777, 4294901760
    %3579 = vmatpush1.msra.mxu0 %v3578
    %v3580 = vand.u32 %v2776, 4294901760
    %3581 = vmatprep.subr.mxu0 %v3580
    %v3582 = vand.u32 %v2775, 4294901760
    %3583 = vmatpush1.msra.mxu0 %v3582
    %v3584 = vand.u32 %v2774, 4294901760
    %3585 = vmatprep.subr.mxu0 %v3584
    %v3586 = vand.u32 %v2773, 4294901760
    %3587 = vmatpush1.msra.mxu0 %v3586
    %v3588 = vand.u32 %v2772, 4294901760
    %3589 = vmatprep.subr.mxu0 %v3588
    %v3590 = vand.u32 %v2771, 4294901760
    %3591 = vmatpush1.msra.mxu0 %v3590
    %v3592 = vand.u32 %v2770, 4294901760
    %3593 = vmatprep.subr.mxu0 %v3592
    %v3594 = vand.u32 %v2769, 4294901760
    %3595 = vmatpush1.msra.mxu0 %v3594
    %v3596 = vand.u32 %v2768, 4294901760
    %3597 = vmatprep.subr.mxu0 %v3596
    %v3598 = vand.u32 %v2767, 4294901760
    %3599 = vmatpush1.msra.mxu0 %v3598
    %v3600 = vand.u32 %v2766, 4294901760
    %3601 = vmatprep.subr.mxu0 %v3600
    %v3602 = vand.u32 %v2765, 4294901760
    %3603 = vmatpush1.msra.mxu0 %v3602
    %v3604 = vand.u32 %v2764, 4294901760
    %3605 = vmatprep.subr.mxu0 %v3604
    %v3606 = vand.u32 %v2763, 4294901760
    %3607 = vmatpush1.msra.mxu0 %v3606
    %v3608 = vand.u32 %v2762, 4294901760
    %3609 = vmatprep.subr.mxu0 %v3608
    %v3610 = vand.u32 %v2761, 4294901760
    %3611 = vmatpush1.msra.mxu0 %v3610
    %v3612 = vand.u32 %v2760, 4294901760
    %3613 = vmatprep.subr.mxu0 %v3612
    %v3614 = vand.u32 %v2759, 4294901760
    %3615 = vmatpush1.msra.mxu0 %v3614
    %v3616 = vand.u32 %v2758, 4294901760
    %3617 = vmatprep.subr.mxu0 %v3616
    %v3618 = vand.u32 %v2757, 4294901760
    %3619 = vmatpush1.msra.mxu0 %v3618
    %v3620 = vand.u32 %v2756, 4294901760
    %3621 = vmatprep.subr.mxu0 %v3620
    %v3622 = vand.u32 %v2755, 4294901760
    %3623 = vmatpush1.msra.mxu0 %v3622
    %v3624 = vand.u32 %v2818, 4294901760
    %3625 = vmatprep.subr.mxu0 %v3624
    %v3626 = vand.u32 %v2817, 4294901760
    %3627 = vmatpush2.msra.mxu0 %v3626
    %v3628 = vand.u32 %v2816, 4294901760
    %3629 = vmatprep.subr.mxu0 %v3628
    %v3630 = vand.u32 %v2815, 4294901760
    %3631 = vmatpush2.msra.mxu0 %v3630
    %v3632 = vand.u32 %v2814, 4294901760
    %3633 = vmatprep.subr.mxu0 %v3632
    %v3634 = vand.u32 %v2813, 4294901760
    %3635 = vmatpush2.msra.mxu0 %v3634
    %v3636 = vand.u32 %v2812, 4294901760
    %3637 = vmatprep.subr.mxu0 %v3636
    %v3638 = vand.u32 %v2811, 4294901760
    %3639 = vmatpush2.msra.mxu0 %v3638
    %v3640 = vand.u32 %v2810, 4294901760
    %3641 = vmatprep.subr.mxu0 %v3640
    %v3642 = vand.u32 %v2809, 4294901760
    %3643 = vmatpush2.msra.mxu0 %v3642
    %v3644 = vand.u32 %v2808, 4294901760
    %3645 = vmatprep.subr.mxu0 %v3644
    %v3646 = vand.u32 %v2807, 4294901760
    %3647 = vmatpush2.msra.mxu0 %v3646
    %v3648 = vand.u32 %v2806, 4294901760
    %3649 = vmatprep.subr.mxu0 %v3648
    %v3650 = vand.u32 %v2805, 4294901760
    %3651 = vmatpush2.msra.mxu0 %v3650
    %v3652 = vand.u32 %v2804, 4294901760
    %3653 = vmatprep.subr.mxu0 %v3652
    %v3654 = vand.u32 %v2803, 4294901760
    %3655 = vmatpush2.msra.mxu0 %v3654
    %v3656 = vand.u32 %v2802, 4294901760
    %3657 = vmatprep.subr.mxu0 %v3656
    %v3658 = vand.u32 %v2801, 4294901760
    %3659 = vmatpush2.msra.mxu0 %v3658
    %v3660 = vand.u32 %v2800, 4294901760
    %3661 = vmatprep.subr.mxu0 %v3660
    %v3662 = vand.u32 %v2799, 4294901760
    %3663 = vmatpush2.msra.mxu0 %v3662
    %v3664 = vand.u32 %v2798, 4294901760
    %3665 = vmatprep.subr.mxu0 %v3664
    %v3666 = vand.u32 %v2797, 4294901760
    %3667 = vmatpush2.msra.mxu0 %v3666
    %v3668 = vand.u32 %v2796, 4294901760
    %3669 = vmatprep.subr.mxu0 %v3668
    %v3670 = vand.u32 %v2795, 4294901760
    %3671 = vmatpush2.msra.mxu0 %v3670
    %v3672 = vand.u32 %v2794, 4294901760
    %3673 = vmatprep.subr.mxu0 %v3672
    %v3674 = vand.u32 %v2793, 4294901760
    %3675 = vmatpush2.msra.mxu0 %v3674
    %v3676 = vand.u32 %v2792, 4294901760
    %3677 = vmatprep.subr.mxu0 %v3676
    %v3678 = vand.u32 %v2791, 4294901760
    %3679 = vmatpush2.msra.mxu0 %v3678
    %v3680 = vand.u32 %v2790, 4294901760
    %3681 = vmatprep.subr.mxu0 %v3680
    %v3682 = vand.u32 %v2789, 4294901760
    %3683 = vmatpush2.msra.mxu0 %v3682
    %v3684 = vand.u32 %v2788, 4294901760
    %3685 = vmatprep.subr.mxu0 %v3684
    %v3686 = vand.u32 %v2787, 4294901760
    %3687 = vmatpush2.msra.mxu0 %v3686
    %v3688 = vand.u32 %v2752, 4294901760
    %v3689 = vsub.f32 %v2752, %v3688
    %v3690 = vand.u32 %v3689, 4294901760
    %3691 = vmatprep.mubr.f32.mxu0 %v3690
    %v3692 = vand.u32 %v2750, 4294901760
    %v3693 = vsub.f32 %v2750, %v3692
    %v3694 = vand.u32 %v3693, 4294901760
    %3695 = vmatmul.mubr.f32.gmra.mxu0 %v3694
    %v3696 = vpop.f32.mrf.mxu0
    %v3697 = vadd.f32 %v3556, %v3696
    %v3698 = vpop.f32.mrf.mxu0
    %v3699 = vadd.f32 %v3558, %v3698
    %3700 = vdwg.mxu0
    %v3701 = vand.u32 %v2786, 4294901760
    %v3702 = vsub.f32 %v2786, %v3701
    %v3703 = vand.u32 %v3702, 4294901760
    %3704 = vmatprep.subr.mxu0 %v3703
    %v3705 = vand.u32 %v2785, 4294901760
    %v3706 = vsub.f32 %v2785, %v3705
    %v3707 = vand.u32 %v3706, 4294901760
    %3708 = vmatpush1.msra.mxu0 %v3707
    %v3709 = vand.u32 %v2784, 4294901760
    %v3710 = vsub.f32 %v2784, %v3709
    %v3711 = vand.u32 %v3710, 4294901760
    %3712 = vmatprep.subr.mxu0 %v3711
    %v3713 = vand.u32 %v2783, 4294901760
    %v3714 = vsub.f32 %v2783, %v3713
    %v3715 = vand.u32 %v3714, 4294901760
    %3716 = vmatpush1.msra.mxu0 %v3715
    %v3717 = vand.u32 %v2782, 4294901760
    %v3718 = vsub.f32 %v2782, %v3717
    %v3719 = vand.u32 %v3718, 4294901760
    %3720 = vmatprep.subr.mxu0 %v3719
    %v3721 = vand.u32 %v2781, 4294901760
    %v3722 = vsub.f32 %v2781, %v3721
    %v3723 = vand.u32 %v3722, 4294901760
    %3724 = vmatpush1.msra.mxu0 %v3723
    %v3725 = vand.u32 %v2780, 4294901760
    %v3726 = vsub.f32 %v2780, %v3725
    %v3727 = vand.u32 %v3726, 4294901760
    %3728 = vmatprep.subr.mxu0 %v3727
    %v3729 = vand.u32 %v2779, 4294901760
    %v3730 = vsub.f32 %v2779, %v3729
    %v3731 = vand.u32 %v3730, 4294901760
    %3732 = vmatpush1.msra.mxu0 %v3731
    %v3733 = vand.u32 %v2778, 4294901760
    %v3734 = vsub.f32 %v2778, %v3733
    %v3735 = vand.u32 %v3734, 4294901760
    %3736 = vmatprep.subr.mxu0 %v3735
    %v3737 = vand.u32 %v2777, 4294901760
    %v3738 = vsub.f32 %v2777, %v3737
    %v3739 = vand.u32 %v3738, 4294901760
    %3740 = vmatpush1.msra.mxu0 %v3739
    %v3741 = vand.u32 %v2776, 4294901760
    %v3742 = vsub.f32 %v2776, %v3741
    %v3743 = vand.u32 %v3742, 4294901760
    %3744 = vmatprep.subr.mxu0 %v3743
    %v3745 = vand.u32 %v2775, 4294901760
    %v3746 = vsub.f32 %v2775, %v3745
    %v3747 = vand.u32 %v3746, 4294901760
    %3748 = vmatpush1.msra.mxu0 %v3747
    %v3749 = vand.u32 %v2774, 4294901760
    %v3750 = vsub.f32 %v2774, %v3749
    %v3751 = vand.u32 %v3750, 4294901760
    %3752 = vmatprep.subr.mxu0 %v3751
    %v3753 = vand.u32 %v2773, 4294901760
    %v3754 = vsub.f32 %v2773, %v3753
    %v3755 = vand.u32 %v3754, 4294901760
    %3756 = vmatpush1.msra.mxu0 %v3755
    %v3757 = vand.u32 %v2772, 4294901760
    %v3758 = vsub.f32 %v2772, %v3757
    %v3759 = vand.u32 %v3758, 4294901760
    %3760 = vmatprep.subr.mxu0 %v3759
    %v3761 = vand.u32 %v2771, 4294901760
    %v3762 = vsub.f32 %v2771, %v3761
    %v3763 = vand.u32 %v3762, 4294901760
    %3764 = vmatpush1.msra.mxu0 %v3763
    %v3765 = vand.u32 %v2770, 4294901760
    %v3766 = vsub.f32 %v2770, %v3765
    %v3767 = vand.u32 %v3766, 4294901760
    %3768 = vmatprep.subr.mxu0 %v3767
    %v3769 = vand.u32 %v2769, 4294901760
    %v3770 = vsub.f32 %v2769, %v3769
    %v3771 = vand.u32 %v3770, 4294901760
    %3772 = vmatpush1.msra.mxu0 %v3771
    %v3773 = vand.u32 %v2768, 4294901760
    %v3774 = vsub.f32 %v2768, %v3773
    %v3775 = vand.u32 %v3774, 4294901760
    %3776 = vmatprep.subr.mxu0 %v3775
    %v3777 = vand.u32 %v2767, 4294901760
    %v3778 = vsub.f32 %v2767, %v3777
    %v3779 = vand.u32 %v3778, 4294901760
    %3780 = vmatpush1.msra.mxu0 %v3779
    %v3781 = vand.u32 %v2766, 4294901760
    %v3782 = vsub.f32 %v2766, %v3781
    %v3783 = vand.u32 %v3782, 4294901760
    %3784 = vmatprep.subr.mxu0 %v3783
    %v3785 = vand.u32 %v2765, 4294901760
    %v3786 = vsub.f32 %v2765, %v3785
    %v3787 = vand.u32 %v3786, 4294901760
    %3788 = vmatpush1.msra.mxu0 %v3787
    %v3789 = vand.u32 %v2764, 4294901760
    %v3790 = vsub.f32 %v2764, %v3789
    %v3791 = vand.u32 %v3790, 4294901760
    %3792 = vmatprep.subr.mxu0 %v3791
    %v3793 = vand.u32 %v2763, 4294901760
    %v3794 = vsub.f32 %v2763, %v3793
    %v3795 = vand.u32 %v3794, 4294901760
    %3796 = vmatpush1.msra.mxu0 %v3795
    %v3797 = vand.u32 %v2762, 4294901760
    %v3798 = vsub.f32 %v2762, %v3797
    %v3799 = vand.u32 %v3798, 4294901760
    %3800 = vmatprep.subr.mxu0 %v3799
    %v3801 = vand.u32 %v2761, 4294901760
    %v3802 = vsub.f32 %v2761, %v3801
    %v3803 = vand.u32 %v3802, 4294901760
    %3804 = vmatpush1.msra.mxu0 %v3803
    %v3805 = vand.u32 %v2760, 4294901760
    %v3806 = vsub.f32 %v2760, %v3805
    %v3807 = vand.u32 %v3806, 4294901760
    %3808 = vmatprep.subr.mxu0 %v3807
    %v3809 = vand.u32 %v2759, 4294901760
    %v3810 = vsub.f32 %v2759, %v3809
    %v3811 = vand.u32 %v3810, 4294901760
    %3812 = vmatpush1.msra.mxu0 %v3811
    %v3813 = vand.u32 %v2758, 4294901760
    %v3814 = vsub.f32 %v2758, %v3813
    %v3815 = vand.u32 %v3814, 4294901760
    %3816 = vmatprep.subr.mxu0 %v3815
    %v3817 = vand.u32 %v2757, 4294901760
    %v3818 = vsub.f32 %v2757, %v3817
    %v3819 = vand.u32 %v3818, 4294901760
    %3820 = vmatpush1.msra.mxu0 %v3819
    %v3821 = vand.u32 %v2756, 4294901760
    %v3822 = vsub.f32 %v2756, %v3821
    %v3823 = vand.u32 %v3822, 4294901760
    %3824 = vmatprep.subr.mxu0 %v3823
    %v3825 = vand.u32 %v2755, 4294901760
    %v3826 = vsub.f32 %v2755, %v3825
    %v3827 = vand.u32 %v3826, 4294901760
    %3828 = vmatpush1.msra.mxu0 %v3827
    %v3829 = vand.u32 %v2818, 4294901760
    %v3830 = vsub.f32 %v2818, %v3829
    %v3831 = vand.u32 %v3830, 4294901760
    %3832 = vmatprep.subr.mxu0 %v3831
    %v3833 = vand.u32 %v2817, 4294901760
    %v3834 = vsub.f32 %v2817, %v3833
    %v3835 = vand.u32 %v3834, 4294901760
    %3836 = vmatpush2.msra.mxu0 %v3835
    %v3837 = vand.u32 %v2816, 4294901760
    %v3838 = vsub.f32 %v2816, %v3837
    %v3839 = vand.u32 %v3838, 4294901760
    %3840 = vmatprep.subr.mxu0 %v3839
    %v3841 = vand.u32 %v2815, 4294901760
    %v3842 = vsub.f32 %v2815, %v3841
    %v3843 = vand.u32 %v3842, 4294901760
    %3844 = vmatpush2.msra.mxu0 %v3843
    %v3845 = vand.u32 %v2814, 4294901760
    %v3846 = vsub.f32 %v2814, %v3845
    %v3847 = vand.u32 %v3846, 4294901760
    %3848 = vmatprep.subr.mxu0 %v3847
    %v3849 = vand.u32 %v2813, 4294901760
    %v3850 = vsub.f32 %v2813, %v3849
    %v3851 = vand.u32 %v3850, 4294901760
    %3852 = vmatpush2.msra.mxu0 %v3851
    %v3853 = vand.u32 %v2812, 4294901760
    %v3854 = vsub.f32 %v2812, %v3853
    %v3855 = vand.u32 %v3854, 4294901760
    %3856 = vmatprep.subr.mxu0 %v3855
    %v3857 = vand.u32 %v2811, 4294901760
    %v3858 = vsub.f32 %v2811, %v3857
    %v3859 = vand.u32 %v3858, 4294901760
    %3860 = vmatpush2.msra.mxu0 %v3859
    %v3861 = vand.u32 %v2810, 4294901760
    %v3862 = vsub.f32 %v2810, %v3861
    %v3863 = vand.u32 %v3862, 4294901760
    %3864 = vmatprep.subr.mxu0 %v3863
    %v3865 = vand.u32 %v2809, 4294901760
    %v3866 = vsub.f32 %v2809, %v3865
    %v3867 = vand.u32 %v3866, 4294901760
    %3868 = vmatpush2.msra.mxu0 %v3867
    %v3869 = vand.u32 %v2808, 4294901760
    %v3870 = vsub.f32 %v2808, %v3869
    %v3871 = vand.u32 %v3870, 4294901760
    %3872 = vmatprep.subr.mxu0 %v3871
    %v3873 = vand.u32 %v2807, 4294901760
    %v3874 = vsub.f32 %v2807, %v3873
    %v3875 = vand.u32 %v3874, 4294901760
    %3876 = vmatpush2.msra.mxu0 %v3875
    %v3877 = vand.u32 %v2806, 4294901760
    %v3878 = vsub.f32 %v2806, %v3877
    %v3879 = vand.u32 %v3878, 4294901760
    %3880 = vmatprep.subr.mxu0 %v3879
    %v3881 = vand.u32 %v2805, 4294901760
    %v3882 = vsub.f32 %v2805, %v3881
    %v3883 = vand.u32 %v3882, 4294901760
    %3884 = vmatpush2.msra.mxu0 %v3883
    %v3885 = vand.u32 %v2804, 4294901760
    %v3886 = vsub.f32 %v2804, %v3885
    %v3887 = vand.u32 %v3886, 4294901760
    %3888 = vmatprep.subr.mxu0 %v3887
    %v3889 = vand.u32 %v2803, 4294901760
    %v3890 = vsub.f32 %v2803, %v3889
    %v3891 = vand.u32 %v3890, 4294901760
    %3892 = vmatpush2.msra.mxu0 %v3891
    %v3893 = vand.u32 %v2802, 4294901760
    %v3894 = vsub.f32 %v2802, %v3893
    %v3895 = vand.u32 %v3894, 4294901760
    %3896 = vmatprep.subr.mxu0 %v3895
    %v3897 = vand.u32 %v2801, 4294901760
    %v3898 = vsub.f32 %v2801, %v3897
    %v3899 = vand.u32 %v3898, 4294901760
    %3900 = vmatpush2.msra.mxu0 %v3899
    %v3901 = vand.u32 %v2800, 4294901760
    %v3902 = vsub.f32 %v2800, %v3901
    %v3903 = vand.u32 %v3902, 4294901760
    %3904 = vmatprep.subr.mxu0 %v3903
    %v3905 = vand.u32 %v2799, 4294901760
    %v3906 = vsub.f32 %v2799, %v3905
    %v3907 = vand.u32 %v3906, 4294901760
    %3908 = vmatpush2.msra.mxu0 %v3907
    %v3909 = vand.u32 %v2798, 4294901760
    %v3910 = vsub.f32 %v2798, %v3909
    %v3911 = vand.u32 %v3910, 4294901760
    %3912 = vmatprep.subr.mxu0 %v3911
    %v3913 = vand.u32 %v2797, 4294901760
    %v3914 = vsub.f32 %v2797, %v3913
    %v3915 = vand.u32 %v3914, 4294901760
    %3916 = vmatpush2.msra.mxu0 %v3915
    %v3917 = vand.u32 %v2796, 4294901760
    %v3918 = vsub.f32 %v2796, %v3917
    %v3919 = vand.u32 %v3918, 4294901760
    %3920 = vmatprep.subr.mxu0 %v3919
    %v3921 = vand.u32 %v2795, 4294901760
    %v3922 = vsub.f32 %v2795, %v3921
    %v3923 = vand.u32 %v3922, 4294901760
    %3924 = vmatpush2.msra.mxu0 %v3923
    %v3925 = vand.u32 %v2794, 4294901760
    %v3926 = vsub.f32 %v2794, %v3925
    %v3927 = vand.u32 %v3926, 4294901760
    %3928 = vmatprep.subr.mxu0 %v3927
    %v3929 = vand.u32 %v2793, 4294901760
    %v3930 = vsub.f32 %v2793, %v3929
    %v3931 = vand.u32 %v3930, 4294901760
    %3932 = vmatpush2.msra.mxu0 %v3931
    %v3933 = vand.u32 %v2792, 4294901760
    %v3934 = vsub.f32 %v2792, %v3933
    %v3935 = vand.u32 %v3934, 4294901760
    %3936 = vmatprep.subr.mxu0 %v3935
    %v3937 = vand.u32 %v2791, 4294901760
    %v3938 = vsub.f32 %v2791, %v3937
    %v3939 = vand.u32 %v3938, 4294901760
    %3940 = vmatpush2.msra.mxu0 %v3939
    %v3941 = vand.u32 %v2790, 4294901760
    %v3942 = vsub.f32 %v2790, %v3941
    %v3943 = vand.u32 %v3942, 4294901760
    %3944 = vmatprep.subr.mxu0 %v3943
    %v3945 = vand.u32 %v2789, 4294901760
    %v3946 = vsub.f32 %v2789, %v3945
    %v3947 = vand.u32 %v3946, 4294901760
    %3948 = vmatpush2.msra.mxu0 %v3947
    %v3949 = vand.u32 %v2788, 4294901760
    %v3950 = vsub.f32 %v2788, %v3949
    %v3951 = vand.u32 %v3950, 4294901760
    %3952 = vmatprep.subr.mxu0 %v3951
    %v3953 = vand.u32 %v2787, 4294901760
    %v3954 = vsub.f32 %v2787, %v3953
    %v3955 = vand.u32 %v3954, 4294901760
    %3956 = vmatpush2.msra.mxu0 %v3955
    %v3957 = vand.u32 %v2752, 4294901760
    %3958 = vmatprep.mubr.f32.mxu0 %v3957
    %v3959 = vand.u32 %v2750, 4294901760
    %3960 = vmatmul.mubr.f32.gmra.mxu0 %v3959
    %v3961 = vpop.f32.mrf.mxu0
    %v3962 = vadd.f32 %v3697, %v3961
    %v3963 = vpop.f32.mrf.mxu0
    %v3964 = vadd.f32 %v3699, %v3963
    %3965 = vdwg.mxu0
    %v3966 = vand.u32 %v2786, 4294901760
    %3967 = vmatprep.subr.mxu0 %v3966
    %v3968 = vand.u32 %v2785, 4294901760
    %3969 = vmatpush1.msra.mxu0 %v3968
    %v3970 = vand.u32 %v2784, 4294901760
    %3971 = vmatprep.subr.mxu0 %v3970
    %v3972 = vand.u32 %v2783, 4294901760
    %3973 = vmatpush1.msra.mxu0 %v3972
    %v3974 = vand.u32 %v2782, 4294901760
    %3975 = vmatprep.subr.mxu0 %v3974
    %v3976 = vand.u32 %v2781, 4294901760
    %3977 = vmatpush1.msra.mxu0 %v3976
    %v3978 = vand.u32 %v2780, 4294901760
    %3979 = vmatprep.subr.mxu0 %v3978
    %v3980 = vand.u32 %v2779, 4294901760
    %3981 = vmatpush1.msra.mxu0 %v3980
    %v3982 = vand.u32 %v2778, 4294901760
    %3983 = vmatprep.subr.mxu0 %v3982
    %v3984 = vand.u32 %v2777, 4294901760
    %3985 = vmatpush1.msra.mxu0 %v3984
    %v3986 = vand.u32 %v2776, 4294901760
    %3987 = vmatprep.subr.mxu0 %v3986
    %v3988 = vand.u32 %v2775, 4294901760
    %3989 = vmatpush1.msra.mxu0 %v3988
    %v3990 = vand.u32 %v2774, 4294901760
    %3991 = vmatprep.subr.mxu0 %v3990
    %v3992 = vand.u32 %v2773, 4294901760
    %3993 = vmatpush1.msra.mxu0 %v3992
    %v3994 = vand.u32 %v2772, 4294901760
    %3995 = vmatprep.subr.mxu0 %v3994
    %v3996 = vand.u32 %v2771, 4294901760
    %3997 = vmatpush1.msra.mxu0 %v3996
    %v3998 = vand.u32 %v2770, 4294901760
    %3999 = vmatprep.subr.mxu0 %v3998
    %v4000 = vand.u32 %v2769, 4294901760
    %4001 = vmatpush1.msra.mxu0 %v4000
    %v4002 = vand.u32 %v2768, 4294901760
    %4003 = vmatprep.subr.mxu0 %v4002
    %v4004 = vand.u32 %v2767, 4294901760
    %4005 = vmatpush1.msra.mxu0 %v4004
    %v4006 = vand.u32 %v2766, 4294901760
    %4007 = vmatprep.subr.mxu0 %v4006
    %v4008 = vand.u32 %v2765, 4294901760
    %4009 = vmatpush1.msra.mxu0 %v4008
    %v4010 = vand.u32 %v2764, 4294901760
    %4011 = vmatprep.subr.mxu0 %v4010
    %v4012 = vand.u32 %v2763, 4294901760
    %4013 = vmatpush1.msra.mxu0 %v4012
    %v4014 = vand.u32 %v2762, 4294901760
    %4015 = vmatprep.subr.mxu0 %v4014
    %v4016 = vand.u32 %v2761, 4294901760
    %4017 = vmatpush1.msra.mxu0 %v4016
    %v4018 = vand.u32 %v2760, 4294901760
    %4019 = vmatprep.subr.mxu0 %v4018
    %v4020 = vand.u32 %v2759, 4294901760
    %4021 = vmatpush1.msra.mxu0 %v4020
    %v4022 = vand.u32 %v2758, 4294901760
    %4023 = vmatprep.subr.mxu0 %v4022
    %v4024 = vand.u32 %v2757, 4294901760
    %4025 = vmatpush1.msra.mxu0 %v4024
    %v4026 = vand.u32 %v2756, 4294901760
    %4027 = vmatprep.subr.mxu0 %v4026
    %v4028 = vand.u32 %v2755, 4294901760
    %4029 = vmatpush1.msra.mxu0 %v4028
    %v4030 = vand.u32 %v2818, 4294901760
    %4031 = vmatprep.subr.mxu0 %v4030
    %v4032 = vand.u32 %v2817, 4294901760
    %4033 = vmatpush2.msra.mxu0 %v4032
    %v4034 = vand.u32 %v2816, 4294901760
    %4035 = vmatprep.subr.mxu0 %v4034
    %v4036 = vand.u32 %v2815, 4294901760
    %4037 = vmatpush2.msra.mxu0 %v4036
    %v4038 = vand.u32 %v2814, 4294901760
    %4039 = vmatprep.subr.mxu0 %v4038
    %v4040 = vand.u32 %v2813, 4294901760
    %4041 = vmatpush2.msra.mxu0 %v4040
    %v4042 = vand.u32 %v2812, 4294901760
    %4043 = vmatprep.subr.mxu0 %v4042
    %v4044 = vand.u32 %v2811, 4294901760
    %4045 = vmatpush2.msra.mxu0 %v4044
    %v4046 = vand.u32 %v2810, 4294901760
    %4047 = vmatprep.subr.mxu0 %v4046
    %v4048 = vand.u32 %v2809, 4294901760
    %4049 = vmatpush2.msra.mxu0 %v4048
    %v4050 = vand.u32 %v2808, 4294901760
    %4051 = vmatprep.subr.mxu0 %v4050
    %v4052 = vand.u32 %v2807, 4294901760
    %4053 = vmatpush2.msra.mxu0 %v4052
    %v4054 = vand.u32 %v2806, 4294901760
    %4055 = vmatprep.subr.mxu0 %v4054
    %v4056 = vand.u32 %v2805, 4294901760
    %4057 = vmatpush2.msra.mxu0 %v4056
    %v4058 = vand.u32 %v2804, 4294901760
    %4059 = vmatprep.subr.mxu0 %v4058
    %v4060 = vand.u32 %v2803, 4294901760
    %4061 = vmatpush2.msra.mxu0 %v4060
    %v4062 = vand.u32 %v2802, 4294901760
    %4063 = vmatprep.subr.mxu0 %v4062
    %v4064 = vand.u32 %v2801, 4294901760
    %4065 = vmatpush2.msra.mxu0 %v4064
    %v4066 = vand.u32 %v2800, 4294901760
    %4067 = vmatprep.subr.mxu0 %v4066
    %v4068 = vand.u32 %v2799, 4294901760
    %4069 = vmatpush2.msra.mxu0 %v4068
    %v4070 = vand.u32 %v2798, 4294901760
    %4071 = vmatprep.subr.mxu0 %v4070
    %v4072 = vand.u32 %v2797, 4294901760
    %4073 = vmatpush2.msra.mxu0 %v4072
    %v4074 = vand.u32 %v2796, 4294901760
    %4075 = vmatprep.subr.mxu0 %v4074
    %v4076 = vand.u32 %v2795, 4294901760
    %4077 = vmatpush2.msra.mxu0 %v4076
    %v4078 = vand.u32 %v2794, 4294901760
    %4079 = vmatprep.subr.mxu0 %v4078
    %v4080 = vand.u32 %v2793, 4294901760
    %4081 = vmatpush2.msra.mxu0 %v4080
    %v4082 = vand.u32 %v2792, 4294901760
    %4083 = vmatprep.subr.mxu0 %v4082
    %v4084 = vand.u32 %v2791, 4294901760
    %4085 = vmatpush2.msra.mxu0 %v4084
    %v4086 = vand.u32 %v2790, 4294901760
    %4087 = vmatprep.subr.mxu0 %v4086
    %v4088 = vand.u32 %v2789, 4294901760
    %4089 = vmatpush2.msra.mxu0 %v4088
    %v4090 = vand.u32 %v2788, 4294901760
    %4091 = vmatprep.subr.mxu0 %v4090
    %v4092 = vand.u32 %v2787, 4294901760
    %4093 = vmatpush2.msra.mxu0 %v4092
    %v4094 = vand.u32 %v2752, 4294901760
    %4095 = vmatprep.mubr.f32.mxu0 %v4094
    %v4096 = vand.u32 %v2750, 4294901760
    %4097 = vmatmul.mubr.f32.gmra.mxu0 %v4096
    %v4098 = vpop.f32.mrf.mxu0
    %v4099 = vadd.f32 %v3962, %v4098
    %v4100 = vpop.f32.mrf.mxu0
    %v4101 = vadd.f32 %v3964, %v4100
    %4102 = vdwg.mxu0
    %v4103 = vsub.f32 %v4099, 0.5
    %v4104 = vsub.f32 %v4101, 0.5
    %v4105 = vmul.f32 %v4103, -100.0
    %v4106 = vmul.f32 %v4104, -100.0
    %v4107 = vmul.f32 %v4105, 1.442695
    %v4108 = vpow.pop %v4107
    %v4109 = vmul.f32 %v4106, 1.442695
    %v4110 = vpow.pop %v4109
    %v4111 = vadd.f32 %v4108, 1.0
    %v4112 = vadd.f32 %v4110, 1.0
    %v4113 = vrcp.pop %v4111
    %v4114 = vmul.f32 1.0, %v4113
    %v4115 = vrcp.pop %v4112
    %v4116 = vmul.f32 1.0, %v4115
    %4117 = vst [vmem:[%s2 + $0x20] sm:$0xff] %v4114
    %4118 = vst [vmem:[%s2 + $0x28] sm:$0xff] %v4116
    %v4119 = vld [vmem:[#allocation2] sm:$0xff]
    %v4120 = vld [vmem:[#allocation2 + $0x8] sm:$0xff]
    %v4121 = vld [vmem:[#allocation2 + $0x10] sm:$0xff]
    %v4122 = vld [vmem:[#allocation2 + $0x18] sm:$0xff]
    %v4123 = vld [vmem:[#allocation2 + $0x20] sm:$0xff]
    %v4124 = vld [vmem:[#allocation2 + $0x28] sm:$0xff]
    %v4125 = vld [vmem:[#allocation2 + $0x30] sm:$0xff]
    %v4126 = vld [vmem:[#allocation2 + $0x38] sm:$0xff]
    %v4127 = vld [vmem:[#allocation2 + $0x40] sm:$0xff]
    %v4128 = vld [vmem:[#allocation2 + $0x48] sm:$0xff]
    %v4129 = vld [vmem:[#allocation2 + $0x50] sm:$0xff]
    %v4130 = vld [vmem:[#allocation2 + $0x58] sm:$0xff]
    %v4131 = vld [vmem:[#allocation2 + $0x60] sm:$0xff]
    %v4132 = vld [vmem:[#allocation2 + $0x68] sm:$0xff]
    %v4133 = vld [vmem:[#allocation2 + $0x70] sm:$0xff]
    %v4134 = vld [vmem:[#allocation2 + $0x78] sm:$0xff]
    %v4135 = vld [vmem:[#allocation2 + $0x80] sm:$0xff]
    %v4136 = vld [vmem:[#allocation2 + $0x88] sm:$0xff]
    %v4137 = vld [vmem:[#allocation2 + $0x90] sm:$0xff]
    %v4138 = vld [vmem:[#allocation2 + $0x98] sm:$0xff]
    %v4139 = vld [vmem:[#allocation2 + $0xa0] sm:$0xff]
    %v4140 = vld [vmem:[#allocation2 + $0xa8] sm:$0xff]
    %v4141 = vld [vmem:[#allocation2 + $0xb0] sm:$0xff]
    %v4142 = vld [vmem:[#allocation2 + $0xb8] sm:$0xff]
    %v4143 = vld [vmem:[#allocation2 + $0xc0] sm:$0xff]
    %v4144 = vld [vmem:[#allocation2 + $0xc8] sm:$0xff]
    %v4145 = vld [vmem:[#allocation2 + $0xd0] sm:$0xff]
    %v4146 = vld [vmem:[#allocation2 + $0xd8] sm:$0xff]
    %v4147 = vld [vmem:[#allocation2 + $0xe0] sm:$0xff]
    %v4148 = vld [vmem:[#allocation2 + $0xe8] sm:$0xff]
    %v4149 = vld [vmem:[#allocation2 + $0xf0] sm:$0xff]
    %v4150 = vld [vmem:[#allocation2 + $0xf8] sm:$0xff]
    %v4151 = vld [vmem:[#allocation2 + $0x100] sm:$0xff]
    %v4152 = vld [vmem:[#allocation2 + $0x108] sm:$0xff]
    %v4153 = vld [vmem:[#allocation2 + $0x110] sm:$0xff]
    %v4154 = vld [vmem:[#allocation2 + $0x118] sm:$0xff]
    %v4155 = vld [vmem:[#allocation2 + $0x120] sm:$0xff]
    %v4156 = vld [vmem:[#allocation2 + $0x128] sm:$0xff]
    %v4157 = vld [vmem:[#allocation2 + $0x130] sm:$0xff]
    %v4158 = vld [vmem:[#allocation2 + $0x138] sm:$0xff]
    %v4159 = vld [vmem:[#allocation2 + $0x140] sm:$0xff]
    %v4160 = vld [vmem:[#allocation2 + $0x148] sm:$0xff]
    %v4161 = vld [vmem:[#allocation2 + $0x150] sm:$0xff]
    %v4162 = vld [vmem:[#allocation2 + $0x158] sm:$0xff]
    %v4163 = vld [vmem:[#allocation2 + $0x160] sm:$0xff]
    %v4164 = vld [vmem:[#allocation2 + $0x168] sm:$0xff]
    %v4165 = vld [vmem:[#allocation2 + $0x170] sm:$0xff]
    %v4166 = vld [vmem:[#allocation2 + $0x178] sm:$0xff]
    %v4167 = vld [vmem:[#allocation2 + $0x180] sm:$0xff]
    %v4168 = vld [vmem:[#allocation2 + $0x188] sm:$0xff]
    %v4169 = vld [vmem:[#allocation2 + $0x190] sm:$0xff]
    %v4170 = vld [vmem:[#allocation2 + $0x198] sm:$0xff]
    %v4171 = vld [vmem:[#allocation2 + $0x1a0] sm:$0xff]
    %v4172 = vld [vmem:[#allocation2 + $0x1a8] sm:$0xff]
    %v4173 = vld [vmem:[#allocation2 + $0x1b0] sm:$0xff]
    %v4174 = vld [vmem:[#allocation2 + $0x1b8] sm:$0xff]
    %v4175 = vld [vmem:[#allocation2 + $0x1c0] sm:$0xff]
    %v4176 = vld [vmem:[#allocation2 + $0x1c8] sm:$0xff]
    %v4177 = vld [vmem:[#allocation2 + $0x1d0] sm:$0xff]
    %v4178 = vld [vmem:[#allocation2 + $0x1d8] sm:$0xff]
    %v4179 = vld [vmem:[#allocation2 + $0x1e0] sm:$0xff]
    %v4180 = vld [vmem:[#allocation2 + $0x1e8] sm:$0xff]
    %v4181 = vld [vmem:[#allocation2 + $0x1f0] sm:$0xff]
    %v4182 = vld [vmem:[#allocation2 + $0x1f8] sm:$0xff]
    %v4183 = vand.u32 %v4150, 4294901760
    %4184 = vmatprep.subr.mxu0 %v4183
    %v4185 = vand.u32 %v4149, 4294901760
    %4186 = vmatpush1.msra.mxu0 %v4185
    %v4187 = vand.u32 %v4148, 4294901760
    %4188 = vmatprep.subr.mxu0 %v4187
    %v4189 = vand.u32 %v4147, 4294901760
    %4190 = vmatpush1.msra.mxu0 %v4189
    %v4191 = vand.u32 %v4146, 4294901760
    %4192 = vmatprep.subr.mxu0 %v4191
    %v4193 = vand.u32 %v4145, 4294901760
    %4194 = vmatpush1.msra.mxu0 %v4193
    %v4195 = vand.u32 %v4144, 4294901760
    %4196 = vmatprep.subr.mxu0 %v4195
    %v4197 = vand.u32 %v4143, 4294901760
    %4198 = vmatpush1.msra.mxu0 %v4197
    %v4199 = vand.u32 %v4142, 4294901760
    %4200 = vmatprep.subr.mxu0 %v4199
    %v4201 = vand.u32 %v4141, 4294901760
    %4202 = vmatpush1.msra.mxu0 %v4201
    %v4203 = vand.u32 %v4140, 4294901760
    %4204 = vmatprep.subr.mxu0 %v4203
    %v4205 = vand.u32 %v4139, 4294901760
    %4206 = vmatpush1.msra.mxu0 %v4205
    %v4207 = vand.u32 %v4138, 4294901760
    %4208 = vmatprep.subr.mxu0 %v4207
    %v4209 = vand.u32 %v4137, 4294901760
    %4210 = vmatpush1.msra.mxu0 %v4209
    %v4211 = vand.u32 %v4136, 4294901760
    %4212 = vmatprep.subr.mxu0 %v4211
    %v4213 = vand.u32 %v4135, 4294901760
    %4214 = vmatpush1.msra.mxu0 %v4213
    %v4215 = vand.u32 %v4134, 4294901760
    %4216 = vmatprep.subr.mxu0 %v4215
    %v4217 = vand.u32 %v4133, 4294901760
    %4218 = vmatpush1.msra.mxu0 %v4217
    %v4219 = vand.u32 %v4132, 4294901760
    %4220 = vmatprep.subr.mxu0 %v4219
    %v4221 = vand.u32 %v4131, 4294901760
    %4222 = vmatpush1.msra.mxu0 %v4221
    %v4223 = vand.u32 %v4130, 4294901760
    %4224 = vmatprep.subr.mxu0 %v4223
    %v4225 = vand.u32 %v4129, 4294901760
    %4226 = vmatpush1.msra.mxu0 %v4225
    %v4227 = vand.u32 %v4128, 4294901760
    %4228 = vmatprep.subr.mxu0 %v4227
    %v4229 = vand.u32 %v4127, 4294901760
    %4230 = vmatpush1.msra.mxu0 %v4229
    %v4231 = vand.u32 %v4126, 4294901760
    %4232 = vmatprep.subr.mxu0 %v4231
    %v4233 = vand.u32 %v4125, 4294901760
    %4234 = vmatpush1.msra.mxu0 %v4233
    %v4235 = vand.u32 %v4124, 4294901760
    %4236 = vmatprep.subr.mxu0 %v4235
    %v4237 = vand.u32 %v4123, 4294901760
    %4238 = vmatpush1.msra.mxu0 %v4237
    %v4239 = vand.u32 %v4122, 4294901760
    %4240 = vmatprep.subr.mxu0 %v4239
    %v4241 = vand.u32 %v4121, 4294901760
    %4242 = vmatpush1.msra.mxu0 %v4241
    %v4243 = vand.u32 %v4120, 4294901760
    %4244 = vmatprep.subr.mxu0 %v4243
    %v4245 = vand.u32 %v4119, 4294901760
    %4246 = vmatpush1.msra.mxu0 %v4245
    %v4247 = vand.u32 %v4182, 4294901760
    %4248 = vmatprep.subr.mxu0 %v4247
    %v4249 = vand.u32 %v4181, 4294901760
    %4250 = vmatpush2.msra.mxu0 %v4249
    %v4251 = vand.u32 %v4180, 4294901760
    %4252 = vmatprep.subr.mxu0 %v4251
    %v4253 = vand.u32 %v4179, 4294901760
    %4254 = vmatpush2.msra.mxu0 %v4253
    %v4255 = vand.u32 %v4178, 4294901760
    %4256 = vmatprep.subr.mxu0 %v4255
    %v4257 = vand.u32 %v4177, 4294901760
    %4258 = vmatpush2.msra.mxu0 %v4257
    %v4259 = vand.u32 %v4176, 4294901760
    %4260 = vmatprep.subr.mxu0 %v4259
    %v4261 = vand.u32 %v4175, 4294901760
    %4262 = vmatpush2.msra.mxu0 %v4261
    %v4263 = vand.u32 %v4174, 4294901760
    %4264 = vmatprep.subr.mxu0 %v4263
    %v4265 = vand.u32 %v4173, 4294901760
    %4266 = vmatpush2.msra.mxu0 %v4265
    %v4267 = vand.u32 %v4172, 4294901760
    %4268 = vmatprep.subr.mxu0 %v4267
    %v4269 = vand.u32 %v4171, 4294901760
    %4270 = vmatpush2.msra.mxu0 %v4269
    %v4271 = vand.u32 %v4170, 4294901760
    %4272 = vmatprep.subr.mxu0 %v4271
    %v4273 = vand.u32 %v4169, 4294901760
    %4274 = vmatpush2.msra.mxu0 %v4273
    %v4275 = vand.u32 %v4168, 4294901760
    %4276 = vmatprep.subr.mxu0 %v4275
    %v4277 = vand.u32 %v4167, 4294901760
    %4278 = vmatpush2.msra.mxu0 %v4277
    %v4279 = vand.u32 %v4166, 4294901760
    %4280 = vmatprep.subr.mxu0 %v4279
    %v4281 = vand.u32 %v4165, 4294901760
    %4282 = vmatpush2.msra.mxu0 %v4281
    %v4283 = vand.u32 %v4164, 4294901760
    %4284 = vmatprep.subr.mxu0 %v4283
    %v4285 = vand.u32 %v4163, 4294901760
    %4286 = vmatpush2.msra.mxu0 %v4285
    %v4287 = vand.u32 %v4162, 4294901760
    %4288 = vmatprep.subr.mxu0 %v4287
    %v4289 = vand.u32 %v4161, 4294901760
    %4290 = vmatpush2.msra.mxu0 %v4289
    %v4291 = vand.u32 %v4160, 4294901760
    %4292 = vmatprep.subr.mxu0 %v4291
    %v4293 = vand.u32 %v4159, 4294901760
    %4294 = vmatpush2.msra.mxu0 %v4293
    %v4295 = vand.u32 %v4158, 4294901760
    %4296 = vmatprep.subr.mxu0 %v4295
    %v4297 = vand.u32 %v4157, 4294901760
    %4298 = vmatpush2.msra.mxu0 %v4297
    %v4299 = vand.u32 %v4156, 4294901760
    %4300 = vmatprep.subr.mxu0 %v4299
    %v4301 = vand.u32 %v4155, 4294901760
    %4302 = vmatpush2.msra.mxu0 %v4301
    %v4303 = vand.u32 %v4154, 4294901760
    %4304 = vmatprep.subr.mxu0 %v4303
    %v4305 = vand.u32 %v4153, 4294901760
    %4306 = vmatpush2.msra.mxu0 %v4305
    %v4307 = vand.u32 %v4152, 4294901760
    %4308 = vmatprep.subr.mxu0 %v4307
    %v4309 = vand.u32 %v4151, 4294901760
    %4310 = vmatpush2.msra.mxu0 %v4309
    %v4311 = vand.u32 %v4116, 4294901760
    %v4312 = vsub.f32 %v4116, %v4311
    %v4313 = vand.u32 %v4312, 4294901760
    %v4314 = vsub.f32 %v4312, %v4313
    %v4315 = vand.u32 %v4314, 4294901760
    %4316 = vmatprep.mubr.f32.mxu0 %v4315
    %v4317 = vand.u32 %v4114, 4294901760
    %v4318 = vsub.f32 %v4114, %v4317
    %v4319 = vand.u32 %v4318, 4294901760
    %v4320 = vsub.f32 %v4318, %v4319
    %v4321 = vand.u32 %v4320, 4294901760
    %4322 = vmatmul.mubr.f32.gmra.mxu0 %v4321
    %v4323 = vpop.f32.mrf.mxu0
    %v4324 = vadd.f32 0.0, %v4323
    %v4325 = vpop.f32.mrf.mxu0
    %v4326 = vadd.f32 0.0, %v4325
    %4327 = vdwg.mxu0
    %v4328 = vand.u32 %v4150, 4294901760
    %v4329 = vsub.f32 %v4150, %v4328
    %v4330 = vand.u32 %v4329, 4294901760
    %v4331 = vsub.f32 %v4329, %v4330
    %v4332 = vand.u32 %v4331, 4294901760
    %4333 = vmatprep.subr.mxu0 %v4332
    %v4334 = vand.u32 %v4149, 4294901760
    %v4335 = vsub.f32 %v4149, %v4334
    %v4336 = vand.u32 %v4335, 4294901760
    %v4337 = vsub.f32 %v4335, %v4336
    %v4338 = vand.u32 %v4337, 4294901760
    %4339 = vmatpush1.msra.mxu0 %v4338
    %v4340 = vand.u32 %v4148, 4294901760
    %v4341 = vsub.f32 %v4148, %v4340
    %v4342 = vand.u32 %v4341, 4294901760
    %v4343 = vsub.f32 %v4341, %v4342
    %v4344 = vand.u32 %v4343, 4294901760
    %4345 = vmatprep.subr.mxu0 %v4344
    %v4346 = vand.u32 %v4147, 4294901760
    %v4347 = vsub.f32 %v4147, %v4346
    %v4348 = vand.u32 %v4347, 4294901760
    %v4349 = vsub.f32 %v4347, %v4348
    %v4350 = vand.u32 %v4349, 4294901760
    %4351 = vmatpush1.msra.mxu0 %v4350
    %v4352 = vand.u32 %v4146, 4294901760
    %v4353 = vsub.f32 %v4146, %v4352
    %v4354 = vand.u32 %v4353, 4294901760
    %v4355 = vsub.f32 %v4353, %v4354
    %v4356 = vand.u32 %v4355, 4294901760
    %4357 = vmatprep.subr.mxu0 %v4356
    %v4358 = vand.u32 %v4145, 4294901760
    %v4359 = vsub.f32 %v4145, %v4358
    %v4360 = vand.u32 %v4359, 4294901760
    %v4361 = vsub.f32 %v4359, %v4360
    %v4362 = vand.u32 %v4361, 4294901760
    %4363 = vmatpush1.msra.mxu0 %v4362
    %v4364 = vand.u32 %v4144, 4294901760
    %v4365 = vsub.f32 %v4144, %v4364
    %v4366 = vand.u32 %v4365, 4294901760
    %v4367 = vsub.f32 %v4365, %v4366
    %v4368 = vand.u32 %v4367, 4294901760
    %4369 = vmatprep.subr.mxu0 %v4368
    %v4370 = vand.u32 %v4143, 4294901760
    %v4371 = vsub.f32 %v4143, %v4370
    %v4372 = vand.u32 %v4371, 4294901760
    %v4373 = vsub.f32 %v4371, %v4372
    %v4374 = vand.u32 %v4373, 4294901760
    %4375 = vmatpush1.msra.mxu0 %v4374
    %v4376 = vand.u32 %v4142, 4294901760
    %v4377 = vsub.f32 %v4142, %v4376
    %v4378 = vand.u32 %v4377, 4294901760
    %v4379 = vsub.f32 %v4377, %v4378
    %v4380 = vand.u32 %v4379, 4294901760
    %4381 = vmatprep.subr.mxu0 %v4380
    %v4382 = vand.u32 %v4141, 4294901760
    %v4383 = vsub.f32 %v4141, %v4382
    %v4384 = vand.u32 %v4383, 4294901760
    %v4385 = vsub.f32 %v4383, %v4384
    %v4386 = vand.u32 %v4385, 4294901760
    %4387 = vmatpush1.msra.mxu0 %v4386
    %v4388 = vand.u32 %v4140, 4294901760
    %v4389 = vsub.f32 %v4140, %v4388
    %v4390 = vand.u32 %v4389, 4294901760
    %v4391 = vsub.f32 %v4389, %v4390
    %v4392 = vand.u32 %v4391, 4294901760
    %4393 = vmatprep.subr.mxu0 %v4392
    %v4394 = vand.u32 %v4139, 4294901760
    %v4395 = vsub.f32 %v4139, %v4394
    %v4396 = vand.u32 %v4395, 4294901760
    %v4397 = vsub.f32 %v4395, %v4396
    %v4398 = vand.u32 %v4397, 4294901760
    %4399 = vmatpush1.msra.mxu0 %v4398
    %v4400 = vand.u32 %v4138, 4294901760
    %v4401 = vsub.f32 %v4138, %v4400
    %v4402 = vand.u32 %v4401, 4294901760
    %v4403 = vsub.f32 %v4401, %v4402
    %v4404 = vand.u32 %v4403, 4294901760
    %4405 = vmatprep.subr.mxu0 %v4404
    %v4406 = vand.u32 %v4137, 4294901760
    %v4407 = vsub.f32 %v4137, %v4406
    %v4408 = vand.u32 %v4407, 4294901760
    %v4409 = vsub.f32 %v4407, %v4408
    %v4410 = vand.u32 %v4409, 4294901760
    %4411 = vmatpush1.msra.mxu0 %v4410
    %v4412 = vand.u32 %v4136, 4294901760
    %v4413 = vsub.f32 %v4136, %v4412
    %v4414 = vand.u32 %v4413, 4294901760
    %v4415 = vsub.f32 %v4413, %v4414
    %v4416 = vand.u32 %v4415, 4294901760
    %4417 = vmatprep.subr.mxu0 %v4416
    %v4418 = vand.u32 %v4135, 4294901760
    %v4419 = vsub.f32 %v4135, %v4418
    %v4420 = vand.u32 %v4419, 4294901760
    %v4421 = vsub.f32 %v4419, %v4420
    %v4422 = vand.u32 %v4421, 4294901760
    %4423 = vmatpush1.msra.mxu0 %v4422
    %v4424 = vand.u32 %v4134, 4294901760
    %v4425 = vsub.f32 %v4134, %v4424
    %v4426 = vand.u32 %v4425, 4294901760
    %v4427 = vsub.f32 %v4425, %v4426
    %v4428 = vand.u32 %v4427, 4294901760
    %4429 = vmatprep.subr.mxu0 %v4428
    %v4430 = vand.u32 %v4133, 4294901760
    %v4431 = vsub.f32 %v4133, %v4430
    %v4432 = vand.u32 %v4431, 4294901760
    %v4433 = vsub.f32 %v4431, %v4432
    %v4434 = vand.u32 %v4433, 4294901760
    %4435 = vmatpush1.msra.mxu0 %v4434
    %v4436 = vand.u32 %v4132, 4294901760
    %v4437 = vsub.f32 %v4132, %v4436
    %v4438 = vand.u32 %v4437, 4294901760
    %v4439 = vsub.f32 %v4437, %v4438
    %v4440 = vand.u32 %v4439, 4294901760
    %4441 = vmatprep.subr.mxu0 %v4440
    %v4442 = vand.u32 %v4131, 4294901760
    %v4443 = vsub.f32 %v4131, %v4442
    %v4444 = vand.u32 %v4443, 4294901760
    %v4445 = vsub.f32 %v4443, %v4444
    %v4446 = vand.u32 %v4445, 4294901760
    %4447 = vmatpush1.msra.mxu0 %v4446
    %v4448 = vand.u32 %v4130, 4294901760
    %v4449 = vsub.f32 %v4130, %v4448
    %v4450 = vand.u32 %v4449, 4294901760
    %v4451 = vsub.f32 %v4449, %v4450
    %v4452 = vand.u32 %v4451, 4294901760
    %4453 = vmatprep.subr.mxu0 %v4452
    %v4454 = vand.u32 %v4129, 4294901760
    %v4455 = vsub.f32 %v4129, %v4454
    %v4456 = vand.u32 %v4455, 4294901760
    %v4457 = vsub.f32 %v4455, %v4456
    %v4458 = vand.u32 %v4457, 4294901760
    %4459 = vmatpush1.msra.mxu0 %v4458
    %v4460 = vand.u32 %v4128, 4294901760
    %v4461 = vsub.f32 %v4128, %v4460
    %v4462 = vand.u32 %v4461, 4294901760
    %v4463 = vsub.f32 %v4461, %v4462
    %v4464 = vand.u32 %v4463, 4294901760
    %4465 = vmatprep.subr.mxu0 %v4464
    %v4466 = vand.u32 %v4127, 4294901760
    %v4467 = vsub.f32 %v4127, %v4466
    %v4468 = vand.u32 %v4467, 4294901760
    %v4469 = vsub.f32 %v4467, %v4468
    %v4470 = vand.u32 %v4469, 4294901760
    %4471 = vmatpush1.msra.mxu0 %v4470
    %v4472 = vand.u32 %v4126, 4294901760
    %v4473 = vsub.f32 %v4126, %v4472
    %v4474 = vand.u32 %v4473, 4294901760
    %v4475 = vsub.f32 %v4473, %v4474
    %v4476 = vand.u32 %v4475, 4294901760
    %4477 = vmatprep.subr.mxu0 %v4476
    %v4478 = vand.u32 %v4125, 4294901760
    %v4479 = vsub.f32 %v4125, %v4478
    %v4480 = vand.u32 %v4479, 4294901760
    %v4481 = vsub.f32 %v4479, %v4480
    %v4482 = vand.u32 %v4481, 4294901760
    %4483 = vmatpush1.msra.mxu0 %v4482
    %v4484 = vand.u32 %v4124, 4294901760
    %v4485 = vsub.f32 %v4124, %v4484
    %v4486 = vand.u32 %v4485, 4294901760
    %v4487 = vsub.f32 %v4485, %v4486
    %v4488 = vand.u32 %v4487, 4294901760
    %4489 = vmatprep.subr.mxu0 %v4488
    %v4490 = vand.u32 %v4123, 4294901760
    %v4491 = vsub.f32 %v4123, %v4490
    %v4492 = vand.u32 %v4491, 4294901760
    %v4493 = vsub.f32 %v4491, %v4492
    %v4494 = vand.u32 %v4493, 4294901760
    %4495 = vmatpush1.msra.mxu0 %v4494
    %v4496 = vand.u32 %v4122, 4294901760
    %v4497 = vsub.f32 %v4122, %v4496
    %v4498 = vand.u32 %v4497, 4294901760
    %v4499 = vsub.f32 %v4497, %v4498
    %v4500 = vand.u32 %v4499, 4294901760
    %4501 = vmatprep.subr.mxu0 %v4500
    %v4502 = vand.u32 %v4121, 4294901760
    %v4503 = vsub.f32 %v4121, %v4502
    %v4504 = vand.u32 %v4503, 4294901760
    %v4505 = vsub.f32 %v4503, %v4504
    %v4506 = vand.u32 %v4505, 4294901760
    %4507 = vmatpush1.msra.mxu0 %v4506
    %v4508 = vand.u32 %v4120, 4294901760
    %v4509 = vsub.f32 %v4120, %v4508
    %v4510 = vand.u32 %v4509, 4294901760
    %v4511 = vsub.f32 %v4509, %v4510
    %v4512 = vand.u32 %v4511, 4294901760
    %4513 = vmatprep.subr.mxu0 %v4512
    %v4514 = vand.u32 %v4119, 4294901760
    %v4515 = vsub.f32 %v4119, %v4514
    %v4516 = vand.u32 %v4515, 4294901760
    %v4517 = vsub.f32 %v4515, %v4516
    %v4518 = vand.u32 %v4517, 4294901760
    %4519 = vmatpush1.msra.mxu0 %v4518
    %v4520 = vand.u32 %v4182, 4294901760
    %v4521 = vsub.f32 %v4182, %v4520
    %v4522 = vand.u32 %v4521, 4294901760
    %v4523 = vsub.f32 %v4521, %v4522
    %v4524 = vand.u32 %v4523, 4294901760
    %4525 = vmatprep.subr.mxu0 %v4524
    %v4526 = vand.u32 %v4181, 4294901760
    %v4527 = vsub.f32 %v4181, %v4526
    %v4528 = vand.u32 %v4527, 4294901760
    %v4529 = vsub.f32 %v4527, %v4528
    %v4530 = vand.u32 %v4529, 4294901760
    %4531 = vmatpush2.msra.mxu0 %v4530
    %v4532 = vand.u32 %v4180, 4294901760
    %v4533 = vsub.f32 %v4180, %v4532
    %v4534 = vand.u32 %v4533, 4294901760
    %v4535 = vsub.f32 %v4533, %v4534
    %v4536 = vand.u32 %v4535, 4294901760
    %4537 = vmatprep.subr.mxu0 %v4536
    %v4538 = vand.u32 %v4179, 4294901760
    %v4539 = vsub.f32 %v4179, %v4538
    %v4540 = vand.u32 %v4539, 4294901760
    %v4541 = vsub.f32 %v4539, %v4540
    %v4542 = vand.u32 %v4541, 4294901760
    %4543 = vmatpush2.msra.mxu0 %v4542
    %v4544 = vand.u32 %v4178, 4294901760
    %v4545 = vsub.f32 %v4178, %v4544
    %v4546 = vand.u32 %v4545, 4294901760
    %v4547 = vsub.f32 %v4545, %v4546
    %v4548 = vand.u32 %v4547, 4294901760
    %4549 = vmatprep.subr.mxu0 %v4548
    %v4550 = vand.u32 %v4177, 4294901760
    %v4551 = vsub.f32 %v4177, %v4550
    %v4552 = vand.u32 %v4551, 4294901760
    %v4553 = vsub.f32 %v4551, %v4552
    %v4554 = vand.u32 %v4553, 4294901760
    %4555 = vmatpush2.msra.mxu0 %v4554
    %v4556 = vand.u32 %v4176, 4294901760
    %v4557 = vsub.f32 %v4176, %v4556
    %v4558 = vand.u32 %v4557, 4294901760
    %v4559 = vsub.f32 %v4557, %v4558
    %v4560 = vand.u32 %v4559, 4294901760
    %4561 = vmatprep.subr.mxu0 %v4560
    %v4562 = vand.u32 %v4175, 4294901760
    %v4563 = vsub.f32 %v4175, %v4562
    %v4564 = vand.u32 %v4563, 4294901760
    %v4565 = vsub.f32 %v4563, %v4564
    %v4566 = vand.u32 %v4565, 4294901760
    %4567 = vmatpush2.msra.mxu0 %v4566
    %v4568 = vand.u32 %v4174, 4294901760
    %v4569 = vsub.f32 %v4174, %v4568
    %v4570 = vand.u32 %v4569, 4294901760
    %v4571 = vsub.f32 %v4569, %v4570
    %v4572 = vand.u32 %v4571, 4294901760
    %4573 = vmatprep.subr.mxu0 %v4572
    %v4574 = vand.u32 %v4173, 4294901760
    %v4575 = vsub.f32 %v4173, %v4574
    %v4576 = vand.u32 %v4575, 4294901760
    %v4577 = vsub.f32 %v4575, %v4576
    %v4578 = vand.u32 %v4577, 4294901760
    %4579 = vmatpush2.msra.mxu0 %v4578
    %v4580 = vand.u32 %v4172, 4294901760
    %v4581 = vsub.f32 %v4172, %v4580
    %v4582 = vand.u32 %v4581, 4294901760
    %v4583 = vsub.f32 %v4581, %v4582
    %v4584 = vand.u32 %v4583, 4294901760
    %4585 = vmatprep.subr.mxu0 %v4584
    %v4586 = vand.u32 %v4171, 4294901760
    %v4587 = vsub.f32 %v4171, %v4586
    %v4588 = vand.u32 %v4587, 4294901760
    %v4589 = vsub.f32 %v4587, %v4588
    %v4590 = vand.u32 %v4589, 4294901760
    %4591 = vmatpush2.msra.mxu0 %v4590
    %v4592 = vand.u32 %v4170, 4294901760
    %v4593 = vsub.f32 %v4170, %v4592
    %v4594 = vand.u32 %v4593, 4294901760
    %v4595 = vsub.f32 %v4593, %v4594
    %v4596 = vand.u32 %v4595, 4294901760
    %4597 = vmatprep.subr.mxu0 %v4596
    %v4598 = vand.u32 %v4169, 4294901760
    %v4599 = vsub.f32 %v4169, %v4598
    %v4600 = vand.u32 %v4599, 4294901760
    %v4601 = vsub.f32 %v4599, %v4600
    %v4602 = vand.u32 %v4601, 4294901760
    %4603 = vmatpush2.msra.mxu0 %v4602
    %v4604 = vand.u32 %v4168, 4294901760
    %v4605 = vsub.f32 %v4168, %v4604
    %v4606 = vand.u32 %v4605, 4294901760
    %v4607 = vsub.f32 %v4605, %v4606
    %v4608 = vand.u32 %v4607, 4294901760
    %4609 = vmatprep.subr.mxu0 %v4608
    %v4610 = vand.u32 %v4167, 4294901760
    %v4611 = vsub.f32 %v4167, %v4610
    %v4612 = vand.u32 %v4611, 4294901760
    %v4613 = vsub.f32 %v4611, %v4612
    %v4614 = vand.u32 %v4613, 4294901760
    %4615 = vmatpush2.msra.mxu0 %v4614
    %v4616 = vand.u32 %v4166, 4294901760
    %v4617 = vsub.f32 %v4166, %v4616
    %v4618 = vand.u32 %v4617, 4294901760
    %v4619 = vsub.f32 %v4617, %v4618
    %v4620 = vand.u32 %v4619, 4294901760
    %4621 = vmatprep.subr.mxu0 %v4620
    %v4622 = vand.u32 %v4165, 4294901760
    %v4623 = vsub.f32 %v4165, %v4622
    %v4624 = vand.u32 %v4623, 4294901760
    %v4625 = vsub.f32 %v4623, %v4624
    %v4626 = vand.u32 %v4625, 4294901760
    %4627 = vmatpush2.msra.mxu0 %v4626
    %v4628 = vand.u32 %v4164, 4294901760
    %v4629 = vsub.f32 %v4164, %v4628
    %v4630 = vand.u32 %v4629, 4294901760
    %v4631 = vsub.f32 %v4629, %v4630
    %v4632 = vand.u32 %v4631, 4294901760
    %4633 = vmatprep.subr.mxu0 %v4632
    %v4634 = vand.u32 %v4163, 4294901760
    %v4635 = vsub.f32 %v4163, %v4634
    %v4636 = vand.u32 %v4635, 4294901760
    %v4637 = vsub.f32 %v4635, %v4636
    %v4638 = vand.u32 %v4637, 4294901760
    %4639 = vmatpush2.msra.mxu0 %v4638
    %v4640 = vand.u32 %v4162, 4294901760
    %v4641 = vsub.f32 %v4162, %v4640
    %v4642 = vand.u32 %v4641, 4294901760
    %v4643 = vsub.f32 %v4641, %v4642
    %v4644 = vand.u32 %v4643, 4294901760
    %4645 = vmatprep.subr.mxu0 %v4644
    %v4646 = vand.u32 %v4161, 4294901760
    %v4647 = vsub.f32 %v4161, %v4646
    %v4648 = vand.u32 %v4647, 4294901760
    %v4649 = vsub.f32 %v4647, %v4648
    %v4650 = vand.u32 %v4649, 4294901760
    %4651 = vmatpush2.msra.mxu0 %v4650
    %v4652 = vand.u32 %v4160, 4294901760
    %v4653 = vsub.f32 %v4160, %v4652
    %v4654 = vand.u32 %v4653, 4294901760
    %v4655 = vsub.f32 %v4653, %v4654
    %v4656 = vand.u32 %v4655, 4294901760
    %4657 = vmatprep.subr.mxu0 %v4656
    %v4658 = vand.u32 %v4159, 4294901760
    %v4659 = vsub.f32 %v4159, %v4658
    %v4660 = vand.u32 %v4659, 4294901760
    %v4661 = vsub.f32 %v4659, %v4660
    %v4662 = vand.u32 %v4661, 4294901760
    %4663 = vmatpush2.msra.mxu0 %v4662
    %v4664 = vand.u32 %v4158, 4294901760
    %v4665 = vsub.f32 %v4158, %v4664
    %v4666 = vand.u32 %v4665, 4294901760
    %v4667 = vsub.f32 %v4665, %v4666
    %v4668 = vand.u32 %v4667, 4294901760
    %4669 = vmatprep.subr.mxu0 %v4668
    %v4670 = vand.u32 %v4157, 4294901760
    %v4671 = vsub.f32 %v4157, %v4670
    %v4672 = vand.u32 %v4671, 4294901760
    %v4673 = vsub.f32 %v4671, %v4672
    %v4674 = vand.u32 %v4673, 4294901760
    %4675 = vmatpush2.msra.mxu0 %v4674
    %v4676 = vand.u32 %v4156, 4294901760
    %v4677 = vsub.f32 %v4156, %v4676
    %v4678 = vand.u32 %v4677, 4294901760
    %v4679 = vsub.f32 %v4677, %v4678
    %v4680 = vand.u32 %v4679, 4294901760
    %4681 = vmatprep.subr.mxu0 %v4680
    %v4682 = vand.u32 %v4155, 4294901760
    %v4683 = vsub.f32 %v4155, %v4682
    %v4684 = vand.u32 %v4683, 4294901760
    %v4685 = vsub.f32 %v4683, %v4684
    %v4686 = vand.u32 %v4685, 4294901760
    %4687 = vmatpush2.msra.mxu0 %v4686
    %v4688 = vand.u32 %v4154, 4294901760
    %v4689 = vsub.f32 %v4154, %v4688
    %v4690 = vand.u32 %v4689, 4294901760
    %v4691 = vsub.f32 %v4689, %v4690
    %v4692 = vand.u32 %v4691, 4294901760
    %4693 = vmatprep.subr.mxu0 %v4692
    %v4694 = vand.u32 %v4153, 4294901760
    %v4695 = vsub.f32 %v4153, %v4694
    %v4696 = vand.u32 %v4695, 4294901760
    %v4697 = vsub.f32 %v4695, %v4696
    %v4698 = vand.u32 %v4697, 4294901760
    %4699 = vmatpush2.msra.mxu0 %v4698
    %v4700 = vand.u32 %v4152, 4294901760
    %v4701 = vsub.f32 %v4152, %v4700
    %v4702 = vand.u32 %v4701, 4294901760
    %v4703 = vsub.f32 %v4701, %v4702
    %v4704 = vand.u32 %v4703, 4294901760
    %4705 = vmatprep.subr.mxu0 %v4704
    %v4706 = vand.u32 %v4151, 4294901760
    %v4707 = vsub.f32 %v4151, %v4706
    %v4708 = vand.u32 %v4707, 4294901760
    %v4709 = vsub.f32 %v4707, %v4708
    %v4710 = vand.u32 %v4709, 4294901760
    %4711 = vmatpush2.msra.mxu0 %v4710
    %v4712 = vand.u32 %v4116, 4294901760
    %4713 = vmatprep.mubr.f32.mxu0 %v4712
    %v4714 = vand.u32 %v4114, 4294901760
    %4715 = vmatmul.mubr.f32.gmra.mxu0 %v4714
    %v4716 = vpop.f32.mrf.mxu0
    %v4717 = vadd.f32 %v4324, %v4716
    %v4718 = vpop.f32.mrf.mxu0
    %v4719 = vadd.f32 %v4326, %v4718
    %4720 = vdwg.mxu0
    %v4721 = vand.u32 %v4150, 4294901760
    %v4722 = vsub.f32 %v4150, %v4721
    %4723 = vmatprep.subr.mxu0 %v4722
    %v4724 = vand.u32 %v4149, 4294901760
    %v4725 = vsub.f32 %v4149, %v4724
    %4726 = vmatpush1.msra.mxu0 %v4725
    %v4727 = vand.u32 %v4148, 4294901760
    %v4728 = vsub.f32 %v4148, %v4727
    %4729 = vmatprep.subr.mxu0 %v4728
    %v4730 = vand.u32 %v4147, 4294901760
    %v4731 = vsub.f32 %v4147, %v4730
    %4732 = vmatpush1.msra.mxu0 %v4731
    %v4733 = vand.u32 %v4146, 4294901760
    %v4734 = vsub.f32 %v4146, %v4733
    %4735 = vmatprep.subr.mxu0 %v4734
    %v4736 = vand.u32 %v4145, 4294901760
    %v4737 = vsub.f32 %v4145, %v4736
    %4738 = vmatpush1.msra.mxu0 %v4737
    %v4739 = vand.u32 %v4144, 4294901760
    %v4740 = vsub.f32 %v4144, %v4739
    %4741 = vmatprep.subr.mxu0 %v4740
    %v4742 = vand.u32 %v4143, 4294901760
    %v4743 = vsub.f32 %v4143, %v4742
    %4744 = vmatpush1.msra.mxu0 %v4743
    %v4745 = vand.u32 %v4142, 4294901760
    %v4746 = vsub.f32 %v4142, %v4745
    %4747 = vmatprep.subr.mxu0 %v4746
    %v4748 = vand.u32 %v4141, 4294901760
    %v4749 = vsub.f32 %v4141, %v4748
    %4750 = vmatpush1.msra.mxu0 %v4749
    %v4751 = vand.u32 %v4140, 4294901760
    %v4752 = vsub.f32 %v4140, %v4751
    %4753 = vmatprep.subr.mxu0 %v4752
    %v4754 = vand.u32 %v4139, 4294901760
    %v4755 = vsub.f32 %v4139, %v4754
    %4756 = vmatpush1.msra.mxu0 %v4755
    %v4757 = vand.u32 %v4138, 4294901760
    %v4758 = vsub.f32 %v4138, %v4757
    %4759 = vmatprep.subr.mxu0 %v4758
    %v4760 = vand.u32 %v4137, 4294901760
    %v4761 = vsub.f32 %v4137, %v4760
    %4762 = vmatpush1.msra.mxu0 %v4761
    %v4763 = vand.u32 %v4136, 4294901760
    %v4764 = vsub.f32 %v4136, %v4763
    %4765 = vmatprep.subr.mxu0 %v4764
    %v4766 = vand.u32 %v4135, 4294901760
    %v4767 = vsub.f32 %v4135, %v4766
    %4768 = vmatpush1.msra.mxu0 %v4767
    %v4769 = vand.u32 %v4134, 4294901760
    %v4770 = vsub.f32 %v4134, %v4769
    %4771 = vmatprep.subr.mxu0 %v4770
    %v4772 = vand.u32 %v4133, 4294901760
    %v4773 = vsub.f32 %v4133, %v4772
    %4774 = vmatpush1.msra.mxu0 %v4773
    %v4775 = vand.u32 %v4132, 4294901760
    %v4776 = vsub.f32 %v4132, %v4775
    %4777 = vmatprep.subr.mxu0 %v4776
    %v4778 = vand.u32 %v4131, 4294901760
    %v4779 = vsub.f32 %v4131, %v4778
    %4780 = vmatpush1.msra.mxu0 %v4779
    %v4781 = vand.u32 %v4130, 4294901760
    %v4782 = vsub.f32 %v4130, %v4781
    %4783 = vmatprep.subr.mxu0 %v4782
    %v4784 = vand.u32 %v4129, 4294901760
    %v4785 = vsub.f32 %v4129, %v4784
    %4786 = vmatpush1.msra.mxu0 %v4785
    %v4787 = vand.u32 %v4128, 4294901760
    %v4788 = vsub.f32 %v4128, %v4787
    %4789 = vmatprep.subr.mxu0 %v4788
    %v4790 = vand.u32 %v4127, 4294901760
    %v4791 = vsub.f32 %v4127, %v4790
    %4792 = vmatpush1.msra.mxu0 %v4791
    %v4793 = vand.u32 %v4126, 4294901760
    %v4794 = vsub.f32 %v4126, %v4793
    %4795 = vmatprep.subr.mxu0 %v4794
    %v4796 = vand.u32 %v4125, 4294901760
    %v4797 = vsub.f32 %v4125, %v4796
    %4798 = vmatpush1.msra.mxu0 %v4797
    %v4799 = vand.u32 %v4124, 4294901760
    %v4800 = vsub.f32 %v4124, %v4799
    %4801 = vmatprep.subr.mxu0 %v4800
    %v4802 = vand.u32 %v4123, 4294901760
    %v4803 = vsub.f32 %v4123, %v4802
    %4804 = vmatpush1.msra.mxu0 %v4803
    %v4805 = vand.u32 %v4122, 4294901760
    %v4806 = vsub.f32 %v4122, %v4805
    %4807 = vmatprep.subr.mxu0 %v4806
    %v4808 = vand.u32 %v4121, 4294901760
    %v4809 = vsub.f32 %v4121, %v4808
    %4810 = vmatpush1.msra.mxu0 %v4809
    %v4811 = vand.u32 %v4120, 4294901760
    %v4812 = vsub.f32 %v4120, %v4811
    %4813 = vmatprep.subr.mxu0 %v4812
    %v4814 = vand.u32 %v4119, 4294901760
    %v4815 = vsub.f32 %v4119, %v4814
    %4816 = vmatpush1.msra.mxu0 %v4815
    %v4817 = vand.u32 %v4182, 4294901760
    %v4818 = vsub.f32 %v4182, %v4817
    %4819 = vmatprep.subr.mxu0 %v4818
    %v4820 = vand.u32 %v4181, 4294901760
    %v4821 = vsub.f32 %v4181, %v4820
    %4822 = vmatpush2.msra.mxu0 %v4821
    %v4823 = vand.u32 %v4180, 4294901760
    %v4824 = vsub.f32 %v4180, %v4823
    %4825 = vmatprep.subr.mxu0 %v4824
    %v4826 = vand.u32 %v4179, 4294901760
    %v4827 = vsub.f32 %v4179, %v4826
    %4828 = vmatpush2.msra.mxu0 %v4827
    %v4829 = vand.u32 %v4178, 4294901760
    %v4830 = vsub.f32 %v4178, %v4829
    %4831 = vmatprep.subr.mxu0 %v4830
    %v4832 = vand.u32 %v4177, 4294901760
    %v4833 = vsub.f32 %v4177, %v4832
    %4834 = vmatpush2.msra.mxu0 %v4833
    %v4835 = vand.u32 %v4176, 4294901760
    %v4836 = vsub.f32 %v4176, %v4835
    %4837 = vmatprep.subr.mxu0 %v4836
    %v4838 = vand.u32 %v4175, 4294901760
    %v4839 = vsub.f32 %v4175, %v4838
    %4840 = vmatpush2.msra.mxu0 %v4839
    %v4841 = vand.u32 %v4174, 4294901760
    %v4842 = vsub.f32 %v4174, %v4841
    %4843 = vmatprep.subr.mxu0 %v4842
    %v4844 = vand.u32 %v4173, 4294901760
    %v4845 = vsub.f32 %v4173, %v4844
    %4846 = vmatpush2.msra.mxu0 %v4845
    %v4847 = vand.u32 %v4172, 4294901760
    %v4848 = vsub.f32 %v4172, %v4847
    %4849 = vmatprep.subr.mxu0 %v4848
    %v4850 = vand.u32 %v4171, 4294901760
    %v4851 = vsub.f32 %v4171, %v4850
    %4852 = vmatpush2.msra.mxu0 %v4851
    %v4853 = vand.u32 %v4170, 4294901760
    %v4854 = vsub.f32 %v4170, %v4853
    %4855 = vmatprep.subr.mxu0 %v4854
    %v4856 = vand.u32 %v4169, 4294901760
    %v4857 = vsub.f32 %v4169, %v4856
    %4858 = vmatpush2.msra.mxu0 %v4857
    %v4859 = vand.u32 %v4168, 4294901760
    %v4860 = vsub.f32 %v4168, %v4859
    %4861 = vmatprep.subr.mxu0 %v4860
    %v4862 = vand.u32 %v4167, 4294901760
    %v4863 = vsub.f32 %v4167, %v4862
    %4864 = vmatpush2.msra.mxu0 %v4863
    %v4865 = vand.u32 %v4166, 4294901760
    %v4866 = vsub.f32 %v4166, %v4865
    %4867 = vmatprep.subr.mxu0 %v4866
    %v4868 = vand.u32 %v4165, 4294901760
    %v4869 = vsub.f32 %v4165, %v4868
    %4870 = vmatpush2.msra.mxu0 %v4869
    %v4871 = vand.u32 %v4164, 4294901760
    %v4872 = vsub.f32 %v4164, %v4871
    %4873 = vmatprep.subr.mxu0 %v4872
    %v4874 = vand.u32 %v4163, 4294901760
    %v4875 = vsub.f32 %v4163, %v4874
    %4876 = vmatpush2.msra.mxu0 %v4875
    %v4877 = vand.u32 %v4162, 4294901760
    %v4878 = vsub.f32 %v4162, %v4877
    %4879 = vmatprep.subr.mxu0 %v4878
    %v4880 = vand.u32 %v4161, 4294901760
    %v4881 = vsub.f32 %v4161, %v4880
    %4882 = vmatpush2.msra.mxu0 %v4881
    %v4883 = vand.u32 %v4160, 4294901760
    %v4884 = vsub.f32 %v4160, %v4883
    %4885 = vmatprep.subr.mxu0 %v4884
    %v4886 = vand.u32 %v4159, 4294901760
    %v4887 = vsub.f32 %v4159, %v4886
    %4888 = vmatpush2.msra.mxu0 %v4887
    %v4889 = vand.u32 %v4158, 4294901760
    %v4890 = vsub.f32 %v4158, %v4889
    %4891 = vmatprep.subr.mxu0 %v4890
    %v4892 = vand.u32 %v4157, 4294901760
    %v4893 = vsub.f32 %v4157, %v4892
    %4894 = vmatpush2.msra.mxu0 %v4893
    %v4895 = vand.u32 %v4156, 4294901760
    %v4896 = vsub.f32 %v4156, %v4895
    %4897 = vmatprep.subr.mxu0 %v4896
    %v4898 = vand.u32 %v4155, 4294901760
    %v4899 = vsub.f32 %v4155, %v4898
    %4900 = vmatpush2.msra.mxu0 %v4899
    %v4901 = vand.u32 %v4154, 4294901760
    %v4902 = vsub.f32 %v4154, %v4901
    %4903 = vmatprep.subr.mxu0 %v4902
    %v4904 = vand.u32 %v4153, 4294901760
    %v4905 = vsub.f32 %v4153, %v4904
    %4906 = vmatpush2.msra.mxu0 %v4905
    %v4907 = vand.u32 %v4152, 4294901760
    %v4908 = vsub.f32 %v4152, %v4907
    %4909 = vmatprep.subr.mxu0 %v4908
    %v4910 = vand.u32 %v4151, 4294901760
    %v4911 = vsub.f32 %v4151, %v4910
    %4912 = vmatpush2.msra.mxu0 %v4911
    %v4913 = vand.u32 %v4116, 4294901760
    %v4914 = vsub.f32 %v4116, %v4913
    %4915 = vmatprep.mubr.f32.mxu0 %v4914
    %v4916 = vand.u32 %v4114, 4294901760
    %v4917 = vsub.f32 %v4114, %v4916
    %4918 = vmatmul.mubr.f32.gmra.mxu0 %v4917
    %v4919 = vpop.f32.mrf.mxu0
    %v4920 = vadd.f32 %v4717, %v4919
    %v4921 = vpop.f32.mrf.mxu0
    %v4922 = vadd.f32 %v4719, %v4921
    %4923 = vdwg.mxu0
    %v4924 = vand.u32 %v4150, 4294901760
    %4925 = vmatprep.subr.mxu0 %v4924
    %v4926 = vand.u32 %v4149, 4294901760
    %4927 = vmatpush1.msra.mxu0 %v4926
    %v4928 = vand.u32 %v4148, 4294901760
    %4929 = vmatprep.subr.mxu0 %v4928
    %v4930 = vand.u32 %v4147, 4294901760
    %4931 = vmatpush1.msra.mxu0 %v4930
    %v4932 = vand.u32 %v4146, 4294901760
    %4933 = vmatprep.subr.mxu0 %v4932
    %v4934 = vand.u32 %v4145, 4294901760
    %4935 = vmatpush1.msra.mxu0 %v4934
    %v4936 = vand.u32 %v4144, 4294901760
    %4937 = vmatprep.subr.mxu0 %v4936
    %v4938 = vand.u32 %v4143, 4294901760
    %4939 = vmatpush1.msra.mxu0 %v4938
    %v4940 = vand.u32 %v4142, 4294901760
    %4941 = vmatprep.subr.mxu0 %v4940
    %v4942 = vand.u32 %v4141, 4294901760
    %4943 = vmatpush1.msra.mxu0 %v4942
    %v4944 = vand.u32 %v4140, 4294901760
    %4945 = vmatprep.subr.mxu0 %v4944
    %v4946 = vand.u32 %v4139, 4294901760
    %4947 = vmatpush1.msra.mxu0 %v4946
    %v4948 = vand.u32 %v4138, 4294901760
    %4949 = vmatprep.subr.mxu0 %v4948
    %v4950 = vand.u32 %v4137, 4294901760
    %4951 = vmatpush1.msra.mxu0 %v4950
    %v4952 = vand.u32 %v4136, 4294901760
    %4953 = vmatprep.subr.mxu0 %v4952
    %v4954 = vand.u32 %v4135, 4294901760
    %4955 = vmatpush1.msra.mxu0 %v4954
    %v4956 = vand.u32 %v4134, 4294901760
    %4957 = vmatprep.subr.mxu0 %v4956
    %v4958 = vand.u32 %v4133, 4294901760
    %4959 = vmatpush1.msra.mxu0 %v4958
    %v4960 = vand.u32 %v4132, 4294901760
    %4961 = vmatprep.subr.mxu0 %v4960
    %v4962 = vand.u32 %v4131, 4294901760
    %4963 = vmatpush1.msra.mxu0 %v4962
    %v4964 = vand.u32 %v4130, 4294901760
    %4965 = vmatprep.subr.mxu0 %v4964
    %v4966 = vand.u32 %v4129, 4294901760
    %4967 = vmatpush1.msra.mxu0 %v4966
    %v4968 = vand.u32 %v4128, 4294901760
    %4969 = vmatprep.subr.mxu0 %v4968
    %v4970 = vand.u32 %v4127, 4294901760
    %4971 = vmatpush1.msra.mxu0 %v4970
    %v4972 = vand.u32 %v4126, 4294901760
    %4973 = vmatprep.subr.mxu0 %v4972
    %v4974 = vand.u32 %v4125, 4294901760
    %4975 = vmatpush1.msra.mxu0 %v4974
    %v4976 = vand.u32 %v4124, 4294901760
    %4977 = vmatprep.subr.mxu0 %v4976
    %v4978 = vand.u32 %v4123, 4294901760
    %4979 = vmatpush1.msra.mxu0 %v4978
    %v4980 = vand.u32 %v4122, 4294901760
    %4981 = vmatprep.subr.mxu0 %v4980
    %v4982 = vand.u32 %v4121, 4294901760
    %4983 = vmatpush1.msra.mxu0 %v4982
    %v4984 = vand.u32 %v4120, 4294901760
    %4985 = vmatprep.subr.mxu0 %v4984
    %v4986 = vand.u32 %v4119, 4294901760
    %4987 = vmatpush1.msra.mxu0 %v4986
    %v4988 = vand.u32 %v4182, 4294901760
    %4989 = vmatprep.subr.mxu0 %v4988
    %v4990 = vand.u32 %v4181, 4294901760
    %4991 = vmatpush2.msra.mxu0 %v4990
    %v4992 = vand.u32 %v4180, 4294901760
    %4993 = vmatprep.subr.mxu0 %v4992
    %v4994 = vand.u32 %v4179, 4294901760
    %4995 = vmatpush2.msra.mxu0 %v4994
    %v4996 = vand.u32 %v4178, 4294901760
    %4997 = vmatprep.subr.mxu0 %v4996
    %v4998 = vand.u32 %v4177, 4294901760
    %4999 = vmatpush2.msra.mxu0 %v4998
    %v5000 = vand.u32 %v4176, 4294901760
    %5001 = vmatprep.subr.mxu0 %v5000
    %v5002 = vand.u32 %v4175, 4294901760
    %5003 = vmatpush2.msra.mxu0 %v5002
    %v5004 = vand.u32 %v4174, 4294901760
    %5005 = vmatprep.subr.mxu0 %v5004
    %v5006 = vand.u32 %v4173, 4294901760
    %5007 = vmatpush2.msra.mxu0 %v5006
    %v5008 = vand.u32 %v4172, 4294901760
    %5009 = vmatprep.subr.mxu0 %v5008
    %v5010 = vand.u32 %v4171, 4294901760
    %5011 = vmatpush2.msra.mxu0 %v5010
    %v5012 = vand.u32 %v4170, 4294901760
    %5013 = vmatprep.subr.mxu0 %v5012
    %v5014 = vand.u32 %v4169, 4294901760
    %5015 = vmatpush2.msra.mxu0 %v5014
    %v5016 = vand.u32 %v4168, 4294901760
    %5017 = vmatprep.subr.mxu0 %v5016
    %v5018 = vand.u32 %v4167, 4294901760
    %5019 = vmatpush2.msra.mxu0 %v5018
    %v5020 = vand.u32 %v4166, 4294901760
    %5021 = vmatprep.subr.mxu0 %v5020
    %v5022 = vand.u32 %v4165, 4294901760
    %5023 = vmatpush2.msra.mxu0 %v5022
    %v5024 = vand.u32 %v4164, 4294901760
    %5025 = vmatprep.subr.mxu0 %v5024
    %v5026 = vand.u32 %v4163, 4294901760
    %5027 = vmatpush2.msra.mxu0 %v5026
    %v5028 = vand.u32 %v4162, 4294901760
    %5029 = vmatprep.subr.mxu0 %v5028
    %v5030 = vand.u32 %v4161, 4294901760
    %5031 = vmatpush2.msra.mxu0 %v5030
    %v5032 = vand.u32 %v4160, 4294901760
    %5033 = vmatprep.subr.mxu0 %v5032
    %v5034 = vand.u32 %v4159, 4294901760
    %5035 = vmatpush2.msra.mxu0 %v5034
    %v5036 = vand.u32 %v4158, 4294901760
    %5037 = vmatprep.subr.mxu0 %v5036
    %v5038 = vand.u32 %v4157, 4294901760
    %5039 = vmatpush2.msra.mxu0 %v5038
    %v5040 = vand.u32 %v4156, 4294901760
    %5041 = vmatprep.subr.mxu0 %v5040
    %v5042 = vand.u32 %v4155, 4294901760
    %5043 = vmatpush2.msra.mxu0 %v5042
    %v5044 = vand.u32 %v4154, 4294901760
    %5045 = vmatprep.subr.mxu0 %v5044
    %v5046 = vand.u32 %v4153, 4294901760
    %5047 = vmatpush2.msra.mxu0 %v5046
    %v5048 = vand.u32 %v4152, 4294901760
    %5049 = vmatprep.subr.mxu0 %v5048
    %v5050 = vand.u32 %v4151, 4294901760
    %5051 = vmatpush2.msra.mxu0 %v5050
    %v5052 = vand.u32 %v4116, 4294901760
    %v5053 = vsub.f32 %v4116, %v5052
    %v5054 = vand.u32 %v5053, 4294901760
    %5055 = vmatprep.mubr.f32.mxu0 %v5054
    %v5056 = vand.u32 %v4114, 4294901760
    %v5057 = vsub.f32 %v4114, %v5056
    %v5058 = vand.u32 %v5057, 4294901760
    %5059 = vmatmul.mubr.f32.gmra.mxu0 %v5058
    %v5060 = vpop.f32.mrf.mxu0
    %v5061 = vadd.f32 %v4920, %v5060
    %v5062 = vpop.f32.mrf.mxu0
    %v5063 = vadd.f32 %v4922, %v5062
    %5064 = vdwg.mxu0
    %v5065 = vand.u32 %v4150, 4294901760
    %v5066 = vsub.f32 %v4150, %v5065
    %v5067 = vand.u32 %v5066, 4294901760
    %5068 = vmatprep.subr.mxu0 %v5067
    %v5069 = vand.u32 %v4149, 4294901760
    %v5070 = vsub.f32 %v4149, %v5069
    %v5071 = vand.u32 %v5070, 4294901760
    %5072 = vmatpush1.msra.mxu0 %v5071
    %v5073 = vand.u32 %v4148, 4294901760
    %v5074 = vsub.f32 %v4148, %v5073
    %v5075 = vand.u32 %v5074, 4294901760
    %5076 = vmatprep.subr.mxu0 %v5075
    %v5077 = vand.u32 %v4147, 4294901760
    %v5078 = vsub.f32 %v4147, %v5077
    %v5079 = vand.u32 %v5078, 4294901760
    %5080 = vmatpush1.msra.mxu0 %v5079
    %v5081 = vand.u32 %v4146, 4294901760
    %v5082 = vsub.f32 %v4146, %v5081
    %v5083 = vand.u32 %v5082, 4294901760
    %5084 = vmatprep.subr.mxu0 %v5083
    %v5085 = vand.u32 %v4145, 4294901760
    %v5086 = vsub.f32 %v4145, %v5085
    %v5087 = vand.u32 %v5086, 4294901760
    %5088 = vmatpush1.msra.mxu0 %v5087
    %v5089 = vand.u32 %v4144, 4294901760
    %v5090 = vsub.f32 %v4144, %v5089
    %v5091 = vand.u32 %v5090, 4294901760
    %5092 = vmatprep.subr.mxu0 %v5091
    %v5093 = vand.u32 %v4143, 4294901760
    %v5094 = vsub.f32 %v4143, %v5093
    %v5095 = vand.u32 %v5094, 4294901760
    %5096 = vmatpush1.msra.mxu0 %v5095
    %v5097 = vand.u32 %v4142, 4294901760
    %v5098 = vsub.f32 %v4142, %v5097
    %v5099 = vand.u32 %v5098, 4294901760
    %5100 = vmatprep.subr.mxu0 %v5099
    %v5101 = vand.u32 %v4141, 4294901760
    %v5102 = vsub.f32 %v4141, %v5101
    %v5103 = vand.u32 %v5102, 4294901760
    %5104 = vmatpush1.msra.mxu0 %v5103
    %v5105 = vand.u32 %v4140, 4294901760
    %v5106 = vsub.f32 %v4140, %v5105
    %v5107 = vand.u32 %v5106, 4294901760
    %5108 = vmatprep.subr.mxu0 %v5107
    %v5109 = vand.u32 %v4139, 4294901760
    %v5110 = vsub.f32 %v4139, %v5109
    %v5111 = vand.u32 %v5110, 4294901760
    %5112 = vmatpush1.msra.mxu0 %v5111
    %v5113 = vand.u32 %v4138, 4294901760
    %v5114 = vsub.f32 %v4138, %v5113
    %v5115 = vand.u32 %v5114, 4294901760
    %5116 = vmatprep.subr.mxu0 %v5115
    %v5117 = vand.u32 %v4137, 4294901760
    %v5118 = vsub.f32 %v4137, %v5117
    %v5119 = vand.u32 %v5118, 4294901760
    %5120 = vmatpush1.msra.mxu0 %v5119
    %v5121 = vand.u32 %v4136, 4294901760
    %v5122 = vsub.f32 %v4136, %v5121
    %v5123 = vand.u32 %v5122, 4294901760
    %5124 = vmatprep.subr.mxu0 %v5123
    %v5125 = vand.u32 %v4135, 4294901760
    %v5126 = vsub.f32 %v4135, %v5125
    %v5127 = vand.u32 %v5126, 4294901760
    %5128 = vmatpush1.msra.mxu0 %v5127
    %v5129 = vand.u32 %v4134, 4294901760
    %v5130 = vsub.f32 %v4134, %v5129
    %v5131 = vand.u32 %v5130, 4294901760
    %5132 = vmatprep.subr.mxu0 %v5131
    %v5133 = vand.u32 %v4133, 4294901760
    %v5134 = vsub.f32 %v4133, %v5133
    %v5135 = vand.u32 %v5134, 4294901760
    %5136 = vmatpush1.msra.mxu0 %v5135
    %v5137 = vand.u32 %v4132, 4294901760
    %v5138 = vsub.f32 %v4132, %v5137
    %v5139 = vand.u32 %v5138, 4294901760
    %5140 = vmatprep.subr.mxu0 %v5139
    %v5141 = vand.u32 %v4131, 4294901760
    %v5142 = vsub.f32 %v4131, %v5141
    %v5143 = vand.u32 %v5142, 4294901760
    %5144 = vmatpush1.msra.mxu0 %v5143
    %v5145 = vand.u32 %v4130, 4294901760
    %v5146 = vsub.f32 %v4130, %v5145
    %v5147 = vand.u32 %v5146, 4294901760
    %5148 = vmatprep.subr.mxu0 %v5147
    %v5149 = vand.u32 %v4129, 4294901760
    %v5150 = vsub.f32 %v4129, %v5149
    %v5151 = vand.u32 %v5150, 4294901760
    %5152 = vmatpush1.msra.mxu0 %v5151
    %v5153 = vand.u32 %v4128, 4294901760
    %v5154 = vsub.f32 %v4128, %v5153
    %v5155 = vand.u32 %v5154, 4294901760
    %5156 = vmatprep.subr.mxu0 %v5155
    %v5157 = vand.u32 %v4127, 4294901760
    %v5158 = vsub.f32 %v4127, %v5157
    %v5159 = vand.u32 %v5158, 4294901760
    %5160 = vmatpush1.msra.mxu0 %v5159
    %v5161 = vand.u32 %v4126, 4294901760
    %v5162 = vsub.f32 %v4126, %v5161
    %v5163 = vand.u32 %v5162, 4294901760
    %5164 = vmatprep.subr.mxu0 %v5163
    %v5165 = vand.u32 %v4125, 4294901760
    %v5166 = vsub.f32 %v4125, %v5165
    %v5167 = vand.u32 %v5166, 4294901760
    %5168 = vmatpush1.msra.mxu0 %v5167
    %v5169 = vand.u32 %v4124, 4294901760
    %v5170 = vsub.f32 %v4124, %v5169
    %v5171 = vand.u32 %v5170, 4294901760
    %5172 = vmatprep.subr.mxu0 %v5171
    %v5173 = vand.u32 %v4123, 4294901760
    %v5174 = vsub.f32 %v4123, %v5173
    %v5175 = vand.u32 %v5174, 4294901760
    %5176 = vmatpush1.msra.mxu0 %v5175
    %v5177 = vand.u32 %v4122, 4294901760
    %v5178 = vsub.f32 %v4122, %v5177
    %v5179 = vand.u32 %v5178, 4294901760
    %5180 = vmatprep.subr.mxu0 %v5179
    %v5181 = vand.u32 %v4121, 4294901760
    %v5182 = vsub.f32 %v4121, %v5181
    %v5183 = vand.u32 %v5182, 4294901760
    %5184 = vmatpush1.msra.mxu0 %v5183
    %v5185 = vand.u32 %v4120, 4294901760
    %v5186 = vsub.f32 %v4120, %v5185
    %v5187 = vand.u32 %v5186, 4294901760
    %5188 = vmatprep.subr.mxu0 %v5187
    %v5189 = vand.u32 %v4119, 4294901760
    %v5190 = vsub.f32 %v4119, %v5189
    %v5191 = vand.u32 %v5190, 4294901760
    %5192 = vmatpush1.msra.mxu0 %v5191
    %v5193 = vand.u32 %v4182, 4294901760
    %v5194 = vsub.f32 %v4182, %v5193
    %v5195 = vand.u32 %v5194, 4294901760
    %5196 = vmatprep.subr.mxu0 %v5195
    %v5197 = vand.u32 %v4181, 4294901760
    %v5198 = vsub.f32 %v4181, %v5197
    %v5199 = vand.u32 %v5198, 4294901760
    %5200 = vmatpush2.msra.mxu0 %v5199
    %v5201 = vand.u32 %v4180, 4294901760
    %v5202 = vsub.f32 %v4180, %v5201
    %v5203 = vand.u32 %v5202, 4294901760
    %5204 = vmatprep.subr.mxu0 %v5203
    %v5205 = vand.u32 %v4179, 4294901760
    %v5206 = vsub.f32 %v4179, %v5205
    %v5207 = vand.u32 %v5206, 4294901760
    %5208 = vmatpush2.msra.mxu0 %v5207
    %v5209 = vand.u32 %v4178, 4294901760
    %v5210 = vsub.f32 %v4178, %v5209
    %v5211 = vand.u32 %v5210, 4294901760
    %5212 = vmatprep.subr.mxu0 %v5211
    %v5213 = vand.u32 %v4177, 4294901760
    %v5214 = vsub.f32 %v4177, %v5213
    %v5215 = vand.u32 %v5214, 4294901760
    %5216 = vmatpush2.msra.mxu0 %v5215
    %v5217 = vand.u32 %v4176, 4294901760
    %v5218 = vsub.f32 %v4176, %v5217
    %v5219 = vand.u32 %v5218, 4294901760
    %5220 = vmatprep.subr.mxu0 %v5219
    %v5221 = vand.u32 %v4175, 4294901760
    %v5222 = vsub.f32 %v4175, %v5221
    %v5223 = vand.u32 %v5222, 4294901760
    %5224 = vmatpush2.msra.mxu0 %v5223
    %v5225 = vand.u32 %v4174, 4294901760
    %v5226 = vsub.f32 %v4174, %v5225
    %v5227 = vand.u32 %v5226, 4294901760
    %5228 = vmatprep.subr.mxu0 %v5227
    %v5229 = vand.u32 %v4173, 4294901760
    %v5230 = vsub.f32 %v4173, %v5229
    %v5231 = vand.u32 %v5230, 4294901760
    %5232 = vmatpush2.msra.mxu0 %v5231
    %v5233 = vand.u32 %v4172, 4294901760
    %v5234 = vsub.f32 %v4172, %v5233
    %v5235 = vand.u32 %v5234, 4294901760
    %5236 = vmatprep.subr.mxu0 %v5235
    %v5237 = vand.u32 %v4171, 4294901760
    %v5238 = vsub.f32 %v4171, %v5237
    %v5239 = vand.u32 %v5238, 4294901760
    %5240 = vmatpush2.msra.mxu0 %v5239
    %v5241 = vand.u32 %v4170, 4294901760
    %v5242 = vsub.f32 %v4170, %v5241
    %v5243 = vand.u32 %v5242, 4294901760
    %5244 = vmatprep.subr.mxu0 %v5243
    %v5245 = vand.u32 %v4169, 4294901760
    %v5246 = vsub.f32 %v4169, %v5245
    %v5247 = vand.u32 %v5246, 4294901760
    %5248 = vmatpush2.msra.mxu0 %v5247
    %v5249 = vand.u32 %v4168, 4294901760
    %v5250 = vsub.f32 %v4168, %v5249
    %v5251 = vand.u32 %v5250, 4294901760
    %5252 = vmatprep.subr.mxu0 %v5251
    %v5253 = vand.u32 %v4167, 4294901760
    %v5254 = vsub.f32 %v4167, %v5253
    %v5255 = vand.u32 %v5254, 4294901760
    %5256 = vmatpush2.msra.mxu0 %v5255
    %v5257 = vand.u32 %v4166, 4294901760
    %v5258 = vsub.f32 %v4166, %v5257
    %v5259 = vand.u32 %v5258, 4294901760
    %5260 = vmatprep.subr.mxu0 %v5259
    %v5261 = vand.u32 %v4165, 4294901760
    %v5262 = vsub.f32 %v4165, %v5261
    %v5263 = vand.u32 %v5262, 4294901760
    %5264 = vmatpush2.msra.mxu0 %v5263
    %v5265 = vand.u32 %v4164, 4294901760
    %v5266 = vsub.f32 %v4164, %v5265
    %v5267 = vand.u32 %v5266, 4294901760
    %5268 = vmatprep.subr.mxu0 %v5267
    %v5269 = vand.u32 %v4163, 4294901760
    %v5270 = vsub.f32 %v4163, %v5269
    %v5271 = vand.u32 %v5270, 4294901760
    %5272 = vmatpush2.msra.mxu0 %v5271
    %v5273 = vand.u32 %v4162, 4294901760
    %v5274 = vsub.f32 %v4162, %v5273
    %v5275 = vand.u32 %v5274, 4294901760
    %5276 = vmatprep.subr.mxu0 %v5275
    %v5277 = vand.u32 %v4161, 4294901760
    %v5278 = vsub.f32 %v4161, %v5277
    %v5279 = vand.u32 %v5278, 4294901760
    %5280 = vmatpush2.msra.mxu0 %v5279
    %v5281 = vand.u32 %v4160, 4294901760
    %v5282 = vsub.f32 %v4160, %v5281
    %v5283 = vand.u32 %v5282, 4294901760
    %5284 = vmatprep.subr.mxu0 %v5283
    %v5285 = vand.u32 %v4159, 4294901760
    %v5286 = vsub.f32 %v4159, %v5285
    %v5287 = vand.u32 %v5286, 4294901760
    %5288 = vmatpush2.msra.mxu0 %v5287
    %v5289 = vand.u32 %v4158, 4294901760
    %v5290 = vsub.f32 %v4158, %v5289
    %v5291 = vand.u32 %v5290, 4294901760
    %5292 = vmatprep.subr.mxu0 %v5291
    %v5293 = vand.u32 %v4157, 4294901760
    %v5294 = vsub.f32 %v4157, %v5293
    %v5295 = vand.u32 %v5294, 4294901760
    %5296 = vmatpush2.msra.mxu0 %v5295
    %v5297 = vand.u32 %v4156, 4294901760
    %v5298 = vsub.f32 %v4156, %v5297
    %v5299 = vand.u32 %v5298, 4294901760
    %5300 = vmatprep.subr.mxu0 %v5299
    %v5301 = vand.u32 %v4155, 4294901760
    %v5302 = vsub.f32 %v4155, %v5301
    %v5303 = vand.u32 %v5302, 4294901760
    %5304 = vmatpush2.msra.mxu0 %v5303
    %v5305 = vand.u32 %v4154, 4294901760
    %v5306 = vsub.f32 %v4154, %v5305
    %v5307 = vand.u32 %v5306, 4294901760
    %5308 = vmatprep.subr.mxu0 %v5307
    %v5309 = vand.u32 %v4153, 4294901760
    %v5310 = vsub.f32 %v4153, %v5309
    %v5311 = vand.u32 %v5310, 4294901760
    %5312 = vmatpush2.msra.mxu0 %v5311
    %v5313 = vand.u32 %v4152, 4294901760
    %v5314 = vsub.f32 %v4152, %v5313
    %v5315 = vand.u32 %v5314, 4294901760
    %5316 = vmatprep.subr.mxu0 %v5315
    %v5317 = vand.u32 %v4151, 4294901760
    %v5318 = vsub.f32 %v4151, %v5317
    %v5319 = vand.u32 %v5318, 4294901760
    %5320 = vmatpush2.msra.mxu0 %v5319
    %v5321 = vand.u32 %v4116, 4294901760
    %5322 = vmatprep.mubr.f32.mxu0 %v5321
    %v5323 = vand.u32 %v4114, 4294901760
    %5324 = vmatmul.mubr.f32.gmra.mxu0 %v5323
    %v5325 = vpop.f32.mrf.mxu0
    %v5326 = vadd.f32 %v5061, %v5325
    %v5327 = vpop.f32.mrf.mxu0
    %v5328 = vadd.f32 %v5063, %v5327
    %5329 = vdwg.mxu0
    %v5330 = vand.u32 %v4150, 4294901760
    %5331 = vmatprep.subr.mxu0 %v5330
    %v5332 = vand.u32 %v4149, 4294901760
    %5333 = vmatpush1.msra.mxu0 %v5332
    %v5334 = vand.u32 %v4148, 4294901760
    %5335 = vmatprep.subr.mxu0 %v5334
    %v5336 = vand.u32 %v4147, 4294901760
    %5337 = vmatpush1.msra.mxu0 %v5336
    %v5338 = vand.u32 %v4146, 4294901760
    %5339 = vmatprep.subr.mxu0 %v5338
    %v5340 = vand.u32 %v4145, 4294901760
    %5341 = vmatpush1.msra.mxu0 %v5340
    %v5342 = vand.u32 %v4144, 4294901760
    %5343 = vmatprep.subr.mxu0 %v5342
    %v5344 = vand.u32 %v4143, 4294901760
    %5345 = vmatpush1.msra.mxu0 %v5344
    %v5346 = vand.u32 %v4142, 4294901760
    %5347 = vmatprep.subr.mxu0 %v5346
    %v5348 = vand.u32 %v4141, 4294901760
    %5349 = vmatpush1.msra.mxu0 %v5348
    %v5350 = vand.u32 %v4140, 4294901760
    %5351 = vmatprep.subr.mxu0 %v5350
    %v5352 = vand.u32 %v4139, 4294901760
    %5353 = vmatpush1.msra.mxu0 %v5352
    %v5354 = vand.u32 %v4138, 4294901760
    %5355 = vmatprep.subr.mxu0 %v5354
    %v5356 = vand.u32 %v4137, 4294901760
    %5357 = vmatpush1.msra.mxu0 %v5356
    %v5358 = vand.u32 %v4136, 4294901760
    %5359 = vmatprep.subr.mxu0 %v5358
    %v5360 = vand.u32 %v4135, 4294901760
    %5361 = vmatpush1.msra.mxu0 %v5360
    %v5362 = vand.u32 %v4134, 4294901760
    %5363 = vmatprep.subr.mxu0 %v5362
    %v5364 = vand.u32 %v4133, 4294901760
    %5365 = vmatpush1.msra.mxu0 %v5364
    %v5366 = vand.u32 %v4132, 4294901760
    %5367 = vmatprep.subr.mxu0 %v5366
    %v5368 = vand.u32 %v4131, 4294901760
    %5369 = vmatpush1.msra.mxu0 %v5368
    %v5370 = vand.u32 %v4130, 4294901760
    %5371 = vmatprep.subr.mxu0 %v5370
    %v5372 = vand.u32 %v4129, 4294901760
    %5373 = vmatpush1.msra.mxu0 %v5372
    %v5374 = vand.u32 %v4128, 4294901760
    %5375 = vmatprep.subr.mxu0 %v5374
    %v5376 = vand.u32 %v4127, 4294901760
    %5377 = vmatpush1.msra.mxu0 %v5376
    %v5378 = vand.u32 %v4126, 4294901760
    %5379 = vmatprep.subr.mxu0 %v5378
    %v5380 = vand.u32 %v4125, 4294901760
    %5381 = vmatpush1.msra.mxu0 %v5380
    %v5382 = vand.u32 %v4124, 4294901760
    %5383 = vmatprep.subr.mxu0 %v5382
    %v5384 = vand.u32 %v4123, 4294901760
    %5385 = vmatpush1.msra.mxu0 %v5384
    %v5386 = vand.u32 %v4122, 4294901760
    %5387 = vmatprep.subr.mxu0 %v5386
    %v5388 = vand.u32 %v4121, 4294901760
    %5389 = vmatpush1.msra.mxu0 %v5388
    %v5390 = vand.u32 %v4120, 4294901760
    %5391 = vmatprep.subr.mxu0 %v5390
    %v5392 = vand.u32 %v4119, 4294901760
    %5393 = vmatpush1.msra.mxu0 %v5392
    %v5394 = vand.u32 %v4182, 4294901760
    %5395 = vmatprep.subr.mxu0 %v5394
    %v5396 = vand.u32 %v4181, 4294901760
    %5397 = vmatpush2.msra.mxu0 %v5396
    %v5398 = vand.u32 %v4180, 4294901760
    %5399 = vmatprep.subr.mxu0 %v5398
    %v5400 = vand.u32 %v4179, 4294901760
    %5401 = vmatpush2.msra.mxu0 %v5400
    %v5402 = vand.u32 %v4178, 4294901760
    %5403 = vmatprep.subr.mxu0 %v5402
    %v5404 = vand.u32 %v4177, 4294901760
    %5405 = vmatpush2.msra.mxu0 %v5404
    %v5406 = vand.u32 %v4176, 4294901760
    %5407 = vmatprep.subr.mxu0 %v5406
    %v5408 = vand.u32 %v4175, 4294901760
    %5409 = vmatpush2.msra.mxu0 %v5408
    %v5410 = vand.u32 %v4174, 4294901760
    %5411 = vmatprep.subr.mxu0 %v5410
    %v5412 = vand.u32 %v4173, 4294901760
    %5413 = vmatpush2.msra.mxu0 %v5412
    %v5414 = vand.u32 %v4172, 4294901760
    %5415 = vmatprep.subr.mxu0 %v5414
    %v5416 = vand.u32 %v4171, 4294901760
    %5417 = vmatpush2.msra.mxu0 %v5416
    %v5418 = vand.u32 %v4170, 4294901760
    %5419 = vmatprep.subr.mxu0 %v5418
    %v5420 = vand.u32 %v4169, 4294901760
    %5421 = vmatpush2.msra.mxu0 %v5420
    %v5422 = vand.u32 %v4168, 4294901760
    %5423 = vmatprep.subr.mxu0 %v5422
    %v5424 = vand.u32 %v4167, 4294901760
    %5425 = vmatpush2.msra.mxu0 %v5424
    %v5426 = vand.u32 %v4166, 4294901760
    %5427 = vmatprep.subr.mxu0 %v5426
    %v5428 = vand.u32 %v4165, 4294901760
    %5429 = vmatpush2.msra.mxu0 %v5428
    %v5430 = vand.u32 %v4164, 4294901760
    %5431 = vmatprep.subr.mxu0 %v5430
    %v5432 = vand.u32 %v4163, 4294901760
    %5433 = vmatpush2.msra.mxu0 %v5432
    %v5434 = vand.u32 %v4162, 4294901760
    %5435 = vmatprep.subr.mxu0 %v5434
    %v5436 = vand.u32 %v4161, 4294901760
    %5437 = vmatpush2.msra.mxu0 %v5436
    %v5438 = vand.u32 %v4160, 4294901760
    %5439 = vmatprep.subr.mxu0 %v5438
    %v5440 = vand.u32 %v4159, 4294901760
    %5441 = vmatpush2.msra.mxu0 %v5440
    %v5442 = vand.u32 %v4158, 4294901760
    %5443 = vmatprep.subr.mxu0 %v5442
    %v5444 = vand.u32 %v4157, 4294901760
    %5445 = vmatpush2.msra.mxu0 %v5444
    %v5446 = vand.u32 %v4156, 4294901760
    %5447 = vmatprep.subr.mxu0 %v5446
    %v5448 = vand.u32 %v4155, 4294901760
    %5449 = vmatpush2.msra.mxu0 %v5448
    %v5450 = vand.u32 %v4154, 4294901760
    %5451 = vmatprep.subr.mxu0 %v5450
    %v5452 = vand.u32 %v4153, 4294901760
    %5453 = vmatpush2.msra.mxu0 %v5452
    %v5454 = vand.u32 %v4152, 4294901760
    %5455 = vmatprep.subr.mxu0 %v5454
    %v5456 = vand.u32 %v4151, 4294901760
    %5457 = vmatpush2.msra.mxu0 %v5456
    %v5458 = vand.u32 %v4116, 4294901760
    %5459 = vmatprep.mubr.f32.mxu0 %v5458
    %v5460 = vand.u32 %v4114, 4294901760
    %5461 = vmatmul.mubr.f32.gmra.mxu0 %v5460
    %v5462 = vpop.f32.mrf.mxu0
    %v5463 = vadd.f32 %v5326, %v5462
    %v5464 = vpop.f32.mrf.mxu0
    %v5465 = vadd.f32 %v5328, %v5464
    %5466 = vdwg.mxu0
    %v5467 = vsub.f32 %v5463, 0.5
    %v5468 = vsub.f32 %v5465, 0.5
    %v5469 = vmul.f32 %v5467, -100.0
    %v5470 = vmul.f32 %v5468, -100.0
    %v5471 = vmul.f32 %v5469, 1.442695
    %v5472 = vpow.pop %v5471
    %v5473 = vmul.f32 %v5470, 1.442695
    %v5474 = vpow.pop %v5473
    %v5475 = vadd.f32 %v5472, 1.0
    %v5476 = vadd.f32 %v5474, 1.0
    %v5477 = vrcp.pop %v5475
    %v5478 = vmul.f32 1.0, %v5477
    %v5479 = vrcp.pop %v5476
    %v5480 = vmul.f32 1.0, %v5479
    %5481 = vst [vmem:[%s2 + $0x30] sm:$0xff] %v5478
    %5482 = vst [vmem:[%s2 + $0x38] sm:$0xff] %v5480
    // Predicated region
    $region14: #{flexible_convnet_forward.1} parent=1 // pred_check
      _
    $region15: #{flexible_convnet_forward.1} parent=1 // pred_check_branch
      %5484 = sbr.rel (0) target = $region17
    $region16: #{flexible_convnet_forward.1} parent=1 // pred_region
      _
    $region17: #{flexible_convnet_forward.1} parent=1 // pred_fallthru
      _
    // Predicated region
    $region18: #{flexible_convnet_forward.1} parent=1 // pred_check
      _
    $region19: #{flexible_convnet_forward.1} parent=1 // pred_check_branch
      %5486 = sbr.rel (0) target = $region21
    $region20: #{flexible_convnet_forward.1} parent=1 // pred_region
      _
    $region21: #{flexible_convnet_forward.1} parent=1 // pred_fallthru
      _
    %5487 = vsyncpa [#allocation3], 1

</llo_original>
